<compile_context>
chip_gen: v6e
topology: v6e:2x2x1
jax: 0.10.0
libtpu: 0.0.40
codegen_flags: <defaults>
</compile_context>

<pallas_src>
import functools

import jax
import jax.numpy as jnp
import numpy as np
from jax import lax
from jax.experimental import pallas as pl
from jax.experimental.pallas import tpu as pltpu

BN_EPS = 1e-5


def _pick_tile(m, target, quantum=8):
    t = min(target, m)
    t -= t % quantum
    t = max(t, quantum)
    while t > quantum and m % t:
        t -= quantum
    if m % t:
        t = m                     # fall back to a single full-size block
    return t


# ----------------------------- Pallas kernels -----------------------------

def deconv_stats_kernel(xcol_ref, wd_ref, h0_ref, st_ref):
    """Phase-packed ConvTranspose2d(4,2,1) tile + BN1 partial sum / sum-of-squares."""
    c4 = wd_ref.shape[1]
    y = jnp.dot(xcol_ref[...], wd_ref[...], preferred_element_type=jnp.float32)
    yq = y.astype(jnp.bfloat16)
    h0_ref[...] = yq
    yf = yq.astype(jnp.float32)                     # stats over the stored (bf16) tensor
    st = jnp.concatenate(
        [jnp.sum(yf, axis=0, keepdims=True),
         jnp.sum(yf * yf, axis=0, keepdims=True)], axis=0)
    st_ref[...] = st.reshape(1, 2, c4)


def bn_relu_conv3_kernel(cur_ref, prev_ref, next_ref, aff_ref, w3_ref,
                         h2_ref, st_ref, win_ref):
    """BN1(affine)+ReLU fused with the 3x3 conv in phase-packed layout (+BN2 partials).

    cur: (1,TR,W,C4) bf16 row-tile; prev/next: (1,1,W,C4) halo rows; aff: (2,C4) f32;
    w3: (9,C4,C4) bf16 phase-packed conv weight; win_ref: VMEM (TR+2,W+2,C4) f32.
    """
    tr, w, c4 = cur_ref.shape[1], cur_ref.shape[2], cur_ref.shape[3]
    r = pl.program_id(1)
    nrb = pl.num_programs(1)
    a = aff_ref[0:1, :]                              # (1, C4) f32 scale
    c = aff_ref[1:2, :]                              # (1, C4) f32 shift

    def bn_relu(v):
        return jnp.maximum(v.astype(jnp.float32) * a + c, 0.0)

    mid = bn_relu(cur_ref[0])                        # (TR, W, C4) f32
    top = bn_relu(prev_ref[0, 0:1])                  # (1,  W, C4) f32
    bot = bn_relu(next_ref[0, 0:1])
    top = jnp.where(r > 0, top, 0.0)                 # zero pad at image top
    bot = jnp.where(r < nrb - 1, bot, 0.0)           # zero pad at image bottom

    # Zero-padded h1 halo window, on-chip only (f32 scratch: unaligned sub-window
    # stores / shifted reads stay on the simple unpacked-layout path).
    win_ref[...] = jnp.zeros_like(win_ref)
    win_ref[1:tr + 1, 1:w + 1, :] = mid
    win_ref[0:1, 1:w + 1, :] = top
    win_ref[tr + 1:tr + 2, 1:w + 1, :] = bot

    # 3x3 conv on the 2x-upsampled image == 3x3 conv over the phase-packed layout.
    acc = jnp.zeros((tr * w, c4), jnp.float32)
    for s in range(9):
        dy, dx = s // 3, s % 3
        slab = win_ref[dy:dy + tr, dx:dx + w, :].reshape(tr * w, c4)
        acc = acc + jnp.dot(slab.astype(jnp.bfloat16), w3_ref[s],
                            preferred_element_type=jnp.float32)

    h2q = acc.astype(jnp.bfloat16)
    h2_ref[...] = h2q.reshape(1, tr, w, c4)
    yf = h2q.astype(jnp.float32)
    st = jnp.concatenate(
        [jnp.sum(yf, axis=0, keepdims=True),
         jnp.sum(yf * yf, axis=0, keepdims=True)], axis=0)
    st_ref[...] = st.reshape(1, 1, 2, c4)


def bn_bypass_relu_kernel(h2_ref, x_ref, wb_ref, aff_ref, o_ref):
    """BN2(affine) + bypass 1x1 conv at input resolution + broadcast-upsample + ReLU."""
    a = aff_ref[0:1, :]
    c = aff_ref[1:2, :]
    y = h2_ref[...].astype(jnp.float32) * a + c                         # (TM, 4*Cout)
    byp = jnp.dot(x_ref[...], wb_ref[...],
                  preferred_element_type=jnp.float32)                   # (TM, Cout)
    byp4 = jnp.tile(byp, (1, 4))     # nearest 2x upsample == same value in all 4 phases
    o_ref[...] = jnp.maximum(y + byp4, 0.0)


# ---------------------------- pallas_call wrappers ---------------------------

def call_deconv(xcol, wd, *, tm):
    m, kdim = xcol.shape
    c4 = wd.shape[1]
    nt = m // tm
    return pl.pallas_call(
        deconv_stats_kernel,
        grid=(nt,),
        in_specs=[
            pl.BlockSpec((tm, kdim), lambda i: (i, 0)),
            pl.BlockSpec((kdim, c4), lambda i: (0, 0)),
        ],
        out_specs=[
            pl.BlockSpec((tm, c4), lambda i: (i, 0)),
            pl.BlockSpec((1, 2, c4), lambda i: (i, 0, 0)),
        ],
        out_shape=[
            jax.ShapeDtypeStruct((m, c4), jnp.bfloat16),
            jax.ShapeDtypeStruct((nt, 2, c4), jnp.float32),
        ],
        compiler_params=pltpu.CompilerParams(
            dimension_semantics=("parallel",),
            vmem_limit_bytes=32 * 1024 * 1024),
        cost_estimate=pl.CostEstimate(
            flops=2 * m * kdim * c4, transcendentals=0,
            bytes_accessed=2 * m * (kdim + c4)),
    )(xcol, wd)


def call_conv3(h0_img, aff1, w3p, *, tr):
    n, h, w, c4 = h0_img.shape
    nrb = h // tr
    return pl.pallas_call(
        bn_relu_conv3_kernel,
        grid=(n, nrb),
        in_specs=[
            pl.BlockSpec((1, tr, w, c4), lambda b, r: (b, r, 0, 0)),
            pl.BlockSpec((1, 1, w, c4),
                         lambda b, r: (b, jnp.maximum(r * tr - 1, 0), 0, 0)),
            pl.BlockSpec((1, 1, w, c4),
                         lambda b, r: (b, jnp.minimum(r * tr + tr, h - 1), 0, 0)),
            pl.BlockSpec((2, c4), lambda b, r: (0, 0)),
            pl.BlockSpec((9, c4, c4), lambda b, r: (0, 0, 0)),
        ],
        out_specs=[
            pl.BlockSpec((1, tr, w, c4), lambda b, r: (b, r, 0, 0)),
            pl.BlockSpec((1, 1, 2, c4), lambda b, r: (b, r, 0, 0)),
        ],
        out_shape=[
            jax.ShapeDtypeStruct((n, h, w, c4), jnp.bfloat16),
            jax.ShapeDtypeStruct((n, nrb, 2, c4), jnp.float32),
        ],
        scratch_shapes=[pltpu.VMEM((tr + 2, w + 2, c4), jnp.float32)],
        compiler_params=pltpu.CompilerParams(
            dimension_semantics=("parallel", "parallel"),
            vmem_limit_bytes=32 * 1024 * 1024),
        cost_estimate=pl.CostEstimate(
            flops=2 * n * h * w * 9 * c4 * c4, transcendentals=0,
            bytes_accessed=4 * n * h * w * c4),
    )(h0_img, h0_img, h0_img, aff1, w3p)


def call_fuse(h2_2d, x_2d, wb, aff2, *, tm):
    m, c4 = h2_2d.shape
    cin = x_2d.shape[1]
    cout = wb.shape[1]
    nt = m // tm
    return pl.pallas_call(
        bn_bypass_relu_kernel,
        grid=(nt,),
        in_specs=[
            pl.BlockSpec((tm, c4), lambda i: (i, 0)),
            pl.BlockSpec((tm, cin), lambda i: (i, 0)),
            pl.BlockSpec((cin, cout), lambda i: (0, 0)),
            pl.BlockSpec((2, c4), lambda i: (0, 0)),
        ],
        out_specs=pl.BlockSpec((tm, c4), lambda i: (i, 0)),
        out_shape=jax.ShapeDtypeStruct((m, c4), jnp.float32),
        compiler_params=pltpu.CompilerParams(
            dimension_semantics=("parallel",),
            vmem_limit_bytes=32 * 1024 * 1024),
        cost_estimate=pl.CostEstimate(
            flops=2 * m * cin * cout + 4 * m * c4, transcendentals=0,
            bytes_accessed=m * (6 * c4 + 2 * cin)),
    )(h2_2d, x_2d, wb, aff2)


# ------------------------------- JAX glue ----------------------------------

def spectral_normalize(w, key, dim=0, n_iter=1):
    """PyTorch-style spectral_norm: W / sigma with one power iteration."""
    perm = (dim,) + tuple(i for i in range(w.ndim) if i != dim)
    wm = jnp.transpose(w, perm).reshape(w.shape[dim], -1)
    u = jax.random.normal(key, (wm.shape[0],), dtype=jnp.float32)
    u = u / (jnp.linalg.norm(u) + 1e-12)
    v = None
    for _ in range(n_iter):
        v = wm.T @ u
        v = v / (jnp.linalg.norm(v) + 1e-12)
        u = wm @ v
        u = u / (jnp.linalg.norm(u) + 1e-12)
    sigma = u @ (wm @ v)
    return w / sigma


def init_params(key, ch_in, ch_out):
    ks = jax.random.split(key, 6)

    def conv_w(k, shape, fan_in):
        bound = 1.0 / np.sqrt(fan_in)
        return jax.random.uniform(k, shape, jnp.float32, -bound, bound)

    w_bypass = conv_w(ks[0], (ch_out, ch_in, 1, 1), ch_in)
    w_deconv = conv_w(ks[1], (ch_in, ch_out, 4, 4), ch_out * 16)
    w_conv3 = conv_w(ks[2], (ch_out, ch_out, 3, 3), ch_out * 9)

    w_bypass = spectral_normalize(w_bypass, ks[3], dim=0)
    w_deconv = spectral_normalize(w_deconv, ks[4], dim=1)   # ConvTranspose -> dim=1
    w_conv3 = spectral_normalize(w_conv3, ks[5], dim=0)

    return dict(
        w_bypass=w_bypass, w_deconv=w_deconv,
        gamma1=jnp.ones((ch_out,), jnp.float32), beta1=jnp.zeros((ch_out,), jnp.float32),
        w_conv3=w_conv3,
        gamma2=jnp.ones((ch_out,), jnp.float32), beta2=jnp.zeros((ch_out,), jnp.float32),
    )


def _im2col3(xp, h, w):
    """xp: (N, h+2, w+2, C) zero-padded.  Returns (N*h*w, 9*C), tap-major."""
    n, _, _, c = xp.shape
    taps = [xp[:, dy:dy + h, dx:dx + w, :] for dy in range(3) for dx in range(3)]
    col = jnp.stack(taps, axis=3)                   # (N, h, w, 9, C)
    return col.reshape(n * h * w, 9 * c)


def _pack_deconv_weight(w_de, cin, cout):
    """ConvTranspose2d(4,2,1) weight -> (9*Cin, 4*Cout) phase-packed matrix.

    Output column group p = 2*ey + ex holds output parity (oy%2, ox%2) = (ey, ex);
    input rows are the 3x3 neighbourhood taps (dy, dx) at input resolution.
    oy = 2*iy + ky - 1  =>  ky = ey + 1 - 2*dy (valid taps only).
    """
    wp = jnp.zeros((3, 3, cin, 2, 2, cout), jnp.float32)
    for ey in (0, 1):
        for dy in (-1, 0, 1):
            ky = ey + 1 - 2 * dy
            if not 0 <= ky < 4:
                continue
            for ex in (0, 1):
                for dx in (-1, 0, 1):
                    kx = ex + 1 - 2 * dx
                    if not 0 <= kx < 4:
                        continue
                    wp = wp.at[dy + 1, dx + 1, :, ey, ex, :].set(w_de[:, :, ky, kx])
    return wp.reshape(9 * cin, 4 * cout)


def _pack_conv3_weight(w3, cout):
    """Conv2d(3,1,p=1) on the 2x image -> 3x3 conv over the phase-packed layout."""
    c4 = 4 * cout
    wp = jnp.zeros((3, 3, c4, c4), jnp.float32)
    for ey in (0, 1):
        for ex in (0, 1):
            p_out = 2 * ey + ex
            for sdy in (-1, 0, 1):
                for eys in (0, 1):
                    dyk = 2 * sdy + eys - ey
                    if not -1 <= dyk <= 1:
                        continue
                    for sdx in (-1, 0, 1):
                        for exs in (0, 1):
                            dxk = 2 * sdx + exs - ex
                            if not -1 <= dxk <= 1:
                                continue
                            p_src = 2 * eys + exs
                            blk = w3[:, :, dyk + 1, dxk + 1]          # (co, ci)
                            wp = wp.at[sdy + 1, sdx + 1,
                                       p_src * cout:(p_src + 1) * cout,
                                       p_out * cout:(p_out + 1) * cout].set(blk.T)
    return wp.reshape(9, c4, c4)


def _bn_affine(st, gamma, beta, count, cout):
    """Fold per-(phase,channel) sum/sumsq into per-channel BN scale/shift (2, 4*Cout)."""
    # Single-pass E[x^2]-mean^2 in f32 (values are O(1); Welford unnecessary here).
    s = st[0].reshape(4, cout).sum(axis=0)
    ss = st[1].reshape(4, cout).sum(axis=0)
    mean = s / count
    var = ss / count - mean * mean                   # biased (training-mode) variance
    a = gamma * lax.rsqrt(var + BN_EPS)
    c = beta - mean * a
    return jnp.stack([jnp.tile(a, 4), jnp.tile(c, 4)], axis=0).astype(jnp.float32)


@functools.partial(jax.jit, static_argnames=("output_padding",))
def up_layer_residual_forward(x_nchw, params, output_padding=0):
    if output_padding != 0:
        # TODO(synk): output_padding>0 not implemented (module default is 0; the
        # upstream PadLayer(int>0) is itself broken, so it is never exercised).
        raise NotImplementedError("output_padding != 0 is not supported")

    n, cin, h, w = x_nchw.shape
    w_byp = params["w_bypass"]          # (Cout, Cin, 1, 1)
    w_de = params["w_deconv"]           # (Cin, Cout, 4, 4)
    w3 = params["w_conv3"]              # (Cout, Cout, 3, 3)
    g1, b1 = params["gamma1"], params["beta1"]
    g2, b2 = params["gamma2"], params["beta2"]
    cout = w_byp.shape[0]
    c4 = 4 * cout
    m_in = n * h * w

    x_nhwc = jnp.transpose(x_nchw, (0, 2, 3, 1)).astype(jnp.bfloat16)

    # --- pass A: phase-decomposed ConvTranspose2d(4,2,1) + BN1 partial stats ---
    xp = jnp.pad(x_nhwc, ((0, 0), (1, 1), (1, 1), (0, 0)))
    xcol = _im2col3(xp, h, w)                                       # (M_in, 9*Cin) bf16
    wd = _pack_deconv_weight(w_de, cin, cout).astype(jnp.bfloat16)
    tm_a = _pick_tile(m_in, 256)
    h0_2d, st1 = call_deconv(xcol, wd, tm=tm_a)

    aff1 = _bn_affine(jnp.sum(st1, axis=0), g1, b1, 4.0 * m_in, cout)

    # --- pass B: BN1 + ReLU + 3x3 conv (phase-packed, halo kept on-chip) ---
    h0_img = h0_2d.reshape(n, h, w, c4)
    w3p = _pack_conv3_weight(w3, cout).astype(jnp.bfloat16)
    tr_b = _pick_tile(h, 8, quantum=1)
    h2_img, st2 = call_conv3(h0_img, aff1, w3p, tr=tr_b)

    aff2 = _bn_affine(jnp.sum(st2, axis=(0, 1)), g2, b2, 4.0 * m_in, cout)

    # --- pass C: BN2 + bypass (1x1 conv at input res, broadcast upsample) + ReLU ---
    wb = w_byp.reshape(cout, cin).T.astype(jnp.bfloat16)            # (Cin, Cout)
    x_2d = x_nhwc.reshape(m_in, cin)
    tm_c = _pick_tile(m_in, 256)
    out_packed = call_fuse(h2_img.reshape(m_in, c4), x_2d, wb, aff2, tm=tm_c)

    # --- un-interleave the 4 phases back to NCHW ---
    out = out_packed.reshape(n, h, w, 2, 2, cout)
    out = jnp.transpose(out, (0, 5, 1, 3, 2, 4)).reshape(n, cout, 2 * h, 2 * w)
    return out


# ------------------------ pure-JAX reference (sanity) -----------------------

def reference_forward(x, p, round_fn=None):
    """f32 reference; round_fn (if given) quantizes at the same points as the kernel."""
    rb = (lambda v: v) if round_fn is None else round_fn
    dn = ("NCHW", "OIHW", "NCHW")
    xq = rb(x)
    w_byp, w_de, w3 = rb(p["w_bypass"]), rb(p["w_deconv"]), rb(p["w_conv3"])
    g1, b1, g2, b2 = p["gamma1"], p["beta1"], p["gamma2"], p["beta2"]

    def bn(z, g, b):
        mean = jnp.mean(z, axis=(0, 2, 3), keepdims=True)
        var = jnp.mean((z - mean) ** 2, axis=(0, 2, 3), keepdims=True)
        return (z - mean) * lax.rsqrt(var + BN_EPS) * g.reshape(1, -1, 1, 1) \
            + b.reshape(1, -1, 1, 1)

    y = lax.conv_general_dilated(xq, w_byp, (1, 1), "VALID", dimension_numbers=dn)
    y = jnp.repeat(jnp.repeat(y, 2, axis=2), 2, axis=3)

    w_t = jnp.transpose(w_de[:, :, ::-1, ::-1], (1, 0, 2, 3))
    r = lax.conv_general_dilated(xq, w_t, (1, 1), [(2, 2), (2, 2)],
                                 lhs_dilation=(2, 2), dimension_numbers=dn)
    r = rb(r)
    r = rb(jnp.maximum(bn(r, g1, b1), 0.0))
    r = rb(lax.conv_general_dilated(r, w3, (1, 1), [(1, 1), (1, 1)],
                                    dimension_numbers=dn))
    r = bn(r, g2, b2)
    return jnp.maximum(y + r, 0.0)


# --------------------------------- main -------------------------------------

if __name__ == "__main__":
    key = jax.random.PRNGKey(0)
    k_x, k_p = jax.random.split(key)

    N, CH_IN, CH_OUT, H, W = 2, 4, 8, 16, 16
    x = jax.random.normal(k_x, (N, CH_IN, H, W), dtype=jnp.float32)
    params = init_params(k_p, CH_IN, CH_OUT)

    out = jax.block_until_ready(up_layer_residual_forward(x, params))
    assert out.shape == (N, CH_OUT, 2 * H, 2 * W), out.shape

    # Tight check vs a reference that quantizes at the same points as the kernel
    # (bf16 MXU operands and bf16 HBM intermediates).
    rb = lambda v: v.astype(jnp.bfloat16).astype(jnp.float32)
    ref_q = jax.block_until_ready(reference_forward(x, params, round_fn=rb))
    np.testing.assert_allclose(np.asarray(out), np.asarray(ref_q), rtol=2e-2, atol=2e-2)

    # Coarse sanity vs the pure-f32 reference (bf16 matmul path vs f32 math).
    ref = jax.block_until_ready(reference_forward(x, params))
    np.testing.assert_allclose(np.asarray(out), np.asarray(ref), rtol=1e-1, atol=1e-1)

    print("KERNEL_OK")
</pallas_src>

<mosaic_0001>
module attributes {stable_mosaic.version = 11 : i64} {
  func.func @deconv_stats_kernel(%arg0: i32, %arg1: memref<256x36xbf16, #tpu.memory_space<vmem>>, %arg2: memref<36x32xbf16, #tpu.memory_space<vmem>>, %arg3: memref<256x32xbf16, #tpu.memory_space<vmem>>, %arg4: memref<1x2x32xf32, #tpu.memory_space<vmem>>) attributes {dimension_semantics = [#tpu.dimension_semantics<parallel>], iteration_bounds = array<i64: 2>, scalar_prefetch = 0 : i64, scratch_operands = 0 : i64, tpu.core_type = #tpu.core_type<tc>, window_params = [{transform_indices = @transform_0, window_bounds = array<i64: 256, 36>}, {pipeline_mode = #tpu.pipeline_mode<synchronous>, transform_indices = @transform_1, window_bounds = array<i64: 36, 32>}, {transform_indices = @transform_2, window_bounds = array<i64: 256, 32>}, {transform_indices = @transform_3, window_bounds = array<i64: 1, 2, 32>}]} {
    %c0 = arith.constant 0 : index
    %c0_0 = arith.constant 0 : index
    %0 = vector.load %arg1[%c0, %c0_0] : memref<256x36xbf16, #tpu.memory_space<vmem>>, vector<256x36xbf16>
    %c0_1 = arith.constant 0 : index
    %c0_2 = arith.constant 0 : index
    %1 = vector.load %arg2[%c0_1, %c0_2] : memref<36x32xbf16, #tpu.memory_space<vmem>>, vector<36x32xbf16>
    %cst = arith.constant dense<0.000000e+00> : vector<256x32xf32>
    %2 = tpu.matmul %0, %1, %cst {dimension_numbers = #tpu.dot_dimension_numbers<[1], [0], [0], [1], [0, 0, 1, 1], [], []>} : vector<256x36xbf16>, vector<36x32xbf16>, vector<256x32xf32> -> vector<256x32xf32>
    %3 = arith.truncf %2 : vector<256x32xf32> to vector<256x32xbf16>
    %c0_3 = arith.constant 0 : index
    %c0_4 = arith.constant 0 : index
    %4 = vector.load %arg3[%c0_3, %c0_4] : memref<256x32xbf16, #tpu.memory_space<vmem>>, vector<256x32xbf16>
    tpu.vector_store %arg3[%c0_3, %c0_4], %3 {strides = array<i32>} : memref<256x32xbf16, #tpu.memory_space<vmem>>, vector<256x32xbf16>,
    %5 = arith.extf %3 : vector<256x32xbf16> to vector<256x32xf32>
    %cst_5 = arith.constant dense<0.000000e+00> : vector<32xf32>
    %6 = vector.multi_reduction <add>, %5, %cst_5 [0] : vector<256x32xf32> to vector<32xf32>
    %7 = vector.shape_cast %6 : vector<32xf32> to vector<1x32xf32>
    %8 = arith.mulf %5, %5 : vector<256x32xf32>
    %cst_6 = arith.constant dense<0.000000e+00> : vector<32xf32>
    %9 = vector.multi_reduction <add>, %8, %cst_6 [0] : vector<256x32xf32> to vector<32xf32>
    %10 = vector.shape_cast %9 : vector<32xf32> to vector<1x32xf32>
    %11 = tpu.concatenate %7, %10 in 0 : vector<1x32xf32>, vector<1x32xf32> -> vector<2x32xf32>
    %12 = vector.shape_cast %11 : vector<2x32xf32> to vector<1x2x32xf32>
    %c0_7 = arith.constant 0 : index
    %c0_8 = arith.constant 0 : index
    %c0_9 = arith.constant 0 : index
    %13 = vector.load %arg4[%c0_7, %c0_8, %c0_9] : memref<1x2x32xf32, #tpu.memory_space<vmem>>, vector<1x2x32xf32>
    tpu.vector_store %arg4[%c0_7, %c0_8, %c0_9], %12 {strides = array<i32>} : memref<1x2x32xf32, #tpu.memory_space<vmem>>, vector<1x2x32xf32>,
    return
  }
  func.func @transform_0(%arg0: i32) -> (i32, i32) {
    %c0_i32 = arith.constant 0 : i32
    %c0_i32_0 = arith.constant 0 : i32
    return %arg0, %c0_i32 : i32, i32
  }
  func.func @transform_1(%arg0: i32) -> (i32, i32) {
    %c0_i32 = arith.constant 0 : i32
    %c0_i32_0 = arith.constant 0 : i32
    %c0_i32_1 = arith.constant 0 : i32
    return %c0_i32, %c0_i32_0 : i32, i32
  }
  func.func @transform_2(%arg0: i32) -> (i32, i32) {
    %c0_i32 = arith.constant 0 : i32
    %c0_i32_0 = arith.constant 0 : i32
    return %arg0, %c0_i32 : i32, i32
  }
  func.func @transform_3(%arg0: i32) -> (i32, i32, i32) {
    %c0_i32 = arith.constant 0 : i32
    %c0_i32_0 = arith.constant 0 : i32
    %c0_i32_1 = arith.constant 0 : i32
    return %arg0, %c0_i32, %c0_i32_0 : i32, i32, i32
  }
}

module attributes {stable_mosaic.version = 11 : i64} {
  func.func @bn_relu_conv3_kernel(%arg0: i32, %arg1: i32, %arg2: memref<1x8x16x32xbf16, #tpu.memory_space<vmem>>, %arg3: memref<1x1x16x32xbf16, #tpu.memory_space<vmem>>, %arg4: memref<1x1x16x32xbf16, #tpu.memory_space<vmem>>, %arg5: memref<2x32xf32, #tpu.memory_space<vmem>>, %arg6: memref<9x32x32xbf16, #tpu.memory_space<vmem>>, %arg7: memref<1x8x16x32xbf16, #tpu.memory_space<vmem>>, %arg8: memref<1x1x2x32xf32, #tpu.memory_space<vmem>>, %arg9: memref<10x18x32xf32, #tpu.memory_space<vmem>>) attributes {dimension_semantics = [#tpu.dimension_semantics<parallel>, #tpu.dimension_semantics<parallel>], iteration_bounds = array<i64: 2, 2>, scalar_prefetch = 0 : i64, scratch_operands = 1 : i64, tpu.core_type = #tpu.core_type<tc>, window_params = [{transform_indices = @transform_0, window_bounds = array<i64: 1, 8, 16, 32>}, {transform_indices = @transform_1, window_bounds = array<i64: 1, 1, 16, 32>}, {transform_indices = @transform_2, window_bounds = array<i64: 1, 1, 16, 32>}, {pipeline_mode = #tpu.pipeline_mode<synchronous>, transform_indices = @transform_3, window_bounds = array<i64: 2, 32>}, {pipeline_mode = #tpu.pipeline_mode<synchronous>, transform_indices = @transform_4, window_bounds = array<i64: 9, 32, 32>}, {transform_indices = @transform_5, window_bounds = array<i64: 1, 8, 16, 32>}, {transform_indices = @transform_6, window_bounds = array<i64: 1, 1, 2, 32>}]} {
    %c0 = arith.constant 0 : index
    %c0_0 = arith.constant 0 : index
    %0 = vector.load %arg5[%c0, %c0_0] : memref<2x32xf32, #tpu.memory_space<vmem>>, vector<1x32xf32>
    %c1 = arith.constant 1 : index
    %c0_1 = arith.constant 0 : index
    %1 = vector.load %arg5[%c1, %c0_1] : memref<2x32xf32, #tpu.memory_space<vmem>>, vector<1x32xf32>
    %c0_2 = arith.constant 0 : index
    %c0_3 = arith.constant 0 : index
    %c0_4 = arith.constant 0 : index
    %c0_5 = arith.constant 0 : index
    %2 = vector.load %arg2[%c0_2, %c0_3, %c0_4, %c0_5] : memref<1x8x16x32xbf16, #tpu.memory_space<vmem>>, vector<1x8x16x32xbf16>
    %3 = vector.shape_cast %2 : vector<1x8x16x32xbf16> to vector<8x16x32xbf16>
    %4 = arith.extf %3 : vector<8x16x32xbf16> to vector<8x16x32xf32>
    %5 = vector.shape_cast %0 : vector<1x32xf32> to vector<1x1x32xf32>
    %6 = vector.broadcast %5 : vector<1x1x32xf32> to vector<8x16x32xf32>
    %7 = arith.mulf %4, %6 : vector<8x16x32xf32>
    %8 = vector.shape_cast %1 : vector<1x32xf32> to vector<1x1x32xf32>
    %9 = vector.broadcast %8 : vector<1x1x32xf32> to vector<8x16x32xf32>
    %10 = arith.addf %7, %9 : vector<8x16x32xf32>
    %cst = arith.constant 0.000000e+00 : f32
    %11 = vector.broadcast %cst : f32 to vector<8x16x32xf32>
    %12 = arith.maximumf %10, %11 : vector<8x16x32xf32>
    %c0_6 = arith.constant 0 : index
    %c0_7 = arith.constant 0 : index
    %c0_8 = arith.constant 0 : index
    %c0_9 = arith.constant 0 : index
    %13 = vector.load %arg3[%c0_6, %c0_7, %c0_8, %c0_9] : memref<1x1x16x32xbf16, #tpu.memory_space<vmem>>, vector<1x1x16x32xbf16>
    %14 = vector.shape_cast %13 : vector<1x1x16x32xbf16> to vector<1x16x32xbf16>
    %15 = arith.extf %14 : vector<1x16x32xbf16> to vector<1x16x32xf32>
    %16 = vector.shape_cast %0 : vector<1x32xf32> to vector<1x1x32xf32>
    %17 = vector.broadcast %16 : vector<1x1x32xf32> to vector<1x16x32xf32>
    %18 = arith.mulf %15, %17 : vector<1x16x32xf32>
    %19 = vector.shape_cast %1 : vector<1x32xf32> to vector<1x1x32xf32>
    %20 = vector.broadcast %19 : vector<1x1x32xf32> to vector<1x16x32xf32>
    %21 = arith.addf %18, %20 : vector<1x16x32xf32>
    %cst_10 = arith.constant 0.000000e+00 : f32
    %22 = vector.broadcast %cst_10 : f32 to vector<1x16x32xf32>
    %23 = arith.maximumf %21, %22 : vector<1x16x32xf32>
    %c0_11 = arith.constant 0 : index
    %c0_12 = arith.constant 0 : index
    %c0_13 = arith.constant 0 : index
    %c0_14 = arith.constant 0 : index
    %24 = vector.load %arg4[%c0_11, %c0_12, %c0_13, %c0_14] : memref<1x1x16x32xbf16, #tpu.memory_space<vmem>>, vector<1x1x16x32xbf16>
    %25 = vector.shape_cast %24 : vector<1x1x16x32xbf16> to vector<1x16x32xbf16>
    %26 = arith.extf %25 : vector<1x16x32xbf16> to vector<1x16x32xf32>
    %27 = vector.shape_cast %0 : vector<1x32xf32> to vector<1x1x32xf32>
    %28 = vector.broadcast %27 : vector<1x1x32xf32> to vector<1x16x32xf32>
    %29 = arith.mulf %26, %28 : vector<1x16x32xf32>
    %30 = vector.shape_cast %1 : vector<1x32xf32> to vector<1x1x32xf32>
    %31 = vector.broadcast %30 : vector<1x1x32xf32> to vector<1x16x32xf32>
    %32 = arith.addf %29, %31 : vector<1x16x32xf32>
    %cst_15 = arith.constant 0.000000e+00 : f32
    %33 = vector.broadcast %cst_15 : f32 to vector<1x16x32xf32>
    %34 = arith.maximumf %32, %33 : vector<1x16x32xf32>
    %c0_i32 = arith.constant 0 : i32
    %35 = arith.cmpi sgt, %arg1, %c0_i32 : i32
    %cst_16 = arith.constant 0.000000e+00 : f32
    %36 = vector.broadcast %cst_16 : f32 to vector<1x16x32xf32>
    %37 = arith.select %35, %23, %36 : vector<1x16x32xf32>
    %c1_i32 = arith.constant 1 : i32
    %38 = arith.cmpi slt, %arg1, %c1_i32 : i32
    %cst_17 = arith.constant 0.000000e+00 : f32
    %39 = vector.broadcast %cst_17 : f32 to vector<1x16x32xf32>
    %40 = arith.select %38, %34, %39 : vector<1x16x32xf32>
    %cst_18 = arith.constant 0.000000e+00 : f32
    %41 = vector.broadcast %cst_18 : f32 to vector<10x18x32xf32>
    %c0_19 = arith.constant 0 : index
    %c0_20 = arith.constant 0 : index
    %c0_21 = arith.constant 0 : index
    %42 = vector.load %arg9[%c0_19, %c0_20, %c0_21] : memref<10x18x32xf32, #tpu.memory_space<vmem>>, vector<10x18x32xf32>
    tpu.vector_store %arg9[%c0_19, %c0_20, %c0_21], %41 {strides = array<i32>} : memref<10x18x32xf32, #tpu.memory_space<vmem>>, vector<10x18x32xf32>,
    %c1_22 = arith.constant 1 : index
    %c1_23 = arith.constant 1 : index
    %c0_24 = arith.constant 0 : index
    %43 = vector.load %arg9[%c1_22, %c1_23, %c0_24] : memref<10x18x32xf32, #tpu.memory_space<vmem>>, vector<8x16x32xf32>
    tpu.vector_store %arg9[%c1_22, %c1_23, %c0_24], %12 {strides = array<i32>} : memref<10x18x32xf32, #tpu.memory_space<vmem>>, vector<8x16x32xf32>,
    %c0_25 = arith.constant 0 : index
    %c1_26 = arith.constant 1 : index
    %c0_27 = arith.constant 0 : index
    %44 = vector.load %arg9[%c0_25, %c1_26, %c0_27] : memref<10x18x32xf32, #tpu.memory_space<vmem>>, vector<1x16x32xf32>
    tpu.vector_store %arg9[%c0_25, %c1_26, %c0_27], %37 {strides = array<i32>} : memref<10x18x32xf32, #tpu.memory_space<vmem>>, vector<1x16x32xf32>,
    %c9 = arith.constant 9 : index
    %c1_28 = arith.constant 1 : index
    %c0_29 = arith.constant 0 : index
    %45 = vector.load %arg9[%c9, %c1_28, %c0_29] : memref<10x18x32xf32, #tpu.memory_space<vmem>>, vector<1x16x32xf32>
    tpu.vector_store %arg9[%c9, %c1_28, %c0_29], %40 {strides = array<i32>} : memref<10x18x32xf32, #tpu.memory_space<vmem>>, vector<1x16x32xf32>,
    %cst_30 = arith.constant 0.000000e+00 : f32
    %46 = vector.broadcast %cst_30 : f32 to vector<128x32xf32>
    %c0_31 = arith.constant 0 : index
    %c0_32 = arith.constant 0 : index
    %c0_33 = arith.constant 0 : index
    %47 = vector.load %arg9[%c0_31, %c0_32, %c0_33] : memref<10x18x32xf32, #tpu.memory_space<vmem>>, vector<8x16x32xf32>
    %48 = vector.shape_cast %47 : vector<8x16x32xf32> to vector<128x32xf32>
    %49 = arith.truncf %48 : vector<128x32xf32> to vector<128x32xbf16>
    %c0_34 = arith.constant 0 : index
    %c0_35 = arith.constant 0 : index
    %c0_36 = arith.constant 0 : index
    %50 = vector.load %arg6[%c0_34, %c0_35, %c0_36] : memref<9x32x32xbf16, #tpu.memory_space<vmem>>, vector<1x32x32xbf16>
    %51 = vector.shape_cast %50 : vector<1x32x32xbf16> to vector<32x32xbf16>
    %cst_37 = arith.constant dense<0.000000e+00> : vector<128x32xf32>
    %52 = tpu.matmul %49, %51, %cst_37 {dimension_numbers = #tpu.dot_dimension_numbers<[1], [0], [0], [1], [0, 0, 1, 1], [], []>} : vector<128x32xbf16>, vector<32x32xbf16>, vector<128x32xf32> -> vector<128x32xf32>
    %53 = arith.addf %46, %52 : vector<128x32xf32>
    %c0_38 = arith.constant 0 : index
    %c1_39 = arith.constant 1 : index
    %c0_40 = arith.constant 0 : index
    %54 = vector.load %arg9[%c0_38, %c1_39, %c0_40] : memref<10x18x32xf32, #tpu.memory_space<vmem>>, vector<8x16x32xf32>
    %55 = vector.shape_cast %54 : vector<8x16x32xf32> to vector<128x32xf32>
    %56 = arith.truncf %55 : vector<128x32xf32> to vector<128x32xbf16>
    %c1_41 = arith.constant 1 : index
    %c0_42 = arith.constant 0 : index
    %c0_43 = arith.constant 0 : index
    %57 = vector.load %arg6[%c1_41, %c0_42, %c0_43] : memref<9x32x32xbf16, #tpu.memory_space<vmem>>, vector<1x32x32xbf16>
    %58 = vector.shape_cast %57 : vector<1x32x32xbf16> to vector<32x32xbf16>
    %cst_44 = arith.constant dense<0.000000e+00> : vector<128x32xf32>
    %59 = tpu.matmul %56, %58, %cst_44 {dimension_numbers = #tpu.dot_dimension_numbers<[1], [0], [0], [1], [0, 0, 1, 1], [], []>} : vector<128x32xbf16>, vector<32x32xbf16>, vector<128x32xf32> -> vector<128x32xf32>
    %60 = arith.addf %53, %59 : vector<128x32xf32>
    %c0_45 = arith.constant 0 : index
    %c2 = arith.constant 2 : index
    %c0_46 = arith.constant 0 : index
    %61 = vector.load %arg9[%c0_45, %c2, %c0_46] : memref<10x18x32xf32, #tpu.memory_space<vmem>>, vector<8x16x32xf32>
    %62 = vector.shape_cast %61 : vector<8x16x32xf32> to vector<128x32xf32>
    %63 = arith.truncf %62 : vector<128x32xf32> to vector<128x32xbf16>
    %c2_47 = arith.constant 2 : index
    %c0_48 = arith.constant 0 : index
    %c0_49 = arith.constant 0 : index
    %64 = vector.load %arg6[%c2_47, %c0_48, %c0_49] : memref<9x32x32xbf16, #tpu.memory_space<vmem>>, vector<1x32x32xbf16>
    %65 = vector.shape_cast %64 : vector<1x32x32xbf16> to vector<32x32xbf16>
    %cst_50 = arith.constant dense<0.000000e+00> : vector<128x32xf32>
    %66 = tpu.matmul %63, %65, %cst_50 {dimension_numbers = #tpu.dot_dimension_numbers<[1], [0], [0], [1], [0, 0, 1, 1], [], []>} : vector<128x32xbf16>, vector<32x32xbf16>, vector<128x32xf32> -> vector<128x32xf32>
    %67 = arith.addf %60, %66 : vector<128x32xf32>
    %c1_51 = arith.constant 1 : index
    %c0_52 = arith.constant 0 : index
    %c0_53 = arith.constant 0 : index
    %68 = vector.load %arg9[%c1_51, %c0_52, %c0_53] : memref<10x18x32xf32, #tpu.memory_space<vmem>>, vector<8x16x32xf32>
    %69 = vector.shape_cast %68 : vector<8x16x32xf32> to vector<128x32xf32>
    %70 = arith.truncf %69 : vector<128x32xf32> to vector<128x32xbf16>
    %c3 = arith.constant 3 : index
    %c0_54 = arith.constant 0 : index
    %c0_55 = arith.constant 0 : index
    %71 = vector.load %arg6[%c3, %c0_54, %c0_55] : memref<9x32x32xbf16, #tpu.memory_space<vmem>>, vector<1x32x32xbf16>
    %72 = vector.shape_cast %71 : vector<1x32x32xbf16> to vector<32x32xbf16>
    %cst_56 = arith.constant dense<0.000000e+00> : vector<128x32xf32>
    %73 = tpu.matmul %70, %72, %cst_56 {dimension_numbers = #tpu.dot_dimension_numbers<[1], [0], [0], [1], [0, 0, 1, 1], [], []>} : vector<128x32xbf16>, vector<32x32xbf16>, vector<128x32xf32> -> vector<128x32xf32>
    %74 = arith.addf %67, %73 : vector<128x32xf32>
    %c1_57 = arith.constant 1 : index
    %c1_58 = arith.constant 1 : index
    %c0_59 = arith.constant 0 : index
    %75 = vector.load %arg9[%c1_57, %c1_58, %c0_59] : memref<10x18x32xf32, #tpu.memory_space<vmem>>, vector<8x16x32xf32>
    %76 = vector.shape_cast %75 : vector<8x16x32xf32> to vector<128x32xf32>
    %77 = arith.truncf %76 : vector<128x32xf32> to vector<128x32xbf16>
    %c4 = arith.constant 4 : index
    %c0_60 = arith.constant 0 : index
    %c0_61 = arith.constant 0 : index
    %78 = vector.load %arg6[%c4, %c0_60, %c0_61] : memref<9x32x32xbf16, #tpu.memory_space<vmem>>, vector<1x32x32xbf16>
    %79 = vector.shape_cast %78 : vector<1x32x32xbf16> to vector<32x32xbf16>
    %cst_62 = arith.constant dense<0.000000e+00> : vector<128x32xf32>
    %80 = tpu.matmul %77, %79, %cst_62 {dimension_numbers = #tpu.dot_dimension_numbers<[1], [0], [0], [1], [0, 0, 1, 1], [], []>} : vector<128x32xbf16>, vector<32x32xbf16>, vector<128x32xf32> -> vector<128x32xf32>
    %81 = arith.addf %74, %80 : vector<128x32xf32>
    %c1_63 = arith.constant 1 : index
    %c2_64 = arith.constant 2 : index
    %c0_65 = arith.constant 0 : index
    %82 = vector.load %arg9[%c1_63, %c2_64, %c0_65] : memref<10x18x32xf32, #tpu.memory_space<vmem>>, vector<8x16x32xf32>
    %83 = vector.shape_cast %82 : vector<8x16x32xf32> to vector<128x32xf32>
    %84 = arith.truncf %83 : vector<128x32xf32> to vector<128x32xbf16>
    %c5 = arith.constant 5 : index
    %c0_66 = arith.constant 0 : index
    %c0_67 = arith.constant 0 : index
    %85 = vector.load %arg6[%c5, %c0_66, %c0_67] : memref<9x32x32xbf16, #tpu.memory_space<vmem>>, vector<1x32x32xbf16>
    %86 = vector.shape_cast %85 : vector<1x32x32xbf16> to vector<32x32xbf16>
    %cst_68 = arith.constant dense<0.000000e+00> : vector<128x32xf32>
    %87 = tpu.matmul %84, %86, %cst_68 {dimension_numbers = #tpu.dot_dimension_numbers<[1], [0], [0], [1], [0, 0, 1, 1], [], []>} : vector<128x32xbf16>, vector<32x32xbf16>, vector<128x32xf32> -> vector<128x32xf32>
    %88 = arith.addf %81, %87 : vector<128x32xf32>
    %c2_69 = arith.constant 2 : index
    %c0_70 = arith.constant 0 : index
    %c0_71 = arith.constant 0 : index
    %89 = vector.load %arg9[%c2_69, %c0_70, %c0_71] : memref<10x18x32xf32, #tpu.memory_space<vmem>>, vector<8x16x32xf32>
    %90 = vector.shape_cast %89 : vector<8x16x32xf32> to vector<128x32xf32>
    %91 = arith.truncf %90 : vector<128x32xf32> to vector<128x32xbf16>
    %c6 = arith.constant 6 : index
    %c0_72 = arith.constant 0 : index
    %c0_73 = arith.constant 0 : index
    %92 = vector.load %arg6[%c6, %c0_72, %c0_73] : memref<9x32x32xbf16, #tpu.memory_space<vmem>>, vector<1x32x32xbf16>
    %93 = vector.shape_cast %92 : vector<1x32x32xbf16> to vector<32x32xbf16>
    %cst_74 = arith.constant dense<0.000000e+00> : vector<128x32xf32>
    %94 = tpu.matmul %91, %93, %cst_74 {dimension_numbers = #tpu.dot_dimension_numbers<[1], [0], [0], [1], [0, 0, 1, 1], [], []>} : vector<128x32xbf16>, vector<32x32xbf16>, vector<128x32xf32> -> vector<128x32xf32>
    %95 = arith.addf %88, %94 : vector<128x32xf32>
    %c2_75 = arith.constant 2 : index
    %c1_76 = arith.constant 1 : index
    %c0_77 = arith.constant 0 : index
    %96 = vector.load %arg9[%c2_75, %c1_76, %c0_77] : memref<10x18x32xf32, #tpu.memory_space<vmem>>, vector<8x16x32xf32>
    %97 = vector.shape_cast %96 : vector<8x16x32xf32> to vector<128x32xf32>
    %98 = arith.truncf %97 : vector<128x32xf32> to vector<128x32xbf16>
    %c7 = arith.constant 7 : index
    %c0_78 = arith.constant 0 : index
    %c0_79 = arith.constant 0 : index
    %99 = vector.load %arg6[%c7, %c0_78, %c0_79] : memref<9x32x32xbf16, #tpu.memory_space<vmem>>, vector<1x32x32xbf16>
    %100 = vector.shape_cast %99 : vector<1x32x32xbf16> to vector<32x32xbf16>
    %cst_80 = arith.constant dense<0.000000e+00> : vector<128x32xf32>
    %101 = tpu.matmul %98, %100, %cst_80 {dimension_numbers = #tpu.dot_dimension_numbers<[1], [0], [0], [1], [0, 0, 1, 1], [], []>} : vector<128x32xbf16>, vector<32x32xbf16>, vector<128x32xf32> -> vector<128x32xf32>
    %102 = arith.addf %95, %101 : vector<128x32xf32>
    %c2_81 = arith.constant 2 : index
    %c2_82 = arith.constant 2 : index
    %c0_83 = arith.constant 0 : index
    %103 = vector.load %arg9[%c2_81, %c2_82, %c0_83] : memref<10x18x32xf32, #tpu.memory_space<vmem>>, vector<8x16x32xf32>
    %104 = vector.shape_cast %103 : vector<8x16x32xf32> to vector<128x32xf32>
    %105 = arith.truncf %104 : vector<128x32xf32> to vector<128x32xbf16>
    %c8 = arith.constant 8 : index
    %c0_84 = arith.constant 0 : index
    %c0_85 = arith.constant 0 : index
    %106 = vector.load %arg6[%c8, %c0_84, %c0_85] : memref<9x32x32xbf16, #tpu.memory_space<vmem>>, vector<1x32x32xbf16>
    %107 = vector.shape_cast %106 : vector<1x32x32xbf16> to vector<32x32xbf16>
    %cst_86 = arith.constant dense<0.000000e+00> : vector<128x32xf32>
    %108 = tpu.matmul %105, %107, %cst_86 {dimension_numbers = #tpu.dot_dimension_numbers<[1], [0], [0], [1], [0, 0, 1, 1], [], []>} : vector<128x32xbf16>, vector<32x32xbf16>, vector<128x32xf32> -> vector<128x32xf32>
    %109 = arith.addf %102, %108 : vector<128x32xf32>
    %110 = arith.truncf %109 : vector<128x32xf32> to vector<128x32xbf16>
    %111 = vector.shape_cast %110 : vector<128x32xbf16> to vector<1x8x16x32xbf16>
    %c0_87 = arith.constant 0 : index
    %c0_88 = arith.constant 0 : index
    %c0_89 = arith.constant 0 : index
    %c0_90 = arith.constant 0 : index
    %112 = vector.load %arg7[%c0_87, %c0_88, %c0_89, %c0_90] : memref<1x8x16x32xbf16, #tpu.memory_space<vmem>>, vector<1x8x16x32xbf16>
    tpu.vector_store %arg7[%c0_87, %c0_88, %c0_89, %c0_90], %111 {strides = array<i32>} : memref<1x8x16x32xbf16, #tpu.memory_space<vmem>>, vector<1x8x16x32xbf16>,
    %113 = arith.extf %110 : vector<128x32xbf16> to vector<128x32xf32>
    %cst_91 = arith.constant dense<0.000000e+00> : vector<32xf32>
    %114 = vector.multi_reduction <add>, %113, %cst_91 [0] : vector<128x32xf32> to vector<32xf32>
    %115 = vector.shape_cast %114 : vector<32xf32> to vector<1x32xf32>
    %116 = arith.mulf %113, %113 : vector<128x32xf32>
    %cst_92 = arith.constant dense<0.000000e+00> : vector<32xf32>
    %117 = vector.multi_reduction <add>, %116, %cst_92 [0] : vector<128x32xf32> to vector<32xf32>
    %118 = vector.shape_cast %117 : vector<32xf32> to vector<1x32xf32>
    %119 = tpu.concatenate %115, %118 in 0 : vector<1x32xf32>, vector<1x32xf32> -> vector<2x32xf32>
    %120 = vector.shape_cast %119 : vector<2x32xf32> to vector<1x1x2x32xf32>
    %c0_93 = arith.constant 0 : index
    %c0_94 = arith.constant 0 : index
    %c0_95 = arith.constant 0 : index
    %c0_96 = arith.constant 0 : index
    %121 = vector.load %arg8[%c0_93, %c0_94, %c0_95, %c0_96] : memref<1x1x2x32xf32, #tpu.memory_space<vmem>>, vector<1x1x2x32xf32>
    tpu.vector_store %arg8[%c0_93, %c0_94, %c0_95, %c0_96], %120 {strides = array<i32>} : memref<1x1x2x32xf32, #tpu.memory_space<vmem>>, vector<1x1x2x32xf32>,
    return
  }
  func.func @transform_0(%arg0: i32, %arg1: i32) -> (i32, i32, i32, i32) {
    %c0_i32 = arith.constant 0 : i32
    %c0_i32_0 = arith.constant 0 : i32
    %c0_i32_1 = arith.constant 0 : i32
    return %arg0, %arg1, %c0_i32, %c0_i32_0 : i32, i32, i32, i32
  }
  func.func @transform_1(%arg0: i32, %arg1: i32) -> (i32, i32, i32, i32) {
    %c8_i32 = arith.constant 8 : i32
    %0 = arith.muli %arg1, %c8_i32 : i32
    %c1_i32 = arith.constant 1 : i32
    %1 = arith.subi %0, %c1_i32 : i32
    %c0_i32 = arith.constant 0 : i32
    %2 = arith.maxsi %1, %c0_i32 : i32
    %c0_i32_0 = arith.constant 0 : i32
    %c0_i32_1 = arith.constant 0 : i32
    %c0_i32_2 = arith.constant 0 : i32
    return %arg0, %2, %c0_i32_0, %c0_i32_1 : i32, i32, i32, i32
  }
  func.func @transform_2(%arg0: i32, %arg1: i32) -> (i32, i32, i32, i32) {
    %c8_i32 = arith.constant 8 : i32
    %0 = arith.muli %arg1, %c8_i32 : i32
    %c8_i32_0 = arith.constant 8 : i32
    %1 = arith.addi %0, %c8_i32_0 : i32
    %c15_i32 = arith.constant 15 : i32
    %2 = arith.minsi %1, %c15_i32 : i32
    %c0_i32 = arith.constant 0 : i32
    %c0_i32_1 = arith.constant 0 : i32
    %c0_i32_2 = arith.constant 0 : i32
    return %arg0, %2, %c0_i32, %c0_i32_1 : i32, i32, i32, i32
  }
  func.func @transform_3(%arg0: i32, %arg1: i32) -> (i32, i32) {
    %c0_i32 = arith.constant 0 : i32
    %c0_i32_0 = arith.constant 0 : i32
    %c0_i32_1 = arith.constant 0 : i32
    return %c0_i32, %c0_i32_0 : i32, i32
  }
  func.func @transform_4(%arg0: i32, %arg1: i32) -> (i32, i32, i32) {
    %c0_i32 = arith.constant 0 : i32
    %c0_i32_0 = arith.constant 0 : i32
    %c0_i32_1 = arith.constant 0 : i32
    %c0_i32_2 = arith.constant 0 : i32
    return %c0_i32, %c0_i32_0, %c0_i32_1 : i32, i32, i32
  }
  func.func @transform_5(%arg0: i32, %arg1: i32) -> (i32, i32, i32, i32) {
    %c0_i32 = arith.constant 0 : i32
    %c0_i32_0 = arith.constant 0 : i32
    %c0_i32_1 = arith.constant 0 : i32
    return %arg0, %arg1, %c0_i32, %c0_i32_0 : i32, i32, i32, i32
  }
  func.func @transform_6(%arg0: i32, %arg1: i32) -> (i32, i32, i32, i32) {
    %c0_i32 = arith.constant 0 : i32
    %c0_i32_0 = arith.constant 0 : i32
    %c0_i32_1 = arith.constant 0 : i32
    return %arg0, %arg1, %c0_i32, %c0_i32_0 : i32, i32, i32, i32
  }
}

module attributes {stable_mosaic.version = 11 : i64} {
  func.func @bn_bypass_relu_kernel(%arg0: i32, %arg1: memref<256x32xbf16, #tpu.memory_space<vmem>>, %arg2: memref<256x4xbf16, #tpu.memory_space<vmem>>, %arg3: memref<4x8xbf16, #tpu.memory_space<vmem>>, %arg4: memref<2x32xf32, #tpu.memory_space<vmem>>, %arg5: memref<256x32xf32, #tpu.memory_space<vmem>>) attributes {dimension_semantics = [#tpu.dimension_semantics<parallel>], iteration_bounds = array<i64: 2>, scalar_prefetch = 0 : i64, scratch_operands = 0 : i64, tpu.core_type = #tpu.core_type<tc>, window_params = [{transform_indices = @transform_0, window_bounds = array<i64: 256, 32>}, {transform_indices = @transform_1, window_bounds = array<i64: 256, 4>}, {pipeline_mode = #tpu.pipeline_mode<synchronous>, transform_indices = @transform_2, window_bounds = array<i64: 4, 8>}, {pipeline_mode = #tpu.pipeline_mode<synchronous>, transform_indices = @transform_3, window_bounds = array<i64: 2, 32>}, {transform_indices = @transform_4, window_bounds = array<i64: 256, 32>}]} {
    %c0 = arith.constant 0 : index
    %c0_0 = arith.constant 0 : index
    %0 = vector.load %arg4[%c0, %c0_0] : memref<2x32xf32, #tpu.memory_space<vmem>>, vector<1x32xf32>
    %c1 = arith.constant 1 : index
    %c0_1 = arith.constant 0 : index
    %1 = vector.load %arg4[%c1, %c0_1] : memref<2x32xf32, #tpu.memory_space<vmem>>, vector<1x32xf32>
    %c0_2 = arith.constant 0 : index
    %c0_3 = arith.constant 0 : index
    %2 = vector.load %arg1[%c0_2, %c0_3] : memref<256x32xbf16, #tpu.memory_space<vmem>>, vector<256x32xbf16>
    %3 = arith.extf %2 : vector<256x32xbf16> to vector<256x32xf32>
    %4 = vector.broadcast %0 : vector<1x32xf32> to vector<256x32xf32>
    %5 = arith.mulf %3, %4 : vector<256x32xf32>
    %6 = vector.broadcast %1 : vector<1x32xf32> to vector<256x32xf32>
    %7 = arith.addf %5, %6 : vector<256x32xf32>
    %c0_4 = arith.constant 0 : index
    %c0_5 = arith.constant 0 : index
    %8 = vector.load %arg2[%c0_4, %c0_5] : memref<256x4xbf16, #tpu.memory_space<vmem>>, vector<256x4xbf16>
    %c0_6 = arith.constant 0 : index
    %c0_7 = arith.constant 0 : index
    %9 = vector.load %arg3[%c0_6, %c0_7] : memref<4x8xbf16, #tpu.memory_space<vmem>>, vector<4x8xbf16>
    %cst = arith.constant dense<0.000000e+00> : vector<256x8xf32>
    %10 = tpu.matmul %8, %9, %cst {dimension_numbers = #tpu.dot_dimension_numbers<[1], [0], [0], [1], [0, 0, 1, 1], [], []>} : vector<256x4xbf16>, vector<4x8xbf16>, vector<256x8xf32> -> vector<256x8xf32>
    %11 = tpu.concatenate %10, %10, %10, %10 in 1 : vector<256x8xf32>, vector<256x8xf32>, vector<256x8xf32>, vector<256x8xf32> -> vector<256x32xf32>
    %12 = arith.addf %7, %11 : vector<256x32xf32>
    %cst_8 = arith.constant 0.000000e+00 : f32
    %13 = vector.broadcast %cst_8 : f32 to vector<256x32xf32>
    %14 = arith.maximumf %12, %13 : vector<256x32xf32>
    %c0_9 = arith.constant 0 : index
    %c0_10 = arith.constant 0 : index
    %15 = vector.load %arg5[%c0_9, %c0_10] : memref<256x32xf32, #tpu.memory_space<vmem>>, vector<256x32xf32>
    tpu.vector_store %arg5[%c0_9, %c0_10], %14 {strides = array<i32>} : memref<256x32xf32, #tpu.memory_space<vmem>>, vector<256x32xf32>,
    return
  }
  func.func @transform_0(%arg0: i32) -> (i32, i32) {
    %c0_i32 = arith.constant 0 : i32
    %c0_i32_0 = arith.constant 0 : i32
    return %arg0, %c0_i32 : i32, i32
  }
  func.func @transform_1(%arg0: i32) -> (i32, i32) {
    %c0_i32 = arith.constant 0 : i32
    %c0_i32_0 = arith.constant 0 : i32
    return %arg0, %c0_i32 : i32, i32
  }
  func.func @transform_2(%arg0: i32) -> (i32, i32) {
    %c0_i32 = arith.constant 0 : i32
    %c0_i32_0 = arith.constant 0 : i32
    %c0_i32_1 = arith.constant 0 : i32
    return %c0_i32, %c0_i32_0 : i32, i32
  }
  func.func @transform_3(%arg0: i32) -> (i32, i32) {
    %c0_i32 = arith.constant 0 : i32
    %c0_i32_0 = arith.constant 0 : i32
    %c0_i32_1 = arith.constant 0 : i32
    return %c0_i32, %c0_i32_0 : i32, i32
  }
  func.func @transform_4(%arg0: i32) -> (i32, i32) {
    %c0_i32 = arith.constant 0 : i32
    %c0_i32_0 = arith.constant 0 : i32
    return %arg0, %c0_i32 : i32, i32
  }
}

</mosaic_0001>

<llo_original>
// kernel: squeeze.72
$region0: #{squeeze.72}
  %s0 = inlined_call_operand.vmem [shape: f32[32], index: 0, kind: input, shape index: {}]
  %s1 = inlined_call_operand.vmem [shape: f32[4,8], index: 1, kind: output, shape index: {}]
  $region1: #{squeeze.72} parent=0
    #allocation0 [shape = 'u8[4096]{0}', space=vmem, size = 0x1000, scoped, tag = 'scoped mem for output reshape']
    #allocation1 [shape = 'u8[4096]{0}', space=vmem, size = 0x1000, scoped, tag = 'scoped mem for input reshape']
    %s3 = sshll.u32 1, 1
    %s4 = ssub.s32 %s3, 1
    %v5 = vld [vmem:[%s0] sm:%s4]
    %6 = vst [vmem:[#allocation1] sm:%s4] %v5
    %v7 = vld [vmem:[#allocation1] sm:$0x1]
    %vm8 = vcmask 64512
    %9 = vst.msk [vmem:[#allocation0] sm:$0x1] %vm8, %v7
    %v10 = vld [vmem:[#allocation1] sm:$0x1]
    %11 = vrot.lane.b32.xlu0 %v10, 120
    %v12 = vpop.permute.xlu0 %11
    %vm13 = vcmask 64512
    %s14 = scalar_lea.vmem [#allocation0], 1
    %15 = vst.msk [vmem:[%s14] sm:$0x1] %vm13, %v12
    %v16 = vld [vmem:[#allocation1] sm:$0x1]
    %17 = vrot.lane.b32.xlu0 %v16, 112
    %v18 = vpop.permute.xlu0 %17
    %vm19 = vcmask 64512
    %s20 = scalar_lea.vmem [#allocation0], 2
    %21 = vst.msk [vmem:[%s20] sm:$0x1] %vm19, %v18
    %v22 = vld [vmem:[#allocation1] sm:$0x1]
    %23 = vrot.lane.b32.xlu0 %v22, 104
    %v24 = vpop.permute.xlu0 %23
    %vm25 = vcmask 64512
    %s26 = scalar_lea.vmem [#allocation0], 3
    %27 = vst.msk [vmem:[%s26] sm:$0x1] %vm25, %v24
    %s29 = sshll.u32 1, 4
    %s30 = ssub.s32 %s29, 1
    %v32 = vld [vmem:[#allocation0] sm:%s30]
    %s33 = sshll.u32 1, 4
    %s34 = ssub.s32 %s33, 1
    %35 = vst [vmem:[%s1] sm:%s34] %v32

// kernel: tile.27
$region0: #{tile.27}
  #allocation0 [shape = 's32[1]{0}', space=sflag, size = 0x4, scoped, tag = 'scoped memory for tile.27']
  %s0 = inlined_call_operand.vmem [shape: f32[8], index: 0, kind: input, shape index: {}]
  %s1 = inlined_call_operand.vmem [shape: f32[4,8], index: 1, kind: output, shape index: {}]
  // Predicated region
  $region2: #{tile.27} parent=0 // pred_check
    _
  $region3: #{tile.27} parent=0 // pred_check_branch
    %3 = sbr.rel (0) target = $region5
  $region4: #{tile.27} parent=0 // pred_region
    _
  $region5: #{tile.27} parent=0 // pred_fallthru
    _
  %v4 = vld [vmem:[%s0] ss:$0 sm:$0xff]
  %5 = vst [vmem:[%s1] sm:$0xf] %v4

// kernel: tile.29
$region0: #{tile.29}
  %s0 = inlined_call_operand.vmem [shape: f32[4,8], index: 0, kind: input, shape index: {}]
  %s1 = inlined_call_operand.vmem [shape: f32[1,32], index: 1, kind: output, shape index: {}]
  $region1: #{tile.29} parent=0
    #allocation0 [shape = 'u8[4096]{0}', space=vmem, size = 0x1000, scoped, tag = 'scoped mem for output reshape']
    #allocation1 [shape = 'u8[4096]{0}', space=vmem, size = 0x1000, scoped, tag = 'scoped mem for input reshape']
    %s3 = sshll.u32 1, 4
    %s4 = ssub.s32 %s3, 1
    %v5 = vld [vmem:[%s0] sm:%s4]
    %6 = vst [vmem:[#allocation1] sm:%s4] %v5
    %v7 = vld [vmem:[#allocation1] sm:$0x1]
    %vm8 = vcmask 64512
    %9 = vst.msk [vmem:[#allocation0] sm:$0x1] %vm8, %v7
    %s10 = scalar_lea.vmem [#allocation1], 3
    %v11 = vld [vmem:[%s10] sm:$0x1]
    %12 = vrot.lane.b32.xlu0 %v11, 24
    %v13 = vpop.permute.xlu0 %12
    %vm14 = vcmask 261312
    %15 = vst.msk [vmem:[#allocation0] sm:$0x1] %vm14, %v13
    %s16 = scalar_lea.vmem [#allocation1], 2
    %v17 = vld [vmem:[%s16] sm:$0x1]
    %18 = vrot.lane.b32.xlu0 %v17, 16
    %v19 = vpop.permute.xlu0 %18
    %vm20 = vcmask 195712
    %21 = vst.msk [vmem:[#allocation0] sm:$0x1] %vm20, %v19
    %s22 = scalar_lea.vmem [#allocation1], 1
    %v23 = vld [vmem:[%s22] sm:$0x1]
    %24 = vrot.lane.b32.xlu0 %v23, 8
    %v25 = vpop.permute.xlu0 %24
    %vm26 = vcmask 130112
    %27 = vst.msk [vmem:[#allocation0] sm:$0x1] %vm26, %v25
    %s29 = sshll.u32 1, 1
    %s30 = ssub.s32 %s29, 1
    %v32 = vld [vmem:[#allocation0] sm:%s30]
    %s33 = sshll.u32 1, 1
    %s34 = ssub.s32 %s33, 1
    %35 = vst [vmem:[%s1] sm:%s34] %v32

// kernel: up_layer_residual_forward.3
$region0: #{up_layer_residual_forward.3}
  #allocation0 [shape = 'u32[]', space=smem, size = 0x4, offset = 0x4, fixed_abs, tag = 'smem constant byte address 0x4 - core index']
  #allocation1 [shape = 'u32[144,128]{1,0:T(1,128)}', space=vmem, size = 0x12000, scoped, tag = 'internal scratch']
  %s0 = inlined_call_operand.vmem [shape: bf16[512,36], index: 0, kind: input, shape index: {}]
  %s1 = inlined_call_operand.vmem [shape: bf16[36,32], index: 1, kind: input, shape index: {}]
  %s2 = inlined_call_operand.vmem [shape: bf16[512,32], index: 2, kind: output, shape index: {0}]
  %s3 = inlined_call_operand.vmem [shape: f32[2,2,32], index: 3, kind: output, shape index: {1}]
  %4 = xla_tuple %s2, %s3
  %s5 = sld [smem:[#allocation0]]
  $region49: #{up_layer_residual_forward.3} parent=0
    _
  %s7 = ssub.s32 1, %s5
  %s8 = scalar_select 0, %s7, %s5
  loop: start=0, step=1, limit=4
  $region2: #{up_layer_residual_forward.3} parent=0 // loop_pre_header
    _
  $region3: #{up_layer_residual_forward.3} parent=0 // loop_header
    %s10 = sphi 0, %s14
    %p11 = scmp.ge.s32.totalorder %s10, 4
    %s20 = sphi 0, %s22
    %s23 = sphi 0, %s20
    %s24 = sphi 0, %s23
    %s40 = sphi 0, %s24
    %s44 = sphi 0, %s44
    %s46 = sphi 0, %s44
    %s47 = sphi 0, %s46
    %s61 = sphi 0, %s47
    %s67 = sphi 0, %s69
    %s70 = sphi 0, %s67
    %s71 = sphi 0, %s70
    %s87 = sphi 0, %s71
    %s93 = sphi 0, %s95
    %s96 = sphi 0, %s93
    %s97 = sphi 0, %s96
    %s113 = sphi 0, %s97
  $region4: #{up_layer_residual_forward.3} parent=0 // loop_header_branch
    %13 = sbr.rel (%p11) target = $region8
  $region5: #{up_layer_residual_forward.3} parent=0 // loop_body
    %s15 = ssub.s32 %s10, 1
    %s16 = ssub.s32 %s10, 2
    %s17 = sadd.s32 %s10, 1
    %s18 = ssub.s32 %s10, %s17
    %p19 = scmp.eq.s32.totalorder %s18, 0
    %s21 = sadd.s32 %s20, 1
    %s22 = scalar_select %p19, %s20, %s21
    %p25 = pneg %p19
    %p26 = scmp.eq.s32.totalorder %s10, 1
    %p27 = por %p25, %p26
    %p28 = scmp.ne.s32.totalorder %s20, %s23
    %p29 = scmp.eq.s32.totalorder %s10, 0
    %p30 = por %p28, %p29
    %p31 = scmp.ne.s32.totalorder %s20, %s23
    %p32 = scmp.eq.s32.totalorder %s15, 1
    %p33 = por %p31, %p32
    %p34 = scmp.ne.s32.totalorder %s23, %s24
    %p35 = scmp.eq.s32.totalorder %s15, 0
    %p36 = por %p34, %p35
    %p37 = scmp.ne.s32.totalorder %s23, %s24
    %p38 = scmp.eq.s32.totalorder %s16, 1
    %p39 = por %p37, %p38
    %p41 = scmp.ne.s32.totalorder %s24, %s40
    %p42 = scmp.eq.s32.totalorder %s16, 0
    %p43 = por %p41, %p42
    %s45 = sadd.s32 %s44, 1
    %p48 = scmp.eq.s32.totalorder %s10, 1
    %p49 = scmp.ne.s32.totalorder %s44, %s46
    %p50 = scmp.eq.s32.totalorder %s10, 0
    %p51 = por %p49, %p50
    %p52 = scmp.ne.s32.totalorder %s44, %s46
    %p53 = scmp.eq.s32.totalorder %s15, 1
    %p54 = por %p52, %p53
    %p55 = scmp.ne.s32.totalorder %s46, %s47
    %p56 = scmp.eq.s32.totalorder %s15, 0
    %p57 = por %p55, %p56
    %p58 = scmp.ne.s32.totalorder %s46, %s47
    %p59 = scmp.eq.s32.totalorder %s16, 1
    %p60 = por %p58, %p59
    %p62 = scmp.ne.s32.totalorder %s47, %s61
    %p63 = scmp.eq.s32.totalorder %s16, 0
    %p64 = por %p62, %p63
    %s65 = ssub.s32 %s10, %s17
    %p66 = scmp.eq.s32.totalorder %s65, 0
    %s68 = sadd.s32 %s67, 1
    %s69 = scalar_select %p66, %s67, %s68
    %p72 = pneg %p66
    %p73 = scmp.eq.s32.totalorder %s10, 1
    %p74 = por %p72, %p73
    %p75 = scmp.ne.s32.totalorder %s67, %s70
    %p76 = scmp.eq.s32.totalorder %s10, 0
    %p77 = por %p75, %p76
    %p78 = scmp.ne.s32.totalorder %s67, %s70
    %p79 = scmp.eq.s32.totalorder %s15, 1
    %p80 = por %p78, %p79
    %p81 = scmp.ne.s32.totalorder %s70, %s71
    %p82 = scmp.eq.s32.totalorder %s15, 0
    %p83 = por %p81, %p82
    %p84 = scmp.ne.s32.totalorder %s70, %s71
    %p85 = scmp.eq.s32.totalorder %s16, 1
    %p86 = por %p84, %p85
    %p88 = scmp.ne.s32.totalorder %s71, %s87
    %p89 = scmp.eq.s32.totalorder %s16, 0
    %p90 = por %p88, %p89
    %s91 = ssub.s32 %s10, %s17
    %p92 = scmp.eq.s32.totalorder %s91, 0
    %s94 = sadd.s32 %s93, 1
    %s95 = scalar_select %p92, %s93, %s94
    %p98 = pneg %p92
    %p99 = scmp.eq.s32.totalorder %s10, 1
    %p100 = por %p98, %p99
    %p101 = scmp.ne.s32.totalorder %s93, %s96
    %p102 = scmp.eq.s32.totalorder %s10, 0
    %p103 = por %p101, %p102
    %p104 = scmp.ne.s32.totalorder %s93, %s96
    %p105 = scmp.eq.s32.totalorder %s15, 1
    %p106 = por %p104, %p105
    %p107 = scmp.ne.s32.totalorder %s96, %s97
    %p108 = scmp.eq.s32.totalorder %s15, 0
    %p109 = por %p107, %p108
    %p110 = scmp.ne.s32.totalorder %s96, %s97
    %p111 = scmp.eq.s32.totalorder %s16, 1
    %p112 = por %p110, %p111
    %p114 = scmp.ne.s32.totalorder %s97, %s113
    %p115 = scmp.eq.s32.totalorder %s16, 0
    %p116 = por %p114, %p115
    %p117 = scmp.le.s32.totalorder 1, %s10
    %p118 = scmp.lt.s32.totalorder %s10, 3
    %p119 = pnand %p117, %p118
    %p120 = pneg %p119
    // Predicated region
    $region9: #{up_layer_residual_forward.3} parent=5 // pred_check
      _
    $region10: #{up_layer_residual_forward.3} parent=5 // pred_check_branch
      %122 = sbr.rel (%p119) target = $region12
    $region11: #{up_layer_residual_forward.3} parent=5 // pred_region
      %s123 = ssub.s32 %s10, 1
      // Predicated region
      $region13: #{up_layer_residual_forward.3} parent=11 // pred_check
        %p124 = pneg %p57
      $region14: #{up_layer_residual_forward.3} parent=11 // pred_check_branch
        %126 = sbr.rel (%p124) target = $region16
      $region15: #{up_layer_residual_forward.3} parent=11 // pred_region
        _
      $region16: #{up_layer_residual_forward.3} parent=11 // pred_fallthru
        _
    $region12: #{up_layer_residual_forward.3} parent=5 // pred_fallthru
      _
    %p127 = scmp.lt.s32.totalorder %s10, 2
    // Predicated region
    $region17: #{up_layer_residual_forward.3} parent=5 // pred_check
      %p128 = pneg %p127
    $region18: #{up_layer_residual_forward.3} parent=5 // pred_check_branch
      %130 = sbr.rel (%p128) target = $region20
    $region19: #{up_layer_residual_forward.3} parent=5 // pred_region
      // Predicated region
      $region21: #{up_layer_residual_forward.3} parent=19 // pred_check
        %p131 = pneg %p30
      $region22: #{up_layer_residual_forward.3} parent=19 // pred_check_branch
        %133 = sbr.rel (%p131) target = $region24
      $region23: #{up_layer_residual_forward.3} parent=19 // pred_region
        %s134 = smul.u32 32, %s10
        %p135 = scmp.lt.s32.totalorder %s134, 63
        %s136 = scalar_select %p135, %s134, 63
        %s137 = smul.addr %s136, 4
        %s138 = scalar_lea.vmem %s0, %s137
        %s139 = smul.u32 32, %s10
      $region24: #{up_layer_residual_forward.3} parent=19 // pred_fallthru
        _
    $region20: #{up_layer_residual_forward.3} parent=5 // pred_fallthru
      _
    %p140 = scmp.le.s32.totalorder 1, %s10
    %p141 = scmp.lt.s32.totalorder %s10, 3
    %p142 = pnand %p140, %p141
    %p143 = pneg %p142
    // Predicated region
    $region25: #{up_layer_residual_forward.3} parent=5 // pred_check
      _
    $region26: #{up_layer_residual_forward.3} parent=5 // pred_check_branch
      %145 = sbr.rel (%p142) target = $region28
    $region27: #{up_layer_residual_forward.3} parent=5 // pred_region
      %s146 = ssub.s32 %s10, 1
      %s147 = smul.u32 32, %s15
      %p148 = scmp.lt.s32.totalorder %s147, 63
      %s149 = scalar_select %p148, %s147, 63
      %s150 = smul.addr %s149, 4
      %s151 = scalar_lea.vmem %s0, %s150
      %p152 = pneg %p36
      %p153 = pneg %p33
      %p154 = pneg %p57
      %p155 = pneg %p54
      %p156 = pneg %p83
      %p157 = pneg %p80
      %s158 = smul.u32 32, %s15
      %p159 = scmp.lt.s32.totalorder %s158, 63
      %s160 = scalar_select %p159, %s158, 63
      %s161 = smul.addr %s160, 4
      %s162 = scalar_lea.vmem %s2, %s161
      %p163 = pneg %p109
      %p164 = pneg %p106
      %p165 = scmp.lt.s32.totalorder %s15, 1
      %s166 = scalar_select %p165, %s15, 1
      %s167 = smul.addr %s166, 2
      %s168 = scalar_lea.vmem %s3, %s167
      %s169 = smul.u32 32, %s15
      %p170 = scmp.lt.s32.totalorder %s169, 63
      %s171 = scalar_select %p170, %s169, 63
      %s172 = smul.addr %s171, 4
      %s173 = scalar_lea.vmem %s0, %s172
      %s174 = smul.u32 32, %s15
      %s175 = smul.u32 32, %s15
      %p176 = scmp.lt.s32.totalorder %s175, 63
      %s177 = scalar_select %p176, %s175, 63
      %s178 = smul.addr %s177, 4
      %s179 = scalar_lea.vmem %s2, %s178
      %s180 = smul.u32 32, %s15
      %p181 = scmp.lt.s32.totalorder %s15, 1
      %s182 = scalar_select %p181, %s15, 1
      %s183 = smul.addr %s182, 2
      %s184 = scalar_lea.vmem %s3, %s183
      %v186 = vld [vmem:[%s173] sm:$0xf]
      %v187 = vld [vmem:[%s173 + $0x4] sm:$0xf]
      %v188 = vld [vmem:[%s173 + $0x8] sm:$0xf]
      %v189 = vld [vmem:[%s173 + $0xc] sm:$0xf]
      %v190 = vld [vmem:[%s173 + $0x10] sm:$0xf]
      %v191 = vld [vmem:[%s173 + $0x14] sm:$0xf]
      %v192 = vld [vmem:[%s173 + $0x18] sm:$0xf]
      %v193 = vld [vmem:[%s173 + $0x1c] sm:$0xf]
      %v194 = vld [vmem:[%s173 + $0x20] sm:$0xf]
      %v195 = vld [vmem:[%s173 + $0x24] sm:$0xf]
      %v196 = vld [vmem:[%s173 + $0x28] sm:$0xf]
      %v197 = vld [vmem:[%s173 + $0x2c] sm:$0xf]
      %v198 = vld [vmem:[%s173 + $0x30] sm:$0xf]
      %v199 = vld [vmem:[%s173 + $0x34] sm:$0xf]
      %v200 = vld [vmem:[%s173 + $0x38] sm:$0xf]
      %v201 = vld [vmem:[%s173 + $0x3c] sm:$0xf]
      %v202 = vld [vmem:[%s173 + $0x40] sm:$0xf]
      %v203 = vld [vmem:[%s173 + $0x44] sm:$0xf]
      %v204 = vld [vmem:[%s173 + $0x48] sm:$0xf]
      %v205 = vld [vmem:[%s173 + $0x4c] sm:$0xf]
      %v206 = vld [vmem:[%s173 + $0x50] sm:$0xf]
      %v207 = vld [vmem:[%s173 + $0x54] sm:$0xf]
      %v208 = vld [vmem:[%s173 + $0x58] sm:$0xf]
      %v209 = vld [vmem:[%s173 + $0x5c] sm:$0xf]
      %v210 = vld [vmem:[%s173 + $0x60] sm:$0xf]
      %v211 = vld [vmem:[%s173 + $0x64] sm:$0xf]
      %v212 = vld [vmem:[%s173 + $0x68] sm:$0xf]
      %v213 = vld [vmem:[%s173 + $0x6c] sm:$0xf]
      %v214 = vld [vmem:[%s173 + $0x70] sm:$0xf]
      %v215 = vld [vmem:[%s173 + $0x74] sm:$0xf]
      %v216 = vld [vmem:[%s173 + $0x78] sm:$0xf]
      %v217 = vld [vmem:[%s173 + $0x7c] sm:$0xf]
      %v218 = vld [vmem:[%s1] sm:$0xf]
      %v219 = vld [vmem:[%s1 + $0x4] sm:$0xf]
      %v220 = vld [vmem:[%s1 + $0x8] sm:$0xf]
      %v221 = vld [vmem:[%s1 + $0xc] sm:$0xf]
      %v222 = vld [vmem:[%s1 + $0x10] sm:$0x3]
      %v255 = vunpack.c.l.b16 %v186
      %v256 = vunpack.c.l.b16 %v187
      %v257 = vunpack.c.l.b16 %v188
      %v258 = vunpack.c.l.b16 %v189
      %v259 = vunpack.c.l.b16 %v190
      %v260 = vunpack.c.l.b16 %v191
      %v261 = vunpack.c.l.b16 %v192
      %v262 = vunpack.c.l.b16 %v193
      %v263 = vunpack.c.l.b16 %v194
      %v264 = vunpack.c.l.b16 %v195
      %v265 = vunpack.c.l.b16 %v196
      %v266 = vunpack.c.l.b16 %v197
      %v267 = vunpack.c.l.b16 %v198
      %v268 = vunpack.c.l.b16 %v199
      %v269 = vunpack.c.l.b16 %v200
      %v270 = vunpack.c.l.b16 %v201
      %v271 = vunpack.c.l.b16 %v202
      %v272 = vunpack.c.l.b16 %v203
      %v273 = vunpack.c.l.b16 %v204
      %v274 = vunpack.c.l.b16 %v205
      %v275 = vunpack.c.l.b16 %v206
      %v276 = vunpack.c.l.b16 %v207
      %v277 = vunpack.c.l.b16 %v208
      %v278 = vunpack.c.l.b16 %v209
      %v279 = vunpack.c.l.b16 %v210
      %v280 = vunpack.c.l.b16 %v211
      %v281 = vunpack.c.l.b16 %v212
      %v282 = vunpack.c.l.b16 %v213
      %v283 = vunpack.c.l.b16 %v214
      %v284 = vunpack.c.l.b16 %v215
      %v285 = vunpack.c.l.b16 %v216
      %v286 = vunpack.c.l.b16 %v217
      %v287 = vpack.c.b16 %v256, %v255
      %v288 = vpack.c.b16 %v258, %v257
      %v289 = vpack.c.b16 %v260, %v259
      %v290 = vpack.c.b16 %v262, %v261
      %v291 = vpack.c.b16 %v264, %v263
      %v292 = vpack.c.b16 %v266, %v265
      %v293 = vpack.c.b16 %v268, %v267
      %v294 = vpack.c.b16 %v270, %v269
      %v295 = vpack.c.b16 %v272, %v271
      %v296 = vpack.c.b16 %v274, %v273
      %v297 = vpack.c.b16 %v276, %v275
      %v298 = vpack.c.b16 %v278, %v277
      %v299 = vpack.c.b16 %v280, %v279
      %v300 = vpack.c.b16 %v282, %v281
      %v301 = vpack.c.b16 %v284, %v283
      %v302 = vpack.c.b16 %v286, %v285
      %v308 = vunpack.c.l.b16 %v218
      %v309 = vunpack.c.l.b16 %v219
      %v310 = vunpack.c.l.b16 %v220
      %v311 = vunpack.c.l.b16 %v221
      %v312 = vunpack.c.l.b16 %v222
      %v313 = vpack.c.b16 %v309, %v308
      %v314 = vpack.c.b16 %v311, %v310
      %v315 = vpack.c.b16 %v312, %v312
      %vm318 = vcmask 293888
      %v320 = vsel %vm318, %v287, 0
      %v323 = vsel %vm318, %v288, 0
      %v326 = vsel %vm318, %v289, 0
      %v329 = vsel %vm318, %v290, 0
      %v332 = vsel %vm318, %v291, 0
      %v335 = vsel %vm318, %v292, 0
      %v338 = vsel %vm318, %v293, 0
      %v341 = vsel %vm318, %v294, 0
      %v344 = vsel %vm318, %v295, 0
      %v347 = vsel %vm318, %v296, 0
      %v350 = vsel %vm318, %v297, 0
      %v353 = vsel %vm318, %v298, 0
      %v356 = vsel %vm318, %v299, 0
      %v359 = vsel %vm318, %v300, 0
      %v362 = vsel %vm318, %v301, 0
      %v365 = vsel %vm318, %v302, 0
      %vm367 = vcmask 1041408
      %v369 = vsel %vm367, %v315, 0
      %371 = vmatprep.subr.bf16.mxu0 0
      %372 = vmatpush1.bf16.msra.mxu0 0
      %373 = vmatprep.subr.bf16.mxu0 0
      %374 = vmatpush1.bf16.msra.mxu0 0
      %375 = vmatprep.subr.bf16.mxu0 0
      %376 = vmatpush1.bf16.msra.mxu0 0
      %377 = vmatprep.subr.bf16.mxu0 0
      %378 = vmatpush1.bf16.msra.mxu0 0
      %379 = vmatprep.subr.bf16.mxu0 0
      %380 = vmatpush1.bf16.msra.mxu0 0
      %381 = vmatprep.subr.bf16.mxu0 0
      %382 = vmatpush1.bf16.msra.mxu0 %v369
      %383 = vmatprep.subr.bf16.mxu0 0
      %384 = vmatpush1.bf16.msra.mxu0 %v314
      %385 = vmatprep.subr.bf16.mxu0 0
      %386 = vmatpush1.bf16.msra.mxu0 %v313
      %387 = vmatprep.subr.bf16.mxu0 0
      %388 = vmatpush2.bf16.msra.mxu0 0
      %389 = vmatprep.subr.bf16.mxu0 0
      %390 = vmatpush2.bf16.msra.mxu0 0
      %391 = vmatprep.subr.bf16.mxu0 0
      %392 = vmatpush2.bf16.msra.mxu0 0
      %393 = vmatprep.subr.bf16.mxu0 0
      %394 = vmatpush2.bf16.msra.mxu0 0
      %395 = vmatprep.subr.bf16.mxu0 0
      %396 = vmatpush2.bf16.msra.mxu0 0
      %397 = vmatprep.subr.bf16.mxu0 0
      %398 = vmatpush2.bf16.msra.mxu0 0
      %399 = vmatprep.subr.bf16.mxu0 0
      %400 = vmatpush2.bf16.msra.mxu0 0
      %401 = vmatprep.subr.bf16.mxu0 0
      %402 = vmatpush2.bf16.msra.mxu0 0
      %403 = vmatprep.mubr.bf16.mxu0 0
      %404 = vmatmul.mubr.bf16.gmra.mxu0 %v320
      %v405 = vpop.f32.mrf.mxu0
      %v406 = vadd.f32 0.0, %v405
      %v407 = vpop.f32.mrf.mxu0
      %v408 = vpop.f32.mrf.mxu0
      %v409 = vadd.f32 0.0, %v408
      %v410 = vpop.f32.mrf.mxu0
      %411 = vmatprep.mubr.bf16.mxu0 0
      %412 = vmatmul.mubr.bf16.gmra.mxu0 %v323
      %v413 = vpop.f32.mrf.mxu0
      %v414 = vadd.f32 0.0, %v413
      %v415 = vpop.f32.mrf.mxu0
      %v416 = vpop.f32.mrf.mxu0
      %v417 = vadd.f32 0.0, %v416
      %v418 = vpop.f32.mrf.mxu0
      %419 = vmatprep.mubr.bf16.mxu0 0
      %420 = vmatmul.mubr.bf16.gmra.mxu0 %v326
      %v421 = vpop.f32.mrf.mxu0
      %v422 = vadd.f32 0.0, %v421
      %v423 = vpop.f32.mrf.mxu0
      %v424 = vpop.f32.mrf.mxu0
      %v425 = vadd.f32 0.0, %v424
      %v426 = vpop.f32.mrf.mxu0
      %427 = vmatprep.mubr.bf16.mxu0 0
      %428 = vmatmul.mubr.bf16.gmra.mxu0 %v329
      %v429 = vpop.f32.mrf.mxu0
      %v430 = vadd.f32 0.0, %v429
      %v431 = vpop.f32.mrf.mxu0
      %v432 = vpop.f32.mrf.mxu0
      %v433 = vadd.f32 0.0, %v432
      %v434 = vpop.f32.mrf.mxu0
      %435 = vmatprep.mubr.bf16.mxu0 0
      %436 = vmatmul.mubr.bf16.gmra.mxu0 %v332
      %v437 = vpop.f32.mrf.mxu0
      %v438 = vadd.f32 0.0, %v437
      %v439 = vpop.f32.mrf.mxu0
      %v440 = vpop.f32.mrf.mxu0
      %v441 = vadd.f32 0.0, %v440
      %v442 = vpop.f32.mrf.mxu0
      %443 = vmatprep.mubr.bf16.mxu0 0
      %444 = vmatmul.mubr.bf16.gmra.mxu0 %v335
      %v445 = vpop.f32.mrf.mxu0
      %v446 = vadd.f32 0.0, %v445
      %v447 = vpop.f32.mrf.mxu0
      %v448 = vpop.f32.mrf.mxu0
      %v449 = vadd.f32 0.0, %v448
      %v450 = vpop.f32.mrf.mxu0
      %451 = vmatprep.mubr.bf16.mxu0 0
      %452 = vmatmul.mubr.bf16.gmra.mxu0 %v338
      %v453 = vpop.f32.mrf.mxu0
      %v454 = vadd.f32 0.0, %v453
      %v455 = vpop.f32.mrf.mxu0
      %v456 = vpop.f32.mrf.mxu0
      %v457 = vadd.f32 0.0, %v456
      %v458 = vpop.f32.mrf.mxu0
      %459 = vmatprep.mubr.bf16.mxu0 0
      %460 = vmatmul.mubr.bf16.gmra.mxu0 %v341
      %v461 = vpop.f32.mrf.mxu0
      %v462 = vadd.f32 0.0, %v461
      %v463 = vpop.f32.mrf.mxu0
      %v464 = vpop.f32.mrf.mxu0
      %v465 = vadd.f32 0.0, %v464
      %v466 = vpop.f32.mrf.mxu0
      %467 = vmatprep.mubr.bf16.mxu0 0
      %468 = vmatmul.mubr.bf16.gmra.mxu0 %v344
      %v469 = vpop.f32.mrf.mxu0
      %v470 = vadd.f32 0.0, %v469
      %v471 = vpop.f32.mrf.mxu0
      %v472 = vpop.f32.mrf.mxu0
      %v473 = vadd.f32 0.0, %v472
      %v474 = vpop.f32.mrf.mxu0
      %475 = vmatprep.mubr.bf16.mxu0 0
      %476 = vmatmul.mubr.bf16.gmra.mxu0 %v347
      %v477 = vpop.f32.mrf.mxu0
      %v478 = vadd.f32 0.0, %v477
      %v479 = vpop.f32.mrf.mxu0
      %v480 = vpop.f32.mrf.mxu0
      %v481 = vadd.f32 0.0, %v480
      %v482 = vpop.f32.mrf.mxu0
      %483 = vmatprep.mubr.bf16.mxu0 0
      %484 = vmatmul.mubr.bf16.gmra.mxu0 %v350
      %v485 = vpop.f32.mrf.mxu0
      %v486 = vadd.f32 0.0, %v485
      %v487 = vpop.f32.mrf.mxu0
      %v488 = vpop.f32.mrf.mxu0
      %v489 = vadd.f32 0.0, %v488
      %v490 = vpop.f32.mrf.mxu0
      %491 = vmatprep.mubr.bf16.mxu0 0
      %492 = vmatmul.mubr.bf16.gmra.mxu0 %v353
      %v493 = vpop.f32.mrf.mxu0
      %v494 = vadd.f32 0.0, %v493
      %v495 = vpop.f32.mrf.mxu0
      %v496 = vpop.f32.mrf.mxu0
      %v497 = vadd.f32 0.0, %v496
      %v498 = vpop.f32.mrf.mxu0
      %499 = vmatprep.mubr.bf16.mxu0 0
      %500 = vmatmul.mubr.bf16.gmra.mxu0 %v356
      %v501 = vpop.f32.mrf.mxu0
      %v502 = vadd.f32 0.0, %v501
      %v503 = vpop.f32.mrf.mxu0
      %v504 = vpop.f32.mrf.mxu0
      %v505 = vadd.f32 0.0, %v504
      %v506 = vpop.f32.mrf.mxu0
      %507 = vmatprep.mubr.bf16.mxu0 0
      %508 = vmatmul.mubr.bf16.gmra.mxu0 %v359
      %v509 = vpop.f32.mrf.mxu0
      %v510 = vadd.f32 0.0, %v509
      %v511 = vpop.f32.mrf.mxu0
      %v512 = vpop.f32.mrf.mxu0
      %v513 = vadd.f32 0.0, %v512
      %v514 = vpop.f32.mrf.mxu0
      %515 = vmatprep.mubr.bf16.mxu0 0
      %516 = vmatmul.mubr.bf16.gmra.mxu0 %v362
      %v517 = vpop.f32.mrf.mxu0
      %v518 = vadd.f32 0.0, %v517
      %v519 = vpop.f32.mrf.mxu0
      %v520 = vpop.f32.mrf.mxu0
      %v521 = vadd.f32 0.0, %v520
      %v522 = vpop.f32.mrf.mxu0
      %523 = vmatprep.mubr.bf16.mxu0 0
      %524 = vmatmul.mubr.bf16.gmra.mxu0 %v365
      %v525 = vpop.f32.mrf.mxu0
      %v526 = vadd.f32 0.0, %v525
      %v527 = vpop.f32.mrf.mxu0
      %v528 = vpop.f32.mrf.mxu0
      %v529 = vadd.f32 0.0, %v528
      %v530 = vpop.f32.mrf.mxu0
      %531 = vdwg.mxu0
      %v532 = vpack.c.bf16 %v409, %v406
      %v533 = vpack.c.bf16 %v417, %v414
      %v534 = vpack.c.bf16 %v425, %v422
      %v535 = vpack.c.bf16 %v433, %v430
      %v536 = vpack.c.bf16 %v441, %v438
      %v537 = vpack.c.bf16 %v449, %v446
      %v538 = vpack.c.bf16 %v457, %v454
      %v539 = vpack.c.bf16 %v465, %v462
      %v540 = vpack.c.bf16 %v473, %v470
      %v541 = vpack.c.bf16 %v481, %v478
      %v542 = vpack.c.bf16 %v489, %v486
      %v543 = vpack.c.bf16 %v497, %v494
      %v544 = vpack.c.bf16 %v505, %v502
      %v545 = vpack.c.bf16 %v513, %v510
      %v546 = vpack.c.bf16 %v521, %v518
      %v547 = vpack.c.bf16 %v529, %v526
      %v564 = vunpack.c.l.b16 %v532
      %v565 = vunpack.c.h.b16 %v532
      %v566 = vunpack.c.l.b16 %v533
      %v567 = vunpack.c.h.b16 %v533
      %v568 = vunpack.c.l.b16 %v534
      %v569 = vunpack.c.h.b16 %v534
      %v570 = vunpack.c.l.b16 %v535
      %v571 = vunpack.c.h.b16 %v535
      %v572 = vunpack.c.l.b16 %v536
      %v573 = vunpack.c.h.b16 %v536
      %v574 = vunpack.c.l.b16 %v537
      %v575 = vunpack.c.h.b16 %v537
      %v576 = vunpack.c.l.b16 %v538
      %v577 = vunpack.c.h.b16 %v538
      %v578 = vunpack.c.l.b16 %v539
      %v579 = vunpack.c.h.b16 %v539
      %v580 = vunpack.c.l.b16 %v540
      %v581 = vunpack.c.h.b16 %v540
      %v582 = vunpack.c.l.b16 %v541
      %v583 = vunpack.c.h.b16 %v541
      %v584 = vunpack.c.l.b16 %v542
      %v585 = vunpack.c.h.b16 %v542
      %v586 = vunpack.c.l.b16 %v543
      %v587 = vunpack.c.h.b16 %v543
      %v588 = vunpack.c.l.b16 %v544
      %v589 = vunpack.c.h.b16 %v544
      %v590 = vunpack.c.l.b16 %v545
      %v591 = vunpack.c.h.b16 %v545
      %v592 = vunpack.c.l.b16 %v546
      %v593 = vunpack.c.h.b16 %v546
      %v594 = vunpack.c.l.b16 %v547
      %v595 = vunpack.c.h.b16 %v547
      %v596 = vpack.c.b16 %v564, %v564
      %v597 = vpack.c.b16 %v565, %v565
      %v598 = vpack.c.b16 %v566, %v566
      %v599 = vpack.c.b16 %v567, %v567
      %v600 = vpack.c.b16 %v568, %v568
      %v601 = vpack.c.b16 %v569, %v569
      %v602 = vpack.c.b16 %v570, %v570
      %v603 = vpack.c.b16 %v571, %v571
      %v604 = vpack.c.b16 %v572, %v572
      %v605 = vpack.c.b16 %v573, %v573
      %v606 = vpack.c.b16 %v574, %v574
      %v607 = vpack.c.b16 %v575, %v575
      %v608 = vpack.c.b16 %v576, %v576
      %v609 = vpack.c.b16 %v577, %v577
      %v610 = vpack.c.b16 %v578, %v578
      %v611 = vpack.c.b16 %v579, %v579
      %v612 = vpack.c.b16 %v580, %v580
      %v613 = vpack.c.b16 %v581, %v581
      %v614 = vpack.c.b16 %v582, %v582
      %v615 = vpack.c.b16 %v583, %v583
      %v616 = vpack.c.b16 %v584, %v584
      %v617 = vpack.c.b16 %v585, %v585
      %v618 = vpack.c.b16 %v586, %v586
      %v619 = vpack.c.b16 %v587, %v587
      %v620 = vpack.c.b16 %v588, %v588
      %v621 = vpack.c.b16 %v589, %v589
      %v622 = vpack.c.b16 %v590, %v590
      %v623 = vpack.c.b16 %v591, %v591
      %v624 = vpack.c.b16 %v592, %v592
      %v625 = vpack.c.b16 %v593, %v593
      %v626 = vpack.c.b16 %v594, %v594
      %v627 = vpack.c.b16 %v595, %v595
      %vm660 = vcmask 257024
      %661 = vst.msk [vmem:[%s179] sm:$0xf] %vm660, %v596
      %662 = vst.msk [vmem:[%s179 + $0x4] sm:$0xf] %vm660, %v597
      %663 = vst.msk [vmem:[%s179 + $0x8] sm:$0xf] %vm660, %v598
      %664 = vst.msk [vmem:[%s179 + $0xc] sm:$0xf] %vm660, %v599
      %665 = vst.msk [vmem:[%s179 + $0x10] sm:$0xf] %vm660, %v600
      %666 = vst.msk [vmem:[%s179 + $0x14] sm:$0xf] %vm660, %v601
      %667 = vst.msk [vmem:[%s179 + $0x18] sm:$0xf] %vm660, %v602
      %668 = vst.msk [vmem:[%s179 + $0x1c] sm:$0xf] %vm660, %v603
      %669 = vst.msk [vmem:[%s179 + $0x20] sm:$0xf] %vm660, %v604
      %670 = vst.msk [vmem:[%s179 + $0x24] sm:$0xf] %vm660, %v605
      %671 = vst.msk [vmem:[%s179 + $0x28] sm:$0xf] %vm660, %v606
      %672 = vst.msk [vmem:[%s179 + $0x2c] sm:$0xf] %vm660, %v607
      %673 = vst.msk [vmem:[%s179 + $0x30] sm:$0xf] %vm660, %v608
      %674 = vst.msk [vmem:[%s179 + $0x34] sm:$0xf] %vm660, %v609
      %675 = vst.msk [vmem:[%s179 + $0x38] sm:$0xf] %vm660, %v610
      %676 = vst.msk [vmem:[%s179 + $0x3c] sm:$0xf] %vm660, %v611
      %677 = vst.msk [vmem:[%s179 + $0x40] sm:$0xf] %vm660, %v612
      %678 = vst.msk [vmem:[%s179 + $0x44] sm:$0xf] %vm660, %v613
      %679 = vst.msk [vmem:[%s179 + $0x48] sm:$0xf] %vm660, %v614
      %680 = vst.msk [vmem:[%s179 + $0x4c] sm:$0xf] %vm660, %v615
      %681 = vst.msk [vmem:[%s179 + $0x50] sm:$0xf] %vm660, %v616
      %682 = vst.msk [vmem:[%s179 + $0x54] sm:$0xf] %vm660, %v617
      %683 = vst.msk [vmem:[%s179 + $0x58] sm:$0xf] %vm660, %v618
      %684 = vst.msk [vmem:[%s179 + $0x5c] sm:$0xf] %vm660, %v619
      %685 = vst.msk [vmem:[%s179 + $0x60] sm:$0xf] %vm660, %v620
      %686 = vst.msk [vmem:[%s179 + $0x64] sm:$0xf] %vm660, %v621
      %687 = vst.msk [vmem:[%s179 + $0x68] sm:$0xf] %vm660, %v622
      %688 = vst.msk [vmem:[%s179 + $0x6c] sm:$0xf] %vm660, %v623
      %689 = vst.msk [vmem:[%s179 + $0x70] sm:$0xf] %vm660, %v624
      %690 = vst.msk [vmem:[%s179 + $0x74] sm:$0xf] %vm660, %v625
      %691 = vst.msk [vmem:[%s179 + $0x78] sm:$0xf] %vm660, %v626
      %692 = vst.msk [vmem:[%s179 + $0x7c] sm:$0xf] %vm660, %v627
      %v693 = vunpack.c.l.bf16 %v532
      %v694 = vunpack.c.h.bf16 %v532
      %v695 = vunpack.c.l.bf16 %v533
      %v696 = vunpack.c.h.bf16 %v533
      %v697 = vunpack.c.l.bf16 %v534
      %v698 = vunpack.c.h.bf16 %v534
      %v699 = vunpack.c.l.bf16 %v535
      %v700 = vunpack.c.h.bf16 %v535
      %v701 = vunpack.c.l.bf16 %v536
      %v702 = vunpack.c.h.bf16 %v536
      %v703 = vunpack.c.l.bf16 %v537
      %v704 = vunpack.c.h.bf16 %v537
      %v705 = vunpack.c.l.bf16 %v538
      %v706 = vunpack.c.h.bf16 %v538
      %v707 = vunpack.c.l.bf16 %v539
      %v708 = vunpack.c.h.bf16 %v539
      %v709 = vunpack.c.l.bf16 %v540
      %v710 = vunpack.c.h.bf16 %v540
      %v711 = vunpack.c.l.bf16 %v541
      %v712 = vunpack.c.h.bf16 %v541
      %v713 = vunpack.c.l.bf16 %v542
      %v714 = vunpack.c.h.bf16 %v542
      %v715 = vunpack.c.l.bf16 %v543
      %v716 = vunpack.c.h.bf16 %v543
      %v717 = vunpack.c.l.bf16 %v544
      %v718 = vunpack.c.h.bf16 %v544
      %v719 = vunpack.c.l.bf16 %v545
      %v720 = vunpack.c.h.bf16 %v545
      %v721 = vunpack.c.l.bf16 %v546
      %v722 = vunpack.c.h.bf16 %v546
      %v723 = vunpack.c.l.bf16 %v547
      %v724 = vunpack.c.h.bf16 %v547
      %vm725 = vcmask 261120
      %v726 = vsel %vm725, %v693, 0.0
      %v727 = vsel %vm725, %v694, 0.0
      %v728 = vadd.f32 %v726, %v727
      %v729 = vsel %vm725, %v695, 0.0
      %v730 = vadd.f32 %v728, %v729
      %v731 = vsel %vm725, %v696, 0.0
      %v732 = vadd.f32 %v730, %v731
      %v733 = vsel %vm725, %v697, 0.0
      %v734 = vadd.f32 %v732, %v733
      %v735 = vsel %vm725, %v698, 0.0
      %v736 = vadd.f32 %v734, %v735
      %v737 = vsel %vm725, %v699, 0.0
      %v738 = vadd.f32 %v736, %v737
      %v739 = vsel %vm725, %v700, 0.0
      %v740 = vadd.f32 %v738, %v739
      %v741 = vsel %vm725, %v701, 0.0
      %v742 = vadd.f32 %v740, %v741
      %v743 = vsel %vm725, %v702, 0.0
      %v744 = vadd.f32 %v742, %v743
      %v745 = vsel %vm725, %v703, 0.0
      %v746 = vadd.f32 %v744, %v745
      %v747 = vsel %vm725, %v704, 0.0
      %v748 = vadd.f32 %v746, %v747
      %v749 = vsel %vm725, %v705, 0.0
      %v750 = vadd.f32 %v748, %v749
      %v751 = vsel %vm725, %v706, 0.0
      %v752 = vadd.f32 %v750, %v751
      %v753 = vsel %vm725, %v707, 0.0
      %v754 = vadd.f32 %v752, %v753
      %v755 = vsel %vm725, %v708, 0.0
      %v756 = vadd.f32 %v754, %v755
      %v757 = vsel %vm725, %v709, 0.0
      %v758 = vadd.f32 %v756, %v757
      %v759 = vsel %vm725, %v710, 0.0
      %v760 = vadd.f32 %v758, %v759
      %v761 = vsel %vm725, %v711, 0.0
      %v762 = vadd.f32 %v760, %v761
      %v763 = vsel %vm725, %v712, 0.0
      %v764 = vadd.f32 %v762, %v763
      %v765 = vsel %vm725, %v713, 0.0
      %v766 = vadd.f32 %v764, %v765
      %v767 = vsel %vm725, %v714, 0.0
      %v768 = vadd.f32 %v766, %v767
      %v769 = vsel %vm725, %v715, 0.0
      %v770 = vadd.f32 %v768, %v769
      %v771 = vsel %vm725, %v716, 0.0
      %v772 = vadd.f32 %v770, %v771
      %v773 = vsel %vm725, %v717, 0.0
      %v774 = vadd.f32 %v772, %v773
      %v775 = vsel %vm725, %v718, 0.0
      %v776 = vadd.f32 %v774, %v775
      %v777 = vsel %vm725, %v719, 0.0
      %v778 = vadd.f32 %v776, %v777
      %v779 = vsel %vm725, %v720, 0.0
      %v780 = vadd.f32 %v778, %v779
      %v781 = vsel %vm725, %v721, 0.0
      %v782 = vadd.f32 %v780, %v781
      %v783 = vsel %vm725, %v722, 0.0
      %v784 = vadd.f32 %v782, %v783
      %v785 = vsel %vm725, %v723, 0.0
      %v786 = vadd.f32 %v784, %v785
      %v787 = vsel %vm725, %v724, 0.0
      %v788 = vadd.f32 %v786, %v787
      %v789 = vrot.slane %v788, 4
      %v790 = vadd.f32 %v788, %v789
      %v791 = vrot.slane %v790, 2
      %v792 = vadd.f32 %v790, %v791
      %v793 = vrot.slane %v792, 1
      %v794 = vadd.f32 %v792, %v793
      %v795 = vmul.f32 %v693, %v693
      %v796 = vmul.f32 %v694, %v694
      %v797 = vmul.f32 %v695, %v695
      %v798 = vmul.f32 %v696, %v696
      %v799 = vmul.f32 %v697, %v697
      %v800 = vmul.f32 %v698, %v698
      %v801 = vmul.f32 %v699, %v699
      %v802 = vmul.f32 %v700, %v700
      %v803 = vmul.f32 %v701, %v701
      %v804 = vmul.f32 %v702, %v702
      %v805 = vmul.f32 %v703, %v703
      %v806 = vmul.f32 %v704, %v704
      %v807 = vmul.f32 %v705, %v705
      %v808 = vmul.f32 %v706, %v706
      %v809 = vmul.f32 %v707, %v707
      %v810 = vmul.f32 %v708, %v708
      %v811 = vmul.f32 %v709, %v709
      %v812 = vmul.f32 %v710, %v710
      %v813 = vmul.f32 %v711, %v711
      %v814 = vmul.f32 %v712, %v712
      %v815 = vmul.f32 %v713, %v713
      %v816 = vmul.f32 %v714, %v714
      %v817 = vmul.f32 %v715, %v715
      %v818 = vmul.f32 %v716, %v716
      %v819 = vmul.f32 %v717, %v717
      %v820 = vmul.f32 %v718, %v718
      %v821 = vmul.f32 %v719, %v719
      %v822 = vmul.f32 %v720, %v720
      %v823 = vmul.f32 %v721, %v721
      %v824 = vmul.f32 %v722, %v722
      %v825 = vmul.f32 %v723, %v723
      %v826 = vmul.f32 %v724, %v724
      %v827 = vsel %vm725, %v795, 0.0
      %v828 = vsel %vm725, %v796, 0.0
      %v829 = vadd.f32 %v827, %v828
      %v830 = vsel %vm725, %v797, 0.0
      %v831 = vadd.f32 %v829, %v830
      %v832 = vsel %vm725, %v798, 0.0
      %v833 = vadd.f32 %v831, %v832
      %v834 = vsel %vm725, %v799, 0.0
      %v835 = vadd.f32 %v833, %v834
      %v836 = vsel %vm725, %v800, 0.0
      %v837 = vadd.f32 %v835, %v836
      %v838 = vsel %vm725, %v801, 0.0
      %v839 = vadd.f32 %v837, %v838
      %v840 = vsel %vm725, %v802, 0.0
      %v841 = vadd.f32 %v839, %v840
      %v842 = vsel %vm725, %v803, 0.0
      %v843 = vadd.f32 %v841, %v842
      %v844 = vsel %vm725, %v804, 0.0
      %v845 = vadd.f32 %v843, %v844
      %v846 = vsel %vm725, %v805, 0.0
      %v847 = vadd.f32 %v845, %v846
      %v848 = vsel %vm725, %v806, 0.0
      %v849 = vadd.f32 %v847, %v848
      %v850 = vsel %vm725, %v807, 0.0
      %v851 = vadd.f32 %v849, %v850
      %v852 = vsel %vm725, %v808, 0.0
      %v853 = vadd.f32 %v851, %v852
      %v854 = vsel %vm725, %v809, 0.0
      %v855 = vadd.f32 %v853, %v854
      %v856 = vsel %vm725, %v810, 0.0
      %v857 = vadd.f32 %v855, %v856
      %v858 = vsel %vm725, %v811, 0.0
      %v859 = vadd.f32 %v857, %v858
      %v860 = vsel %vm725, %v812, 0.0
      %v861 = vadd.f32 %v859, %v860
      %v862 = vsel %vm725, %v813, 0.0
      %v863 = vadd.f32 %v861, %v862
      %v864 = vsel %vm725, %v814, 0.0
      %v865 = vadd.f32 %v863, %v864
      %v866 = vsel %vm725, %v815, 0.0
      %v867 = vadd.f32 %v865, %v866
      %v868 = vsel %vm725, %v816, 0.0
      %v869 = vadd.f32 %v867, %v868
      %v870 = vsel %vm725, %v817, 0.0
      %v871 = vadd.f32 %v869, %v870
      %v872 = vsel %vm725, %v818, 0.0
      %v873 = vadd.f32 %v871, %v872
      %v874 = vsel %vm725, %v819, 0.0
      %v875 = vadd.f32 %v873, %v874
      %v876 = vsel %vm725, %v820, 0.0
      %v877 = vadd.f32 %v875, %v876
      %v878 = vsel %vm725, %v821, 0.0
      %v879 = vadd.f32 %v877, %v878
      %v880 = vsel %vm725, %v822, 0.0
      %v881 = vadd.f32 %v879, %v880
      %v882 = vsel %vm725, %v823, 0.0
      %v883 = vadd.f32 %v881, %v882
      %v884 = vsel %vm725, %v824, 0.0
      %v885 = vadd.f32 %v883, %v884
      %v886 = vsel %vm725, %v825, 0.0
      %v887 = vadd.f32 %v885, %v886
      %v888 = vsel %vm725, %v826, 0.0
      %v889 = vadd.f32 %v887, %v888
      %v890 = vrot.slane %v889, 4
      %v891 = vadd.f32 %v889, %v890
      %v892 = vrot.slane %v891, 2
      %v893 = vadd.f32 %v891, %v892
      %v894 = vrot.slane %v893, 1
      %v895 = vadd.f32 %v893, %v894
      %vm896 = vcmask 1040384
      %v897 = vsel %vm896, %v794, %v895
      %vm898 = vcmask 254976
      %899 = vst.msk [vmem:[%s184] sm:$0x3] %vm898, %v897
      %s900 = smul.u32 32, %s15
      %p901 = scmp.lt.s32.totalorder %s900, 63
      %s902 = scalar_select %p901, %s900, 63
      %s903 = smul.addr %s902, 4
      %s904 = scalar_lea.vmem %s2, %s903
      %p905 = scmp.lt.s32.totalorder %s15, 1
      %s906 = scalar_select %p905, %s15, 1
      %s907 = smul.addr %s906, 2
      %s908 = scalar_lea.vmem %s3, %s907
      // Predicated region
      $region29: #{up_layer_residual_forward.3} parent=27 // pred_check
        %p909 = pneg %p80
      $region30: #{up_layer_residual_forward.3} parent=27 // pred_check_branch
        %911 = sbr.rel (%p909) target = $region32
      $region31: #{up_layer_residual_forward.3} parent=27 // pred_region
        %s912 = smul.u32 32, %s15
      $region32: #{up_layer_residual_forward.3} parent=27 // pred_fallthru
        _
      // Predicated region
      $region33: #{up_layer_residual_forward.3} parent=27 // pred_check
        %p913 = pneg %p106
      $region34: #{up_layer_residual_forward.3} parent=27 // pred_check_branch
        %915 = sbr.rel (%p913) target = $region36
      $region35: #{up_layer_residual_forward.3} parent=27 // pred_region
        _
      $region36: #{up_layer_residual_forward.3} parent=27 // pred_fallthru
        _
    $region28: #{up_layer_residual_forward.3} parent=5 // pred_fallthru
      _
    %p916 = scmp.le.s32.totalorder 2, %s10
    // Predicated region
    $region37: #{up_layer_residual_forward.3} parent=5 // pred_check
      %p917 = pneg %p916
    $region38: #{up_layer_residual_forward.3} parent=5 // pred_check_branch
      %919 = sbr.rel (%p917) target = $region40
    $region39: #{up_layer_residual_forward.3} parent=5 // pred_region
      %s920 = ssub.s32 %s10, 2
      // Predicated region
      $region41: #{up_layer_residual_forward.3} parent=39 // pred_check
        %p921 = pneg %p86
      $region42: #{up_layer_residual_forward.3} parent=39 // pred_check_branch
        %923 = sbr.rel (%p921) target = $region44
      $region43: #{up_layer_residual_forward.3} parent=39 // pred_region
        %s924 = smul.u32 32, %s16
        %p925 = scmp.lt.s32.totalorder %s924, 63
        %s926 = scalar_select %p925, %s924, 63
        %s927 = smul.addr %s926, 4
        %s928 = scalar_lea.vmem %s2, %s927
      $region44: #{up_layer_residual_forward.3} parent=39 // pred_fallthru
        _
      // Predicated region
      $region45: #{up_layer_residual_forward.3} parent=39 // pred_check
        %p929 = pneg %p112
      $region46: #{up_layer_residual_forward.3} parent=39 // pred_check_branch
        %931 = sbr.rel (%p929) target = $region48
      $region47: #{up_layer_residual_forward.3} parent=39 // pred_region
        %p932 = scmp.lt.s32.totalorder %s16, 1
        %s933 = scalar_select %p932, %s16, 1
        %s934 = smul.addr %s933, 2
        %s935 = scalar_lea.vmem %s3, %s934
      $region48: #{up_layer_residual_forward.3} parent=39 // pred_fallthru
        _
    $region40: #{up_layer_residual_forward.3} parent=5 // pred_fallthru
      _
  $region6: #{up_layer_residual_forward.3} parent=0 // loop_footer
    %s14 = sadd.s32 1, %s10
  $region7: #{up_layer_residual_forward.3} parent=0 // loop_footer_branch
    %9 = sbr.rel target = $region3
  $region8: #{up_layer_residual_forward.3} parent=0 // loop_exit
    _

// kernel: up_layer_residual_forward.5
$region0: #{up_layer_residual_forward.5}
  #allocation0 [shape = 'u32[]', space=smem, size = 0x4, offset = 0x4, fixed_abs, tag = 'smem constant byte address 0x4 - core index']
  #allocation1 [shape = 'u32[144,128]{1,0:T(1,128)}', space=vmem, size = 0x12000, scoped, tag = 'internal scratch']
  %s0 = inlined_call_operand.vmem [shape: bf16[512,32], index: 0, kind: input, shape index: {}]
  %s1 = inlined_call_operand.vmem [shape: bf16[512,4], index: 1, kind: input, shape index: {}]
  %s2 = inlined_call_operand.vmem [shape: bf16[4,8], index: 2, kind: input, shape index: {}]
  %s3 = inlined_call_operand.vmem [shape: f32[2,32], index: 3, kind: input, shape index: {}]
  %s4 = inlined_call_operand.vmem [shape: f32[512,32], index: 4, kind: output, shape index: {}]
  %s5 = sld [smem:[#allocation0]]
  $region49: #{up_layer_residual_forward.5} parent=0
    _
  %s7 = ssub.s32 1, %s5
  %s8 = scalar_select 0, %s7, %s5
  loop: start=0, step=1, limit=4
  $region2: #{up_layer_residual_forward.5} parent=0 // loop_pre_header
    _
  $region3: #{up_layer_residual_forward.5} parent=0 // loop_header
    %s10 = sphi 0, %s14
    %p11 = scmp.ge.s32.totalorder %s10, 4
    %s20 = sphi 0, %s22
    %s23 = sphi 0, %s20
    %s24 = sphi 0, %s23
    %s40 = sphi 0, %s24
    %s46 = sphi 0, %s48
    %s49 = sphi 0, %s46
    %s50 = sphi 0, %s49
    %s66 = sphi 0, %s50
    %s70 = sphi 0, %s70
    %s72 = sphi 0, %s70
    %s73 = sphi 0, %s72
    %s87 = sphi 0, %s73
    %s91 = sphi 0, %s91
    %s93 = sphi 0, %s91
    %s94 = sphi 0, %s93
    %s108 = sphi 0, %s94
    %s114 = sphi 0, %s116
    %s117 = sphi 0, %s114
    %s118 = sphi 0, %s117
    %s134 = sphi 0, %s118
  $region4: #{up_layer_residual_forward.5} parent=0 // loop_header_branch
    %13 = sbr.rel (%p11) target = $region8
  $region5: #{up_layer_residual_forward.5} parent=0 // loop_body
    %s15 = ssub.s32 %s10, 1
    %s16 = ssub.s32 %s10, 2
    %s17 = sadd.s32 %s10, 1
    %s18 = ssub.s32 %s10, %s17
    %p19 = scmp.eq.s32.totalorder %s18, 0
    %s21 = sadd.s32 %s20, 1
    %s22 = scalar_select %p19, %s20, %s21
    %p25 = pneg %p19
    %p26 = scmp.eq.s32.totalorder %s10, 1
    %p27 = por %p25, %p26
    %p28 = scmp.ne.s32.totalorder %s20, %s23
    %p29 = scmp.eq.s32.totalorder %s10, 0
    %p30 = por %p28, %p29
    %p31 = scmp.ne.s32.totalorder %s20, %s23
    %p32 = scmp.eq.s32.totalorder %s15, 1
    %p33 = por %p31, %p32
    %p34 = scmp.ne.s32.totalorder %s23, %s24
    %p35 = scmp.eq.s32.totalorder %s15, 0
    %p36 = por %p34, %p35
    %p37 = scmp.ne.s32.totalorder %s23, %s24
    %p38 = scmp.eq.s32.totalorder %s16, 1
    %p39 = por %p37, %p38
    %p41 = scmp.ne.s32.totalorder %s24, %s40
    %p42 = scmp.eq.s32.totalorder %s16, 0
    %p43 = por %p41, %p42
    %s44 = ssub.s32 %s10, %s17
    %p45 = scmp.eq.s32.totalorder %s44, 0
    %s47 = sadd.s32 %s46, 1
    %s48 = scalar_select %p45, %s46, %s47
    %p51 = pneg %p45
    %p52 = scmp.eq.s32.totalorder %s10, 1
    %p53 = por %p51, %p52
    %p54 = scmp.ne.s32.totalorder %s46, %s49
    %p55 = scmp.eq.s32.totalorder %s10, 0
    %p56 = por %p54, %p55
    %p57 = scmp.ne.s32.totalorder %s46, %s49
    %p58 = scmp.eq.s32.totalorder %s15, 1
    %p59 = por %p57, %p58
    %p60 = scmp.ne.s32.totalorder %s49, %s50
    %p61 = scmp.eq.s32.totalorder %s15, 0
    %p62 = por %p60, %p61
    %p63 = scmp.ne.s32.totalorder %s49, %s50
    %p64 = scmp.eq.s32.totalorder %s16, 1
    %p65 = por %p63, %p64
    %p67 = scmp.ne.s32.totalorder %s50, %s66
    %p68 = scmp.eq.s32.totalorder %s16, 0
    %p69 = por %p67, %p68
    %s71 = sadd.s32 %s70, 1
    %p74 = scmp.eq.s32.totalorder %s10, 1
    %p75 = scmp.ne.s32.totalorder %s70, %s72
    %p76 = scmp.eq.s32.totalorder %s10, 0
    %p77 = por %p75, %p76
    %p78 = scmp.ne.s32.totalorder %s70, %s72
    %p79 = scmp.eq.s32.totalorder %s15, 1
    %p80 = por %p78, %p79
    %p81 = scmp.ne.s32.totalorder %s72, %s73
    %p82 = scmp.eq.s32.totalorder %s15, 0
    %p83 = por %p81, %p82
    %p84 = scmp.ne.s32.totalorder %s72, %s73
    %p85 = scmp.eq.s32.totalorder %s16, 1
    %p86 = por %p84, %p85
    %p88 = scmp.ne.s32.totalorder %s73, %s87
    %p89 = scmp.eq.s32.totalorder %s16, 0
    %p90 = por %p88, %p89
    %s92 = sadd.s32 %s91, 1
    %p95 = scmp.eq.s32.totalorder %s10, 1
    %p96 = scmp.ne.s32.totalorder %s91, %s93
    %p97 = scmp.eq.s32.totalorder %s10, 0
    %p98 = por %p96, %p97
    %p99 = scmp.ne.s32.totalorder %s91, %s93
    %p100 = scmp.eq.s32.totalorder %s15, 1
    %p101 = por %p99, %p100
    %p102 = scmp.ne.s32.totalorder %s93, %s94
    %p103 = scmp.eq.s32.totalorder %s15, 0
    %p104 = por %p102, %p103
    %p105 = scmp.ne.s32.totalorder %s93, %s94
    %p106 = scmp.eq.s32.totalorder %s16, 1
    %p107 = por %p105, %p106
    %p109 = scmp.ne.s32.totalorder %s94, %s108
    %p110 = scmp.eq.s32.totalorder %s16, 0
    %p111 = por %p109, %p110
    %s112 = ssub.s32 %s10, %s17
    %p113 = scmp.eq.s32.totalorder %s112, 0
    %s115 = sadd.s32 %s114, 1
    %s116 = scalar_select %p113, %s114, %s115
    %p119 = pneg %p113
    %p120 = scmp.eq.s32.totalorder %s10, 1
    %p121 = por %p119, %p120
    %p122 = scmp.ne.s32.totalorder %s114, %s117
    %p123 = scmp.eq.s32.totalorder %s10, 0
    %p124 = por %p122, %p123
    %p125 = scmp.ne.s32.totalorder %s114, %s117
    %p126 = scmp.eq.s32.totalorder %s15, 1
    %p127 = por %p125, %p126
    %p128 = scmp.ne.s32.totalorder %s117, %s118
    %p129 = scmp.eq.s32.totalorder %s15, 0
    %p130 = por %p128, %p129
    %p131 = scmp.ne.s32.totalorder %s117, %s118
    %p132 = scmp.eq.s32.totalorder %s16, 1
    %p133 = por %p131, %p132
    %p135 = scmp.ne.s32.totalorder %s118, %s134
    %p136 = scmp.eq.s32.totalorder %s16, 0
    %p137 = por %p135, %p136
    %p138 = scmp.le.s32.totalorder 1, %s10
    %p139 = scmp.lt.s32.totalorder %s10, 3
    %p140 = pnand %p138, %p139
    %p141 = pneg %p140
    // Predicated region
    $region9: #{up_layer_residual_forward.5} parent=5 // pred_check
      _
    $region10: #{up_layer_residual_forward.5} parent=5 // pred_check_branch
      %143 = sbr.rel (%p140) target = $region12
    $region11: #{up_layer_residual_forward.5} parent=5 // pred_region
      %s144 = ssub.s32 %s10, 1
      // Predicated region
      $region13: #{up_layer_residual_forward.5} parent=11 // pred_check
        %p145 = pneg %p83
      $region14: #{up_layer_residual_forward.5} parent=11 // pred_check_branch
        %147 = sbr.rel (%p145) target = $region16
      $region15: #{up_layer_residual_forward.5} parent=11 // pred_region
        _
      $region16: #{up_layer_residual_forward.5} parent=11 // pred_fallthru
        _
      // Predicated region
      $region17: #{up_layer_residual_forward.5} parent=11 // pred_check
        %p148 = pneg %p104
      $region18: #{up_layer_residual_forward.5} parent=11 // pred_check_branch
        %150 = sbr.rel (%p148) target = $region20
      $region19: #{up_layer_residual_forward.5} parent=11 // pred_region
        _
      $region20: #{up_layer_residual_forward.5} parent=11 // pred_fallthru
        _
    $region12: #{up_layer_residual_forward.5} parent=5 // pred_fallthru
      _
    %p151 = scmp.lt.s32.totalorder %s10, 2
    // Predicated region
    $region21: #{up_layer_residual_forward.5} parent=5 // pred_check
      %p152 = pneg %p151
    $region22: #{up_layer_residual_forward.5} parent=5 // pred_check_branch
      %154 = sbr.rel (%p152) target = $region24
    $region23: #{up_layer_residual_forward.5} parent=5 // pred_region
      // Predicated region
      $region25: #{up_layer_residual_forward.5} parent=23 // pred_check
        %p155 = pneg %p30
      $region26: #{up_layer_residual_forward.5} parent=23 // pred_check_branch
        %157 = sbr.rel (%p155) target = $region28
      $region27: #{up_layer_residual_forward.5} parent=23 // pred_region
        %s158 = smul.u32 32, %s10
        %p159 = scmp.lt.s32.totalorder %s158, 63
        %s160 = scalar_select %p159, %s158, 63
        %s161 = smul.addr %s160, 4
        %s162 = scalar_lea.vmem %s0, %s161
        %s163 = smul.u32 32, %s10
      $region28: #{up_layer_residual_forward.5} parent=23 // pred_fallthru
        _
      // Predicated region
      $region29: #{up_layer_residual_forward.5} parent=23 // pred_check
        %p164 = pneg %p56
      $region30: #{up_layer_residual_forward.5} parent=23 // pred_check_branch
        %166 = sbr.rel (%p164) target = $region32
      $region31: #{up_layer_residual_forward.5} parent=23 // pred_region
        %s167 = smul.u32 32, %s10
        %p168 = scmp.lt.s32.totalorder %s167, 63
        %s169 = scalar_select %p168, %s167, 63
        %s170 = smul.addr %s169, 4
        %s171 = scalar_lea.vmem %s1, %s170
        %s172 = smul.u32 32, %s10
      $region32: #{up_layer_residual_forward.5} parent=23 // pred_fallthru
        _
    $region24: #{up_layer_residual_forward.5} parent=5 // pred_fallthru
      _
    %p173 = scmp.le.s32.totalorder 1, %s10
    %p174 = scmp.lt.s32.totalorder %s10, 3
    %p175 = pnand %p173, %p174
    %p176 = pneg %p175
    // Predicated region
    $region33: #{up_layer_residual_forward.5} parent=5 // pred_check
      _
    $region34: #{up_layer_residual_forward.5} parent=5 // pred_check_branch
      %178 = sbr.rel (%p175) target = $region36
    $region35: #{up_layer_residual_forward.5} parent=5 // pred_region
      %s179 = ssub.s32 %s10, 1
      %s180 = smul.u32 32, %s15
      %p181 = scmp.lt.s32.totalorder %s180, 63
      %s182 = scalar_select %p181, %s180, 63
      %s183 = smul.addr %s182, 4
      %s184 = scalar_lea.vmem %s0, %s183
      %p185 = pneg %p36
      %p186 = pneg %p33
      %s187 = smul.u32 32, %s15
      %p188 = scmp.lt.s32.totalorder %s187, 63
      %s189 = scalar_select %p188, %s187, 63
      %s190 = smul.addr %s189, 4
      %s191 = scalar_lea.vmem %s1, %s190
      %p192 = pneg %p62
      %p193 = pneg %p59
      %p194 = pneg %p83
      %p195 = pneg %p80
      %p196 = pneg %p104
      %p197 = pneg %p101
      %p198 = pneg %p130
      %p199 = pneg %p127
      %s200 = smul.u32 32, %s15
      %p201 = scmp.lt.s32.totalorder %s200, 63
      %s202 = scalar_select %p201, %s200, 63
      %s203 = smul.addr %s202, 8
      %s204 = scalar_lea.vmem %s4, %s203
      %s205 = smul.u32 32, %s15
      %p206 = scmp.lt.s32.totalorder %s205, 63
      %s207 = scalar_select %p206, %s205, 63
      %s208 = smul.addr %s207, 4
      %s209 = scalar_lea.vmem %s0, %s208
      %s210 = smul.u32 32, %s15
      %s211 = smul.u32 32, %s15
      %p212 = scmp.lt.s32.totalorder %s211, 63
      %s213 = scalar_select %p212, %s211, 63
      %s214 = smul.addr %s213, 4
      %s215 = scalar_lea.vmem %s1, %s214
      %s216 = smul.u32 32, %s15
      %s217 = smul.u32 32, %s15
      %p218 = scmp.lt.s32.totalorder %s217, 63
      %s219 = scalar_select %p218, %s217, 63
      %s220 = smul.addr %s219, 8
      %s221 = scalar_lea.vmem %s4, %s220
      %s222 = smul.u32 32, %s15
      %v224 = vld [vmem:[%s3] sm:$0x1]
      %v225 = vld [vmem:[%s3 + $0x1] sm:$0x1]
      %v226 = vld [vmem:[%s209] sm:$0xf]
      %v227 = vld [vmem:[%s209 + $0x4] sm:$0xf]
      %v228 = vld [vmem:[%s209 + $0x8] sm:$0xf]
      %v229 = vld [vmem:[%s209 + $0xc] sm:$0xf]
      %v230 = vld [vmem:[%s209 + $0x10] sm:$0xf]
      %v231 = vld [vmem:[%s209 + $0x14] sm:$0xf]
      %v232 = vld [vmem:[%s209 + $0x18] sm:$0xf]
      %v233 = vld [vmem:[%s209 + $0x1c] sm:$0xf]
      %v234 = vld [vmem:[%s209 + $0x20] sm:$0xf]
      %v235 = vld [vmem:[%s209 + $0x24] sm:$0xf]
      %v236 = vld [vmem:[%s209 + $0x28] sm:$0xf]
      %v237 = vld [vmem:[%s209 + $0x2c] sm:$0xf]
      %v238 = vld [vmem:[%s209 + $0x30] sm:$0xf]
      %v239 = vld [vmem:[%s209 + $0x34] sm:$0xf]
      %v240 = vld [vmem:[%s209 + $0x38] sm:$0xf]
      %v241 = vld [vmem:[%s209 + $0x3c] sm:$0xf]
      %v242 = vld [vmem:[%s209 + $0x40] sm:$0xf]
      %v243 = vld [vmem:[%s209 + $0x44] sm:$0xf]
      %v244 = vld [vmem:[%s209 + $0x48] sm:$0xf]
      %v245 = vld [vmem:[%s209 + $0x4c] sm:$0xf]
      %v246 = vld [vmem:[%s209 + $0x50] sm:$0xf]
      %v247 = vld [vmem:[%s209 + $0x54] sm:$0xf]
      %v248 = vld [vmem:[%s209 + $0x58] sm:$0xf]
      %v249 = vld [vmem:[%s209 + $0x5c] sm:$0xf]
      %v250 = vld [vmem:[%s209 + $0x60] sm:$0xf]
      %v251 = vld [vmem:[%s209 + $0x64] sm:$0xf]
      %v252 = vld [vmem:[%s209 + $0x68] sm:$0xf]
      %v253 = vld [vmem:[%s209 + $0x6c] sm:$0xf]
      %v254 = vld [vmem:[%s209 + $0x70] sm:$0xf]
      %v255 = vld [vmem:[%s209 + $0x74] sm:$0xf]
      %v256 = vld [vmem:[%s209 + $0x78] sm:$0xf]
      %v257 = vld [vmem:[%s209 + $0x7c] sm:$0xf]
      %v258 = vunpack.c.l.bf16 %v226
      %v259 = vunpack.c.l.bf16 %v227
      %v260 = vunpack.c.l.bf16 %v228
      %v261 = vunpack.c.l.bf16 %v229
      %v262 = vunpack.c.l.bf16 %v230
      %v263 = vunpack.c.l.bf16 %v231
      %v264 = vunpack.c.l.bf16 %v232
      %v265 = vunpack.c.l.bf16 %v233
      %v266 = vunpack.c.l.bf16 %v234
      %v267 = vunpack.c.l.bf16 %v235
      %v268 = vunpack.c.l.bf16 %v236
      %v269 = vunpack.c.l.bf16 %v237
      %v270 = vunpack.c.l.bf16 %v238
      %v271 = vunpack.c.l.bf16 %v239
      %v272 = vunpack.c.l.bf16 %v240
      %v273 = vunpack.c.l.bf16 %v241
      %v274 = vunpack.c.l.bf16 %v242
      %v275 = vunpack.c.l.bf16 %v243
      %v276 = vunpack.c.l.bf16 %v244
      %v277 = vunpack.c.l.bf16 %v245
      %v278 = vunpack.c.l.bf16 %v246
      %v279 = vunpack.c.l.bf16 %v247
      %v280 = vunpack.c.l.bf16 %v248
      %v281 = vunpack.c.l.bf16 %v249
      %v282 = vunpack.c.l.bf16 %v250
      %v283 = vunpack.c.l.bf16 %v251
      %v284 = vunpack.c.l.bf16 %v252
      %v285 = vunpack.c.l.bf16 %v253
      %v286 = vunpack.c.l.bf16 %v254
      %v287 = vunpack.c.l.bf16 %v255
      %v288 = vunpack.c.l.bf16 %v256
      %v289 = vunpack.c.l.bf16 %v257
      %v290 = vlaneseq
      %v291 = vshrl.u32 %v290, 7
      %v292 = vsub.s32 0, %v291
      %v293 = vrot.slane %v224, %v292
      %v294 = vmul.f32 %v258, %v293
      %v295 = vmul.f32 %v259, %v293
      %v296 = vmul.f32 %v260, %v293
      %v297 = vmul.f32 %v261, %v293
      %v298 = vmul.f32 %v262, %v293
      %v299 = vmul.f32 %v263, %v293
      %v300 = vmul.f32 %v264, %v293
      %v301 = vmul.f32 %v265, %v293
      %v302 = vmul.f32 %v266, %v293
      %v303 = vmul.f32 %v267, %v293
      %v304 = vmul.f32 %v268, %v293
      %v305 = vmul.f32 %v269, %v293
      %v306 = vmul.f32 %v270, %v293
      %v307 = vmul.f32 %v271, %v293
      %v308 = vmul.f32 %v272, %v293
      %v309 = vmul.f32 %v273, %v293
      %v310 = vmul.f32 %v274, %v293
      %v311 = vmul.f32 %v275, %v293
      %v312 = vmul.f32 %v276, %v293
      %v313 = vmul.f32 %v277, %v293
      %v314 = vmul.f32 %v278, %v293
      %v315 = vmul.f32 %v279, %v293
      %v316 = vmul.f32 %v280, %v293
      %v317 = vmul.f32 %v281, %v293
      %v318 = vmul.f32 %v282, %v293
      %v319 = vmul.f32 %v283, %v293
      %v320 = vmul.f32 %v284, %v293
      %v321 = vmul.f32 %v285, %v293
      %v322 = vmul.f32 %v286, %v293
      %v323 = vmul.f32 %v287, %v293
      %v324 = vmul.f32 %v288, %v293
      %v325 = vmul.f32 %v289, %v293
      %v326 = vlaneseq
      %v327 = vshrl.u32 %v326, 7
      %v328 = vsub.s32 0, %v327
      %v329 = vrot.slane %v225, %v328
      %v330 = vadd.f32 %v294, %v329
      %v331 = vadd.f32 %v295, %v329
      %v332 = vadd.f32 %v296, %v329
      %v333 = vadd.f32 %v297, %v329
      %v334 = vadd.f32 %v298, %v329
      %v335 = vadd.f32 %v299, %v329
      %v336 = vadd.f32 %v300, %v329
      %v337 = vadd.f32 %v301, %v329
      %v338 = vadd.f32 %v302, %v329
      %v339 = vadd.f32 %v303, %v329
      %v340 = vadd.f32 %v304, %v329
      %v341 = vadd.f32 %v305, %v329
      %v342 = vadd.f32 %v306, %v329
      %v343 = vadd.f32 %v307, %v329
      %v344 = vadd.f32 %v308, %v329
      %v345 = vadd.f32 %v309, %v329
      %v346 = vadd.f32 %v310, %v329
      %v347 = vadd.f32 %v311, %v329
      %v348 = vadd.f32 %v312, %v329
      %v349 = vadd.f32 %v313, %v329
      %v350 = vadd.f32 %v314, %v329
      %v351 = vadd.f32 %v315, %v329
      %v352 = vadd.f32 %v316, %v329
      %v353 = vadd.f32 %v317, %v329
      %v354 = vadd.f32 %v318, %v329
      %v355 = vadd.f32 %v319, %v329
      %v356 = vadd.f32 %v320, %v329
      %v357 = vadd.f32 %v321, %v329
      %v358 = vadd.f32 %v322, %v329
      %v359 = vadd.f32 %v323, %v329
      %v360 = vadd.f32 %v324, %v329
      %v361 = vadd.f32 %v325, %v329
      %v362 = vld [vmem:[%s215] sm:$0xf]
      %v363 = vld [vmem:[%s215 + $0x4] sm:$0xf]
      %v364 = vld [vmem:[%s215 + $0x8] sm:$0xf]
      %v365 = vld [vmem:[%s215 + $0xc] sm:$0xf]
      %v366 = vld [vmem:[%s215 + $0x10] sm:$0xf]
      %v367 = vld [vmem:[%s215 + $0x14] sm:$0xf]
      %v368 = vld [vmem:[%s215 + $0x18] sm:$0xf]
      %v369 = vld [vmem:[%s215 + $0x1c] sm:$0xf]
      %v370 = vld [vmem:[%s215 + $0x20] sm:$0xf]
      %v371 = vld [vmem:[%s215 + $0x24] sm:$0xf]
      %v372 = vld [vmem:[%s215 + $0x28] sm:$0xf]
      %v373 = vld [vmem:[%s215 + $0x2c] sm:$0xf]
      %v374 = vld [vmem:[%s215 + $0x30] sm:$0xf]
      %v375 = vld [vmem:[%s215 + $0x34] sm:$0xf]
      %v376 = vld [vmem:[%s215 + $0x38] sm:$0xf]
      %v377 = vld [vmem:[%s215 + $0x3c] sm:$0xf]
      %v378 = vld [vmem:[%s215 + $0x40] sm:$0xf]
      %v379 = vld [vmem:[%s215 + $0x44] sm:$0xf]
      %v380 = vld [vmem:[%s215 + $0x48] sm:$0xf]
      %v381 = vld [vmem:[%s215 + $0x4c] sm:$0xf]
      %v382 = vld [vmem:[%s215 + $0x50] sm:$0xf]
      %v383 = vld [vmem:[%s215 + $0x54] sm:$0xf]
      %v384 = vld [vmem:[%s215 + $0x58] sm:$0xf]
      %v385 = vld [vmem:[%s215 + $0x5c] sm:$0xf]
      %v386 = vld [vmem:[%s215 + $0x60] sm:$0xf]
      %v387 = vld [vmem:[%s215 + $0x64] sm:$0xf]
      %v388 = vld [vmem:[%s215 + $0x68] sm:$0xf]
      %v389 = vld [vmem:[%s215 + $0x6c] sm:$0xf]
      %v390 = vld [vmem:[%s215 + $0x70] sm:$0xf]
      %v391 = vld [vmem:[%s215 + $0x74] sm:$0xf]
      %v392 = vld [vmem:[%s215 + $0x78] sm:$0xf]
      %v393 = vld [vmem:[%s215 + $0x7c] sm:$0xf]
      %v394 = vld [vmem:[%s2] sm:$0x3]
      %v427 = vunpack.c.l.b16 %v362
      %v428 = vunpack.c.l.b16 %v363
      %v429 = vunpack.c.l.b16 %v364
      %v430 = vunpack.c.l.b16 %v365
      %v431 = vunpack.c.l.b16 %v366
      %v432 = vunpack.c.l.b16 %v367
      %v433 = vunpack.c.l.b16 %v368
      %v434 = vunpack.c.l.b16 %v369
      %v435 = vunpack.c.l.b16 %v370
      %v436 = vunpack.c.l.b16 %v371
      %v437 = vunpack.c.l.b16 %v372
      %v438 = vunpack.c.l.b16 %v373
      %v439 = vunpack.c.l.b16 %v374
      %v440 = vunpack.c.l.b16 %v375
      %v441 = vunpack.c.l.b16 %v376
      %v442 = vunpack.c.l.b16 %v377
      %v443 = vunpack.c.l.b16 %v378
      %v444 = vunpack.c.l.b16 %v379
      %v445 = vunpack.c.l.b16 %v380
      %v446 = vunpack.c.l.b16 %v381
      %v447 = vunpack.c.l.b16 %v382
      %v448 = vunpack.c.l.b16 %v383
      %v449 = vunpack.c.l.b16 %v384
      %v450 = vunpack.c.l.b16 %v385
      %v451 = vunpack.c.l.b16 %v386
      %v452 = vunpack.c.l.b16 %v387
      %v453 = vunpack.c.l.b16 %v388
      %v454 = vunpack.c.l.b16 %v389
      %v455 = vunpack.c.l.b16 %v390
      %v456 = vunpack.c.l.b16 %v391
      %v457 = vunpack.c.l.b16 %v392
      %v458 = vunpack.c.l.b16 %v393
      %v459 = vpack.c.b16 %v428, %v427
      %v460 = vpack.c.b16 %v430, %v429
      %v461 = vpack.c.b16 %v432, %v431
      %v462 = vpack.c.b16 %v434, %v433
      %v463 = vpack.c.b16 %v436, %v435
      %v464 = vpack.c.b16 %v438, %v437
      %v465 = vpack.c.b16 %v440, %v439
      %v466 = vpack.c.b16 %v442, %v441
      %v467 = vpack.c.b16 %v444, %v443
      %v468 = vpack.c.b16 %v446, %v445
      %v469 = vpack.c.b16 %v448, %v447
      %v470 = vpack.c.b16 %v450, %v449
      %v471 = vpack.c.b16 %v452, %v451
      %v472 = vpack.c.b16 %v454, %v453
      %v473 = vpack.c.b16 %v456, %v455
      %v474 = vpack.c.b16 %v458, %v457
      %vm475 = vcmask 31744
      %v477 = vsel %vm475, %v459, 0
      %v480 = vsel %vm475, %v460, 0
      %v483 = vsel %vm475, %v461, 0
      %v486 = vsel %vm475, %v462, 0
      %v489 = vsel %vm475, %v463, 0
      %v492 = vsel %vm475, %v464, 0
      %v495 = vsel %vm475, %v465, 0
      %v498 = vsel %vm475, %v466, 0
      %v501 = vsel %vm475, %v467, 0
      %v504 = vsel %vm475, %v468, 0
      %v507 = vsel %vm475, %v469, 0
      %v510 = vsel %vm475, %v470, 0
      %v513 = vsel %vm475, %v471, 0
      %v516 = vsel %vm475, %v472, 0
      %v519 = vsel %vm475, %v473, 0
      %v522 = vsel %vm475, %v474, 0
      %vm524 = vcmask 1041408
      %v526 = vsel %vm524, %v394, 0
      %528 = vmatprep.subr.bf16.mxu0 0
      %529 = vmatpush1.bf16.msra.mxu0 0
      %530 = vmatprep.subr.bf16.mxu0 0
      %531 = vmatpush1.bf16.msra.mxu0 0
      %532 = vmatprep.subr.bf16.mxu0 0
      %533 = vmatpush1.bf16.msra.mxu0 0
      %534 = vmatprep.subr.bf16.mxu0 0
      %535 = vmatpush1.bf16.msra.mxu0 0
      %536 = vmatprep.subr.bf16.mxu0 0
      %537 = vmatpush1.bf16.msra.mxu0 0
      %538 = vmatprep.subr.bf16.mxu0 0
      %539 = vmatpush1.bf16.msra.mxu0 0
      %540 = vmatprep.subr.bf16.mxu0 0
      %541 = vmatpush1.bf16.msra.mxu0 0
      %542 = vmatprep.subr.bf16.mxu0 0
      %543 = vmatpush1.bf16.msra.mxu0 %v526
      %544 = vmatprep.subr.bf16.mxu0 0
      %545 = vmatpush2.bf16.msra.mxu0 0
      %546 = vmatprep.subr.bf16.mxu0 0
      %547 = vmatpush2.bf16.msra.mxu0 0
      %548 = vmatprep.subr.bf16.mxu0 0
      %549 = vmatpush2.bf16.msra.mxu0 0
      %550 = vmatprep.subr.bf16.mxu0 0
      %551 = vmatpush2.bf16.msra.mxu0 0
      %552 = vmatprep.subr.bf16.mxu0 0
      %553 = vmatpush2.bf16.msra.mxu0 0
      %554 = vmatprep.subr.bf16.mxu0 0
      %555 = vmatpush2.bf16.msra.mxu0 0
      %556 = vmatprep.subr.bf16.mxu0 0
      %557 = vmatpush2.bf16.msra.mxu0 0
      %558 = vmatprep.subr.bf16.mxu0 0
      %559 = vmatpush2.bf16.msra.mxu0 0
      %560 = vmatprep.mubr.bf16.mxu0 0
      %561 = vmatmul.mubr.bf16.gmra.mxu0 %v477
      %v562 = vpop.f32.mrf.mxu0
      %v563 = vadd.f32 0.0, %v562
      %v564 = vpop.f32.mrf.mxu0
      %v565 = vpop.f32.mrf.mxu0
      %v566 = vadd.f32 0.0, %v565
      %v567 = vpop.f32.mrf.mxu0
      %568 = vmatprep.mubr.bf16.mxu0 0
      %569 = vmatmul.mubr.bf16.gmra.mxu0 %v480
      %v570 = vpop.f32.mrf.mxu0
      %v571 = vadd.f32 0.0, %v570
      %v572 = vpop.f32.mrf.mxu0
      %v573 = vpop.f32.mrf.mxu0
      %v574 = vadd.f32 0.0, %v573
      %v575 = vpop.f32.mrf.mxu0
      %576 = vmatprep.mubr.bf16.mxu0 0
      %577 = vmatmul.mubr.bf16.gmra.mxu0 %v483
      %v578 = vpop.f32.mrf.mxu0
      %v579 = vadd.f32 0.0, %v578
      %v580 = vpop.f32.mrf.mxu0
      %v581 = vpop.f32.mrf.mxu0
      %v582 = vadd.f32 0.0, %v581
      %v583 = vpop.f32.mrf.mxu0
      %584 = vmatprep.mubr.bf16.mxu0 0
      %585 = vmatmul.mubr.bf16.gmra.mxu0 %v486
      %v586 = vpop.f32.mrf.mxu0
      %v587 = vadd.f32 0.0, %v586
      %v588 = vpop.f32.mrf.mxu0
      %v589 = vpop.f32.mrf.mxu0
      %v590 = vadd.f32 0.0, %v589
      %v591 = vpop.f32.mrf.mxu0
      %592 = vmatprep.mubr.bf16.mxu0 0
      %593 = vmatmul.mubr.bf16.gmra.mxu0 %v489
      %v594 = vpop.f32.mrf.mxu0
      %v595 = vadd.f32 0.0, %v594
      %v596 = vpop.f32.mrf.mxu0
      %v597 = vpop.f32.mrf.mxu0
      %v598 = vadd.f32 0.0, %v597
      %v599 = vpop.f32.mrf.mxu0
      %600 = vmatprep.mubr.bf16.mxu0 0
      %601 = vmatmul.mubr.bf16.gmra.mxu0 %v492
      %v602 = vpop.f32.mrf.mxu0
      %v603 = vadd.f32 0.0, %v602
      %v604 = vpop.f32.mrf.mxu0
      %v605 = vpop.f32.mrf.mxu0
      %v606 = vadd.f32 0.0, %v605
      %v607 = vpop.f32.mrf.mxu0
      %608 = vmatprep.mubr.bf16.mxu0 0
      %609 = vmatmul.mubr.bf16.gmra.mxu0 %v495
      %v610 = vpop.f32.mrf.mxu0
      %v611 = vadd.f32 0.0, %v610
      %v612 = vpop.f32.mrf.mxu0
      %v613 = vpop.f32.mrf.mxu0
      %v614 = vadd.f32 0.0, %v613
      %v615 = vpop.f32.mrf.mxu0
      %616 = vmatprep.mubr.bf16.mxu0 0
      %617 = vmatmul.mubr.bf16.gmra.mxu0 %v498
      %v618 = vpop.f32.mrf.mxu0
      %v619 = vadd.f32 0.0, %v618
      %v620 = vpop.f32.mrf.mxu0
      %v621 = vpop.f32.mrf.mxu0
      %v622 = vadd.f32 0.0, %v621
      %v623 = vpop.f32.mrf.mxu0
      %624 = vmatprep.mubr.bf16.mxu0 0
      %625 = vmatmul.mubr.bf16.gmra.mxu0 %v501
      %v626 = vpop.f32.mrf.mxu0
      %v627 = vadd.f32 0.0, %v626
      %v628 = vpop.f32.mrf.mxu0
      %v629 = vpop.f32.mrf.mxu0
      %v630 = vadd.f32 0.0, %v629
      %v631 = vpop.f32.mrf.mxu0
      %632 = vmatprep.mubr.bf16.mxu0 0
      %633 = vmatmul.mubr.bf16.gmra.mxu0 %v504
      %v634 = vpop.f32.mrf.mxu0
      %v635 = vadd.f32 0.0, %v634
      %v636 = vpop.f32.mrf.mxu0
      %v637 = vpop.f32.mrf.mxu0
      %v638 = vadd.f32 0.0, %v637
      %v639 = vpop.f32.mrf.mxu0
      %640 = vmatprep.mubr.bf16.mxu0 0
      %641 = vmatmul.mubr.bf16.gmra.mxu0 %v507
      %v642 = vpop.f32.mrf.mxu0
      %v643 = vadd.f32 0.0, %v642
      %v644 = vpop.f32.mrf.mxu0
      %v645 = vpop.f32.mrf.mxu0
      %v646 = vadd.f32 0.0, %v645
      %v647 = vpop.f32.mrf.mxu0
      %648 = vmatprep.mubr.bf16.mxu0 0
      %649 = vmatmul.mubr.bf16.gmra.mxu0 %v510
      %v650 = vpop.f32.mrf.mxu0
      %v651 = vadd.f32 0.0, %v650
      %v652 = vpop.f32.mrf.mxu0
      %v653 = vpop.f32.mrf.mxu0
      %v654 = vadd.f32 0.0, %v653
      %v655 = vpop.f32.mrf.mxu0
      %656 = vmatprep.mubr.bf16.mxu0 0
      %657 = vmatmul.mubr.bf16.gmra.mxu0 %v513
      %v658 = vpop.f32.mrf.mxu0
      %v659 = vadd.f32 0.0, %v658
      %v660 = vpop.f32.mrf.mxu0
      %v661 = vpop.f32.mrf.mxu0
      %v662 = vadd.f32 0.0, %v661
      %v663 = vpop.f32.mrf.mxu0
      %664 = vmatprep.mubr.bf16.mxu0 0
      %665 = vmatmul.mubr.bf16.gmra.mxu0 %v516
      %v666 = vpop.f32.mrf.mxu0
      %v667 = vadd.f32 0.0, %v666
      %v668 = vpop.f32.mrf.mxu0
      %v669 = vpop.f32.mrf.mxu0
      %v670 = vadd.f32 0.0, %v669
      %v671 = vpop.f32.mrf.mxu0
      %672 = vmatprep.mubr.bf16.mxu0 0
      %673 = vmatmul.mubr.bf16.gmra.mxu0 %v519
      %v674 = vpop.f32.mrf.mxu0
      %v675 = vadd.f32 0.0, %v674
      %v676 = vpop.f32.mrf.mxu0
      %v677 = vpop.f32.mrf.mxu0
      %v678 = vadd.f32 0.0, %v677
      %v679 = vpop.f32.mrf.mxu0
      %680 = vmatprep.mubr.bf16.mxu0 0
      %681 = vmatmul.mubr.bf16.gmra.mxu0 %v522
      %v682 = vpop.f32.mrf.mxu0
      %v683 = vadd.f32 0.0, %v682
      %v684 = vpop.f32.mrf.mxu0
      %v685 = vpop.f32.mrf.mxu0
      %v686 = vadd.f32 0.0, %v685
      %v687 = vpop.f32.mrf.mxu0
      %688 = vdwg.mxu0
      %721 = vrot.lane.b32.xlu0 %v563, 8
      %v722 = vpop.permute.xlu0 %721
      %723 = vrot.lane.b32.xlu0 %v566, 8
      %v724 = vpop.permute.xlu0 %723
      %725 = vrot.lane.b32.xlu0 %v571, 8
      %v726 = vpop.permute.xlu0 %725
      %727 = vrot.lane.b32.xlu0 %v574, 8
      %v728 = vpop.permute.xlu0 %727
      %729 = vrot.lane.b32.xlu0 %v579, 8
      %v730 = vpop.permute.xlu0 %729
      %731 = vrot.lane.b32.xlu0 %v582, 8
      %v732 = vpop.permute.xlu0 %731
      %733 = vrot.lane.b32.xlu0 %v587, 8
      %v734 = vpop.permute.xlu0 %733
      %735 = vrot.lane.b32.xlu0 %v590, 8
      %v736 = vpop.permute.xlu0 %735
      %737 = vrot.lane.b32.xlu0 %v595, 8
      %v738 = vpop.permute.xlu0 %737
      %739 = vrot.lane.b32.xlu0 %v598, 8
      %v740 = vpop.permute.xlu0 %739
      %741 = vrot.lane.b32.xlu0 %v603, 8
      %v742 = vpop.permute.xlu0 %741
      %743 = vrot.lane.b32.xlu0 %v606, 8
      %v744 = vpop.permute.xlu0 %743
      %745 = vrot.lane.b32.xlu0 %v611, 8
      %v746 = vpop.permute.xlu0 %745
      %747 = vrot.lane.b32.xlu0 %v614, 8
      %v748 = vpop.permute.xlu0 %747
      %749 = vrot.lane.b32.xlu0 %v619, 8
      %v750 = vpop.permute.xlu0 %749
      %751 = vrot.lane.b32.xlu0 %v622, 8
      %v752 = vpop.permute.xlu0 %751
      %753 = vrot.lane.b32.xlu0 %v627, 8
      %v754 = vpop.permute.xlu0 %753
      %755 = vrot.lane.b32.xlu0 %v630, 8
      %v756 = vpop.permute.xlu0 %755
      %757 = vrot.lane.b32.xlu0 %v635, 8
      %v758 = vpop.permute.xlu0 %757
      %759 = vrot.lane.b32.xlu0 %v638, 8
      %v760 = vpop.permute.xlu0 %759
      %761 = vrot.lane.b32.xlu0 %v643, 8
      %v762 = vpop.permute.xlu0 %761
      %763 = vrot.lane.b32.xlu0 %v646, 8
      %v764 = vpop.permute.xlu0 %763
      %765 = vrot.lane.b32.xlu0 %v651, 8
      %v766 = vpop.permute.xlu0 %765
      %767 = vrot.lane.b32.xlu0 %v654, 8
      %v768 = vpop.permute.xlu0 %767
      %769 = vrot.lane.b32.xlu0 %v659, 8
      %v770 = vpop.permute.xlu0 %769
      %771 = vrot.lane.b32.xlu0 %v662, 8
      %v772 = vpop.permute.xlu0 %771
      %773 = vrot.lane.b32.xlu0 %v667, 8
      %v774 = vpop.permute.xlu0 %773
      %775 = vrot.lane.b32.xlu0 %v670, 8
      %v776 = vpop.permute.xlu0 %775
      %777 = vrot.lane.b32.xlu0 %v675, 8
      %v778 = vpop.permute.xlu0 %777
      %779 = vrot.lane.b32.xlu0 %v678, 8
      %v780 = vpop.permute.xlu0 %779
      %781 = vrot.lane.b32.xlu0 %v683, 8
      %v782 = vpop.permute.xlu0 %781
      %783 = vrot.lane.b32.xlu0 %v686, 8
      %v784 = vpop.permute.xlu0 %783
      %817 = vrot.lane.b32.xlu0 %v563, 16
      %v818 = vpop.permute.xlu0 %817
      %819 = vrot.lane.b32.xlu0 %v566, 16
      %v820 = vpop.permute.xlu0 %819
      %821 = vrot.lane.b32.xlu0 %v571, 16
      %v822 = vpop.permute.xlu0 %821
      %823 = vrot.lane.b32.xlu0 %v574, 16
      %v824 = vpop.permute.xlu0 %823
      %825 = vrot.lane.b32.xlu0 %v579, 16
      %v826 = vpop.permute.xlu0 %825
      %827 = vrot.lane.b32.xlu0 %v582, 16
      %v828 = vpop.permute.xlu0 %827
      %829 = vrot.lane.b32.xlu0 %v587, 16
      %v830 = vpop.permute.xlu0 %829
      %831 = vrot.lane.b32.xlu0 %v590, 16
      %v832 = vpop.permute.xlu0 %831
      %833 = vrot.lane.b32.xlu0 %v595, 16
      %v834 = vpop.permute.xlu0 %833
      %835 = vrot.lane.b32.xlu0 %v598, 16
      %v836 = vpop.permute.xlu0 %835
      %837 = vrot.lane.b32.xlu0 %v603, 16
      %v838 = vpop.permute.xlu0 %837
      %839 = vrot.lane.b32.xlu0 %v606, 16
      %v840 = vpop.permute.xlu0 %839
      %841 = vrot.lane.b32.xlu0 %v611, 16
      %v842 = vpop.permute.xlu0 %841
      %843 = vrot.lane.b32.xlu0 %v614, 16
      %v844 = vpop.permute.xlu0 %843
      %845 = vrot.lane.b32.xlu0 %v619, 16
      %v846 = vpop.permute.xlu0 %845
      %847 = vrot.lane.b32.xlu0 %v622, 16
      %v848 = vpop.permute.xlu0 %847
      %849 = vrot.lane.b32.xlu0 %v627, 16
      %v850 = vpop.permute.xlu0 %849
      %851 = vrot.lane.b32.xlu0 %v630, 16
      %v852 = vpop.permute.xlu0 %851
      %853 = vrot.lane.b32.xlu0 %v635, 16
      %v854 = vpop.permute.xlu0 %853
      %855 = vrot.lane.b32.xlu0 %v638, 16
      %v856 = vpop.permute.xlu0 %855
      %857 = vrot.lane.b32.xlu0 %v643, 16
      %v858 = vpop.permute.xlu0 %857
      %859 = vrot.lane.b32.xlu0 %v646, 16
      %v860 = vpop.permute.xlu0 %859
      %861 = vrot.lane.b32.xlu0 %v651, 16
      %v862 = vpop.permute.xlu0 %861
      %863 = vrot.lane.b32.xlu0 %v654, 16
      %v864 = vpop.permute.xlu0 %863
      %865 = vrot.lane.b32.xlu0 %v659, 16
      %v866 = vpop.permute.xlu0 %865
      %867 = vrot.lane.b32.xlu0 %v662, 16
      %v868 = vpop.permute.xlu0 %867
      %869 = vrot.lane.b32.xlu0 %v667, 16
      %v870 = vpop.permute.xlu0 %869
      %871 = vrot.lane.b32.xlu0 %v670, 16
      %v872 = vpop.permute.xlu0 %871
      %873 = vrot.lane.b32.xlu0 %v675, 16
      %v874 = vpop.permute.xlu0 %873
      %875 = vrot.lane.b32.xlu0 %v678, 16
      %v876 = vpop.permute.xlu0 %875
      %877 = vrot.lane.b32.xlu0 %v683, 16
      %v878 = vpop.permute.xlu0 %877
      %879 = vrot.lane.b32.xlu0 %v686, 16
      %v880 = vpop.permute.xlu0 %879
      %913 = vrot.lane.b32.xlu0 %v563, 24
      %v914 = vpop.permute.xlu0 %913
      %915 = vrot.lane.b32.xlu0 %v566, 24
      %v916 = vpop.permute.xlu0 %915
      %917 = vrot.lane.b32.xlu0 %v571, 24
      %v918 = vpop.permute.xlu0 %917
      %919 = vrot.lane.b32.xlu0 %v574, 24
      %v920 = vpop.permute.xlu0 %919
      %921 = vrot.lane.b32.xlu0 %v579, 24
      %v922 = vpop.permute.xlu0 %921
      %923 = vrot.lane.b32.xlu0 %v582, 24
      %v924 = vpop.permute.xlu0 %923
      %925 = vrot.lane.b32.xlu0 %v587, 24
      %v926 = vpop.permute.xlu0 %925
      %927 = vrot.lane.b32.xlu0 %v590, 24
      %v928 = vpop.permute.xlu0 %927
      %929 = vrot.lane.b32.xlu0 %v595, 24
      %v930 = vpop.permute.xlu0 %929
      %931 = vrot.lane.b32.xlu0 %v598, 24
      %v932 = vpop.permute.xlu0 %931
      %933 = vrot.lane.b32.xlu0 %v603, 24
      %v934 = vpop.permute.xlu0 %933
      %935 = vrot.lane.b32.xlu0 %v606, 24
      %v936 = vpop.permute.xlu0 %935
      %937 = vrot.lane.b32.xlu0 %v611, 24
      %v938 = vpop.permute.xlu0 %937
      %939 = vrot.lane.b32.xlu0 %v614, 24
      %v940 = vpop.permute.xlu0 %939
      %941 = vrot.lane.b32.xlu0 %v619, 24
      %v942 = vpop.permute.xlu0 %941
      %943 = vrot.lane.b32.xlu0 %v622, 24
      %v944 = vpop.permute.xlu0 %943
      %945 = vrot.lane.b32.xlu0 %v627, 24
      %v946 = vpop.permute.xlu0 %945
      %947 = vrot.lane.b32.xlu0 %v630, 24
      %v948 = vpop.permute.xlu0 %947
      %949 = vrot.lane.b32.xlu0 %v635, 24
      %v950 = vpop.permute.xlu0 %949
      %951 = vrot.lane.b32.xlu0 %v638, 24
      %v952 = vpop.permute.xlu0 %951
      %953 = vrot.lane.b32.xlu0 %v643, 24
      %v954 = vpop.permute.xlu0 %953
      %955 = vrot.lane.b32.xlu0 %v646, 24
      %v956 = vpop.permute.xlu0 %955
      %957 = vrot.lane.b32.xlu0 %v651, 24
      %v958 = vpop.permute.xlu0 %957
      %959 = vrot.lane.b32.xlu0 %v654, 24
      %v960 = vpop.permute.xlu0 %959
      %961 = vrot.lane.b32.xlu0 %v659, 24
      %v962 = vpop.permute.xlu0 %961
      %963 = vrot.lane.b32.xlu0 %v662, 24
      %v964 = vpop.permute.xlu0 %963
      %965 = vrot.lane.b32.xlu0 %v667, 24
      %v966 = vpop.permute.xlu0 %965
      %967 = vrot.lane.b32.xlu0 %v670, 24
      %v968 = vpop.permute.xlu0 %967
      %969 = vrot.lane.b32.xlu0 %v675, 24
      %v970 = vpop.permute.xlu0 %969
      %971 = vrot.lane.b32.xlu0 %v678, 24
      %v972 = vpop.permute.xlu0 %971
      %973 = vrot.lane.b32.xlu0 %v683, 24
      %v974 = vpop.permute.xlu0 %973
      %975 = vrot.lane.b32.xlu0 %v686, 24
      %v976 = vpop.permute.xlu0 %975
      %vm1009 = vcmask 64512
      %v1010 = vsel %vm1009, %v563, %v722
      %v1011 = vsel %vm1009, %v566, %v724
      %v1012 = vsel %vm1009, %v571, %v726
      %v1013 = vsel %vm1009, %v574, %v728
      %v1014 = vsel %vm1009, %v579, %v730
      %v1015 = vsel %vm1009, %v582, %v732
      %v1016 = vsel %vm1009, %v587, %v734
      %v1017 = vsel %vm1009, %v590, %v736
      %v1018 = vsel %vm1009, %v595, %v738
      %v1019 = vsel %vm1009, %v598, %v740
      %v1020 = vsel %vm1009, %v603, %v742
      %v1021 = vsel %vm1009, %v606, %v744
      %v1022 = vsel %vm1009, %v611, %v746
      %v1023 = vsel %vm1009, %v614, %v748
      %v1024 = vsel %vm1009, %v619, %v750
      %v1025 = vsel %vm1009, %v622, %v752
      %v1026 = vsel %vm1009, %v627, %v754
      %v1027 = vsel %vm1009, %v630, %v756
      %v1028 = vsel %vm1009, %v635, %v758
      %v1029 = vsel %vm1009, %v638, %v760
      %v1030 = vsel %vm1009, %v643, %v762
      %v1031 = vsel %vm1009, %v646, %v764
      %v1032 = vsel %vm1009, %v651, %v766
      %v1033 = vsel %vm1009, %v654, %v768
      %v1034 = vsel %vm1009, %v659, %v770
      %v1035 = vsel %vm1009, %v662, %v772
      %v1036 = vsel %vm1009, %v667, %v774
      %v1037 = vsel %vm1009, %v670, %v776
      %v1038 = vsel %vm1009, %v675, %v778
      %v1039 = vsel %vm1009, %v678, %v780
      %v1040 = vsel %vm1009, %v683, %v782
      %v1041 = vsel %vm1009, %v686, %v784
      %vm1042 = vcmask 130048
      %v1043 = vsel %vm1042, %v1010, %v818
      %v1044 = vsel %vm1042, %v1011, %v820
      %v1045 = vsel %vm1042, %v1012, %v822
      %v1046 = vsel %vm1042, %v1013, %v824
      %v1047 = vsel %vm1042, %v1014, %v826
      %v1048 = vsel %vm1042, %v1015, %v828
      %v1049 = vsel %vm1042, %v1016, %v830
      %v1050 = vsel %vm1042, %v1017, %v832
      %v1051 = vsel %vm1042, %v1018, %v834
      %v1052 = vsel %vm1042, %v1019, %v836
      %v1053 = vsel %vm1042, %v1020, %v838
      %v1054 = vsel %vm1042, %v1021, %v840
      %v1055 = vsel %vm1042, %v1022, %v842
      %v1056 = vsel %vm1042, %v1023, %v844
      %v1057 = vsel %vm1042, %v1024, %v846
      %v1058 = vsel %vm1042, %v1025, %v848
      %v1059 = vsel %vm1042, %v1026, %v850
      %v1060 = vsel %vm1042, %v1027, %v852
      %v1061 = vsel %vm1042, %v1028, %v854
      %v1062 = vsel %vm1042, %v1029, %v856
      %v1063 = vsel %vm1042, %v1030, %v858
      %v1064 = vsel %vm1042, %v1031, %v860
      %v1065 = vsel %vm1042, %v1032, %v862
      %v1066 = vsel %vm1042, %v1033, %v864
      %v1067 = vsel %vm1042, %v1034, %v866
      %v1068 = vsel %vm1042, %v1035, %v868
      %v1069 = vsel %vm1042, %v1036, %v870
      %v1070 = vsel %vm1042, %v1037, %v872
      %v1071 = vsel %vm1042, %v1038, %v874
      %v1072 = vsel %vm1042, %v1039, %v876
      %v1073 = vsel %vm1042, %v1040, %v878
      %v1074 = vsel %vm1042, %v1041, %v880
      %vm1075 = vcmask 195584
      %v1076 = vsel %vm1075, %v1043, %v914
      %v1077 = vsel %vm1075, %v1044, %v916
      %v1078 = vsel %vm1075, %v1045, %v918
      %v1079 = vsel %vm1075, %v1046, %v920
      %v1080 = vsel %vm1075, %v1047, %v922
      %v1081 = vsel %vm1075, %v1048, %v924
      %v1082 = vsel %vm1075, %v1049, %v926
      %v1083 = vsel %vm1075, %v1050, %v928
      %v1084 = vsel %vm1075, %v1051, %v930
      %v1085 = vsel %vm1075, %v1052, %v932
      %v1086 = vsel %vm1075, %v1053, %v934
      %v1087 = vsel %vm1075, %v1054, %v936
      %v1088 = vsel %vm1075, %v1055, %v938
      %v1089 = vsel %vm1075, %v1056, %v940
      %v1090 = vsel %vm1075, %v1057, %v942
      %v1091 = vsel %vm1075, %v1058, %v944
      %v1092 = vsel %vm1075, %v1059, %v946
      %v1093 = vsel %vm1075, %v1060, %v948
      %v1094 = vsel %vm1075, %v1061, %v950
      %v1095 = vsel %vm1075, %v1062, %v952
      %v1096 = vsel %vm1075, %v1063, %v954
      %v1097 = vsel %vm1075, %v1064, %v956
      %v1098 = vsel %vm1075, %v1065, %v958
      %v1099 = vsel %vm1075, %v1066, %v960
      %v1100 = vsel %vm1075, %v1067, %v962
      %v1101 = vsel %vm1075, %v1068, %v964
      %v1102 = vsel %vm1075, %v1069, %v966
      %v1103 = vsel %vm1075, %v1070, %v968
      %v1104 = vsel %vm1075, %v1071, %v970
      %v1105 = vsel %vm1075, %v1072, %v972
      %v1106 = vsel %vm1075, %v1073, %v974
      %v1107 = vsel %vm1075, %v1074, %v976
      %v1108 = vadd.f32 %v330, %v1076
      %v1109 = vadd.f32 %v331, %v1077
      %v1110 = vadd.f32 %v332, %v1078
      %v1111 = vadd.f32 %v333, %v1079
      %v1112 = vadd.f32 %v334, %v1080
      %v1113 = vadd.f32 %v335, %v1081
      %v1114 = vadd.f32 %v336, %v1082
      %v1115 = vadd.f32 %v337, %v1083
      %v1116 = vadd.f32 %v338, %v1084
      %v1117 = vadd.f32 %v339, %v1085
      %v1118 = vadd.f32 %v340, %v1086
      %v1119 = vadd.f32 %v341, %v1087
      %v1120 = vadd.f32 %v342, %v1088
      %v1121 = vadd.f32 %v343, %v1089
      %v1122 = vadd.f32 %v344, %v1090
      %v1123 = vadd.f32 %v345, %v1091
      %v1124 = vadd.f32 %v346, %v1092
      %v1125 = vadd.f32 %v347, %v1093
      %v1126 = vadd.f32 %v348, %v1094
      %v1127 = vadd.f32 %v349, %v1095
      %v1128 = vadd.f32 %v350, %v1096
      %v1129 = vadd.f32 %v351, %v1097
      %v1130 = vadd.f32 %v352, %v1098
      %v1131 = vadd.f32 %v353, %v1099
      %v1132 = vadd.f32 %v354, %v1100
      %v1133 = vadd.f32 %v355, %v1101
      %v1134 = vadd.f32 %v356, %v1102
      %v1135 = vadd.f32 %v357, %v1103
      %v1136 = vadd.f32 %v358, %v1104
      %v1137 = vadd.f32 %v359, %v1105
      %v1138 = vadd.f32 %v360, %v1106
      %v1139 = vadd.f32 %v361, %v1107
      %v1140 = vmax.f32 %v1108, 0.0
      %v1141 = vmax.f32 %v1109, 0.0
      %v1142 = vmax.f32 %v1110, 0.0
      %v1143 = vmax.f32 %v1111, 0.0
      %v1144 = vmax.f32 %v1112, 0.0
      %v1145 = vmax.f32 %v1113, 0.0
      %v1146 = vmax.f32 %v1114, 0.0
      %v1147 = vmax.f32 %v1115, 0.0
      %v1148 = vmax.f32 %v1116, 0.0
      %v1149 = vmax.f32 %v1117, 0.0
      %v1150 = vmax.f32 %v1118, 0.0
      %v1151 = vmax.f32 %v1119, 0.0
      %v1152 = vmax.f32 %v1120, 0.0
      %v1153 = vmax.f32 %v1121, 0.0
      %v1154 = vmax.f32 %v1122, 0.0
      %v1155 = vmax.f32 %v1123, 0.0
      %v1156 = vmax.f32 %v1124, 0.0
      %v1157 = vmax.f32 %v1125, 0.0
      %v1158 = vmax.f32 %v1126, 0.0
      %v1159 = vmax.f32 %v1127, 0.0
      %v1160 = vmax.f32 %v1128, 0.0
      %v1161 = vmax.f32 %v1129, 0.0
      %v1162 = vmax.f32 %v1130, 0.0
      %v1163 = vmax.f32 %v1131, 0.0
      %v1164 = vmax.f32 %v1132, 0.0
      %v1165 = vmax.f32 %v1133, 0.0
      %v1166 = vmax.f32 %v1134, 0.0
      %v1167 = vmax.f32 %v1135, 0.0
      %v1168 = vmax.f32 %v1136, 0.0
      %v1169 = vmax.f32 %v1137, 0.0
      %v1170 = vmax.f32 %v1138, 0.0
      %v1171 = vmax.f32 %v1139, 0.0
      %vm1172 = vcmask 261120
      %1173 = vst.msk [vmem:[%s221] sm:$0xff] %vm1172, %v1140
      %1174 = vst.msk [vmem:[%s221 + $0x8] sm:$0xff] %vm1172, %v1141
      %1175 = vst.msk [vmem:[%s221 + $0x10] sm:$0xff] %vm1172, %v1142
      %1176 = vst.msk [vmem:[%s221 + $0x18] sm:$0xff] %vm1172, %v1143
      %1177 = vst.msk [vmem:[%s221 + $0x20] sm:$0xff] %vm1172, %v1144
      %1178 = vst.msk [vmem:[%s221 + $0x28] sm:$0xff] %vm1172, %v1145
      %1179 = vst.msk [vmem:[%s221 + $0x30] sm:$0xff] %vm1172, %v1146
      %1180 = vst.msk [vmem:[%s221 + $0x38] sm:$0xff] %vm1172, %v1147
      %1181 = vst.msk [vmem:[%s221 + $0x40] sm:$0xff] %vm1172, %v1148
      %1182 = vst.msk [vmem:[%s221 + $0x48] sm:$0xff] %vm1172, %v1149
      %1183 = vst.msk [vmem:[%s221 + $0x50] sm:$0xff] %vm1172, %v1150
      %1184 = vst.msk [vmem:[%s221 + $0x58] sm:$0xff] %vm1172, %v1151
      %1185 = vst.msk [vmem:[%s221 + $0x60] sm:$0xff] %vm1172, %v1152
      %1186 = vst.msk [vmem:[%s221 + $0x68] sm:$0xff] %vm1172, %v1153
      %1187 = vst.msk [vmem:[%s221 + $0x70] sm:$0xff] %vm1172, %v1154
      %1188 = vst.msk [vmem:[%s221 + $0x78] sm:$0xff] %vm1172, %v1155
      %1189 = vst.msk [vmem:[%s221 + $0x80] sm:$0xff] %vm1172, %v1156
      %1190 = vst.msk [vmem:[%s221 + $0x88] sm:$0xff] %vm1172, %v1157
      %1191 = vst.msk [vmem:[%s221 + $0x90] sm:$0xff] %vm1172, %v1158
      %1192 = vst.msk [vmem:[%s221 + $0x98] sm:$0xff] %vm1172, %v1159
      %1193 = vst.msk [vmem:[%s221 + $0xa0] sm:$0xff] %vm1172, %v1160
      %1194 = vst.msk [vmem:[%s221 + $0xa8] sm:$0xff] %vm1172, %v1161
      %1195 = vst.msk [vmem:[%s221 + $0xb0] sm:$0xff] %vm1172, %v1162
      %1196 = vst.msk [vmem:[%s221 + $0xb8] sm:$0xff] %vm1172, %v1163
      %1197 = vst.msk [vmem:[%s221 + $0xc0] sm:$0xff] %vm1172, %v1164
      %1198 = vst.msk [vmem:[%s221 + $0xc8] sm:$0xff] %vm1172, %v1165
      %1199 = vst.msk [vmem:[%s221 + $0xd0] sm:$0xff] %vm1172, %v1166
      %1200 = vst.msk [vmem:[%s221 + $0xd8] sm:$0xff] %vm1172, %v1167
      %1201 = vst.msk [vmem:[%s221 + $0xe0] sm:$0xff] %vm1172, %v1168
      %1202 = vst.msk [vmem:[%s221 + $0xe8] sm:$0xff] %vm1172, %v1169
      %1203 = vst.msk [vmem:[%s221 + $0xf0] sm:$0xff] %vm1172, %v1170
      %1204 = vst.msk [vmem:[%s221 + $0xf8] sm:$0xff] %vm1172, %v1171
      %s1205 = smul.u32 32, %s15
      %p1206 = scmp.lt.s32.totalorder %s1205, 63
      %s1207 = scalar_select %p1206, %s1205, 63
      %s1208 = smul.addr %s1207, 8
      %s1209 = scalar_lea.vmem %s4, %s1208
      // Predicated region
      $region37: #{up_layer_residual_forward.5} parent=35 // pred_check
        %p1210 = pneg %p127
      $region38: #{up_layer_residual_forward.5} parent=35 // pred_check_branch
        %1212 = sbr.rel (%p1210) target = $region40
      $region39: #{up_layer_residual_forward.5} parent=35 // pred_region
        %s1213 = smul.u32 32, %s15
      $region40: #{up_layer_residual_forward.5} parent=35 // pred_fallthru
        _
    $region36: #{up_layer_residual_forward.5} parent=5 // pred_fallthru
      _
    %p1214 = scmp.le.s32.totalorder 2, %s10
    // Predicated region
    $region41: #{up_layer_residual_forward.5} parent=5 // pred_check
      %p1215 = pneg %p1214
    $region42: #{up_layer_residual_forward.5} parent=5 // pred_check_branch
      %1217 = sbr.rel (%p1215) target = $region44
    $region43: #{up_layer_residual_forward.5} parent=5 // pred_region
      %s1218 = ssub.s32 %s10, 2
      // Predicated region
      $region45: #{up_layer_residual_forward.5} parent=43 // pred_check
        %p1219 = pneg %p133
      $region46: #{up_layer_residual_forward.5} parent=43 // pred_check_branch
        %1221 = sbr.rel (%p1219) target = $region48
      $region47: #{up_layer_residual_forward.5} parent=43 // pred_region
        %s1222 = smul.u32 32, %s16
        %p1223 = scmp.lt.s32.totalorder %s1222, 63
        %s1224 = scalar_select %p1223, %s1222, 63
        %s1225 = smul.addr %s1224, 8
        %s1226 = scalar_lea.vmem %s4, %s1225
      $region48: #{up_layer_residual_forward.5} parent=43 // pred_fallthru
        _
    $region44: #{up_layer_residual_forward.5} parent=5 // pred_fallthru
      _
  $region6: #{up_layer_residual_forward.5} parent=0 // loop_footer
    %s14 = sadd.s32 1, %s10
  $region7: #{up_layer_residual_forward.5} parent=0 // loop_footer_branch
    %9 = sbr.rel target = $region3
  $region8: #{up_layer_residual_forward.5} parent=0 // loop_exit
    _

// kernel: up_layer_residual_forward.4
$region0: #{up_layer_residual_forward.4}
  #allocation0 [shape = 'u32[]', space=smem, size = 0x4, offset = 0x4, fixed_abs, tag = 'smem constant byte address 0x4 - core index']
  #allocation1 [shape = 'u32[144,128]{1,0:T(1,128)}', space=vmem, size = 0x12000, scoped, tag = 'internal scratch']
  #allocation2 [shape = 'f32[10,18,32]{2,1,0:T(8,128)}', space=vmem, size = 0x1e000, scoped, tag = 'scratch operand']
  %s0 = inlined_call_operand.vmem [shape: bf16[2,16,16,32], index: 0, kind: input, shape index: {}, may-alias: {0,1,2}]
  %s1 = inlined_call_operand.vmem [shape: bf16[2,16,16,32], index: 1, kind: input, shape index: {}, may-alias: {0,1,2}]
  %s2 = inlined_call_operand.vmem [shape: bf16[2,16,16,32], index: 2, kind: input, shape index: {}, may-alias: {0,1,2}]
  %s3 = inlined_call_operand.vmem [shape: f32[2,32], index: 3, kind: input, shape index: {}]
  %s4 = inlined_call_operand.vmem [shape: bf16[9,32,32], index: 4, kind: input, shape index: {}]
  %s5 = inlined_call_operand.vmem [shape: bf16[2,16,16,32], index: 5, kind: output, shape index: {0}]
  %s6 = inlined_call_operand.vmem [shape: f32[2,2,2,32], index: 6, kind: output, shape index: {1}]
  %7 = xla_tuple %s5, %s6
  %s8 = sld [smem:[#allocation0]]
  $region61: #{up_layer_residual_forward.4} parent=0
    _
  %s10 = ssub.s32 1, %s8
  %s11 = scalar_select 0, %s10, %s8
  loop: start=0, step=1, limit=6
  $region2: #{up_layer_residual_forward.4} parent=0 // loop_pre_header
    _
  $region3: #{up_layer_residual_forward.4} parent=0 // loop_header
    %s13 = sphi 0, %s17
    %p14 = scmp.ge.s32.totalorder %s13, 6
    %s20 = sphi 0, %s32
    %s21 = sphi 0, %s28
    %s22 = sphi 0, %s20
    %s23 = sphi 0, %s21
    %s24 = sphi 0, %s22
    %s25 = sphi 0, %s23
    %s37 = sphi 0, %s39
    %s40 = sphi 0, %s37
    %s41 = sphi 0, %s40
    %s57 = sphi 0, %s41
    %s73 = sphi 0, %s75
    %s76 = sphi 0, %s73
    %s77 = sphi 0, %s76
    %s93 = sphi 0, %s77
    %s109 = sphi 0, %s111
    %s112 = sphi 0, %s109
    %s113 = sphi 0, %s112
    %s129 = sphi 0, %s113
    %s133 = sphi 0, %s133
    %s135 = sphi 0, %s133
    %s136 = sphi 0, %s135
    %s150 = sphi 0, %s136
    %s154 = sphi 0, %s154
    %s156 = sphi 0, %s154
    %s157 = sphi 0, %s156
    %s171 = sphi 0, %s157
    %s179 = sphi 0, %s181
    %s182 = sphi 0, %s179
    %s183 = sphi 0, %s182
    %s199 = sphi 0, %s183
    %s207 = sphi 0, %s209
    %s210 = sphi 0, %s207
    %s211 = sphi 0, %s210
    %s227 = sphi 0, %s211
  $region4: #{up_layer_residual_forward.4} parent=0 // loop_header_branch
    %16 = sbr.rel (%p14) target = $region8
  $region5: #{up_layer_residual_forward.4} parent=0 // loop_body
    %s18 = ssub.s32 %s13, 1
    %s19 = ssub.s32 %s13, 2
    %s26 = sadd.s32 1, %s21
    %p27 = scmp.ge.s32.totalorder %s26, 2
    %s28 = scalar_select %p27, 0, %s26
    %s29 = sadd.s32 1, %s20
    %s30 = scalar_select %p27, %s29, %s20
    %p31 = scmp.ge.s32.totalorder %s30, 2
    %s32 = scalar_select %p31, 0, %s30
    %s33 = ssub.s32 %s20, %s32
    %s34 = ssub.s32 %s21, %s28
    %s35 = sor.u32 %s33, %s34
    %p36 = scmp.eq.s32.totalorder %s35, 0
    %s38 = sadd.s32 %s37, 1
    %s39 = scalar_select %p36, %s37, %s38
    %p42 = pneg %p36
    %p43 = scmp.eq.s32.totalorder %s13, 3
    %p44 = por %p42, %p43
    %p45 = scmp.ne.s32.totalorder %s37, %s40
    %p46 = scmp.eq.s32.totalorder %s13, 0
    %p47 = por %p45, %p46
    %p48 = scmp.ne.s32.totalorder %s37, %s40
    %p49 = scmp.eq.s32.totalorder %s18, 3
    %p50 = por %p48, %p49
    %p51 = scmp.ne.s32.totalorder %s40, %s41
    %p52 = scmp.eq.s32.totalorder %s18, 0
    %p53 = por %p51, %p52
    %p54 = scmp.ne.s32.totalorder %s40, %s41
    %p55 = scmp.eq.s32.totalorder %s19, 3
    %p56 = por %p54, %p55
    %p58 = scmp.ne.s32.totalorder %s41, %s57
    %p59 = scmp.eq.s32.totalorder %s19, 0
    %p60 = por %p58, %p59
    %s61 = smul.u32 %s21, 8
    %s62 = ssub.s32 %s61, 1
    %p63 = scmp.gt.s32.totalorder %s62, 0
    %s64 = scalar_select %p63, %s62, 0
    %s65 = smul.u32 %s28, 8
    %s66 = ssub.s32 %s65, 1
    %p67 = scmp.gt.s32.totalorder %s66, 0
    %s68 = scalar_select %p67, %s66, 0
    %s69 = ssub.s32 %s20, %s32
    %s70 = ssub.s32 %s64, %s68
    %s71 = sor.u32 %s69, %s70
    %p72 = scmp.eq.s32.totalorder %s71, 0
    %s74 = sadd.s32 %s73, 1
    %s75 = scalar_select %p72, %s73, %s74
    %p78 = pneg %p72
    %p79 = scmp.eq.s32.totalorder %s13, 3
    %p80 = por %p78, %p79
    %p81 = scmp.ne.s32.totalorder %s73, %s76
    %p82 = scmp.eq.s32.totalorder %s13, 0
    %p83 = por %p81, %p82
    %p84 = scmp.ne.s32.totalorder %s73, %s76
    %p85 = scmp.eq.s32.totalorder %s18, 3
    %p86 = por %p84, %p85
    %p87 = scmp.ne.s32.totalorder %s76, %s77
    %p88 = scmp.eq.s32.totalorder %s18, 0
    %p89 = por %p87, %p88
    %p90 = scmp.ne.s32.totalorder %s76, %s77
    %p91 = scmp.eq.s32.totalorder %s19, 3
    %p92 = por %p90, %p91
    %p94 = scmp.ne.s32.totalorder %s77, %s93
    %p95 = scmp.eq.s32.totalorder %s19, 0
    %p96 = por %p94, %p95
    %s97 = smul.u32 %s21, 8
    %s98 = sadd.s32 %s97, 8
    %p99 = scmp.lt.s32.totalorder %s98, 15
    %s100 = scalar_select %p99, %s98, 15
    %s101 = smul.u32 %s28, 8
    %s102 = sadd.s32 %s101, 8
    %p103 = scmp.lt.s32.totalorder %s102, 15
    %s104 = scalar_select %p103, %s102, 15
    %s105 = ssub.s32 %s20, %s32
    %s106 = ssub.s32 %s100, %s104
    %s107 = sor.u32 %s105, %s106
    %p108 = scmp.eq.s32.totalorder %s107, 0
    %s110 = sadd.s32 %s109, 1
    %s111 = scalar_select %p108, %s109, %s110
    %p114 = pneg %p108
    %p115 = scmp.eq.s32.totalorder %s13, 3
    %p116 = por %p114, %p115
    %p117 = scmp.ne.s32.totalorder %s109, %s112
    %p118 = scmp.eq.s32.totalorder %s13, 0
    %p119 = por %p117, %p118
    %p120 = scmp.ne.s32.totalorder %s109, %s112
    %p121 = scmp.eq.s32.totalorder %s18, 3
    %p122 = por %p120, %p121
    %p123 = scmp.ne.s32.totalorder %s112, %s113
    %p124 = scmp.eq.s32.totalorder %s18, 0
    %p125 = por %p123, %p124
    %p126 = scmp.ne.s32.totalorder %s112, %s113
    %p127 = scmp.eq.s32.totalorder %s19, 3
    %p128 = por %p126, %p127
    %p130 = scmp.ne.s32.totalorder %s113, %s129
    %p131 = scmp.eq.s32.totalorder %s19, 0
    %p132 = por %p130, %p131
    %s134 = sadd.s32 %s133, 1
    %p137 = scmp.eq.s32.totalorder %s13, 3
    %p138 = scmp.ne.s32.totalorder %s133, %s135
    %p139 = scmp.eq.s32.totalorder %s13, 0
    %p140 = por %p138, %p139
    %p141 = scmp.ne.s32.totalorder %s133, %s135
    %p142 = scmp.eq.s32.totalorder %s18, 3
    %p143 = por %p141, %p142
    %p144 = scmp.ne.s32.totalorder %s135, %s136
    %p145 = scmp.eq.s32.totalorder %s18, 0
    %p146 = por %p144, %p145
    %p147 = scmp.ne.s32.totalorder %s135, %s136
    %p148 = scmp.eq.s32.totalorder %s19, 3
    %p149 = por %p147, %p148
    %p151 = scmp.ne.s32.totalorder %s136, %s150
    %p152 = scmp.eq.s32.totalorder %s19, 0
    %p153 = por %p151, %p152
    %s155 = sadd.s32 %s154, 1
    %p158 = scmp.eq.s32.totalorder %s13, 3
    %p159 = scmp.ne.s32.totalorder %s154, %s156
    %p160 = scmp.eq.s32.totalorder %s13, 0
    %p161 = por %p159, %p160
    %p162 = scmp.ne.s32.totalorder %s154, %s156
    %p163 = scmp.eq.s32.totalorder %s18, 3
    %p164 = por %p162, %p163
    %p165 = scmp.ne.s32.totalorder %s156, %s157
    %p166 = scmp.eq.s32.totalorder %s18, 0
    %p167 = por %p165, %p166
    %p168 = scmp.ne.s32.totalorder %s156, %s157
    %p169 = scmp.eq.s32.totalorder %s19, 3
    %p170 = por %p168, %p169
    %p172 = scmp.ne.s32.totalorder %s157, %s171
    %p173 = scmp.eq.s32.totalorder %s19, 0
    %p174 = por %p172, %p173
    %s175 = ssub.s32 %s20, %s32
    %s176 = ssub.s32 %s21, %s28
    %s177 = sor.u32 %s175, %s176
    %p178 = scmp.eq.s32.totalorder %s177, 0
    %s180 = sadd.s32 %s179, 1
    %s181 = scalar_select %p178, %s179, %s180
    %p184 = pneg %p178
    %p185 = scmp.eq.s32.totalorder %s13, 3
    %p186 = por %p184, %p185
    %p187 = scmp.ne.s32.totalorder %s179, %s182
    %p188 = scmp.eq.s32.totalorder %s13, 0
    %p189 = por %p187, %p188
    %p190 = scmp.ne.s32.totalorder %s179, %s182
    %p191 = scmp.eq.s32.totalorder %s18, 3
    %p192 = por %p190, %p191
    %p193 = scmp.ne.s32.totalorder %s182, %s183
    %p194 = scmp.eq.s32.totalorder %s18, 0
    %p195 = por %p193, %p194
    %p196 = scmp.ne.s32.totalorder %s182, %s183
    %p197 = scmp.eq.s32.totalorder %s19, 3
    %p198 = por %p196, %p197
    %p200 = scmp.ne.s32.totalorder %s183, %s199
    %p201 = scmp.eq.s32.totalorder %s19, 0
    %p202 = por %p200, %p201
    %s203 = ssub.s32 %s20, %s32
    %s204 = ssub.s32 %s21, %s28
    %s205 = sor.u32 %s203, %s204
    %p206 = scmp.eq.s32.totalorder %s205, 0
    %s208 = sadd.s32 %s207, 1
    %s209 = scalar_select %p206, %s207, %s208
    %p212 = pneg %p206
    %p213 = scmp.eq.s32.totalorder %s13, 3
    %p214 = por %p212, %p213
    %p215 = scmp.ne.s32.totalorder %s207, %s210
    %p216 = scmp.eq.s32.totalorder %s13, 0
    %p217 = por %p215, %p216
    %p218 = scmp.ne.s32.totalorder %s207, %s210
    %p219 = scmp.eq.s32.totalorder %s18, 3
    %p220 = por %p218, %p219
    %p221 = scmp.ne.s32.totalorder %s210, %s211
    %p222 = scmp.eq.s32.totalorder %s18, 0
    %p223 = por %p221, %p222
    %p224 = scmp.ne.s32.totalorder %s210, %s211
    %p225 = scmp.eq.s32.totalorder %s19, 3
    %p226 = por %p224, %p225
    %p228 = scmp.ne.s32.totalorder %s211, %s227
    %p229 = scmp.eq.s32.totalorder %s19, 0
    %p230 = por %p228, %p229
    %p231 = scmp.le.s32.totalorder 1, %s13
    %p232 = scmp.lt.s32.totalorder %s13, 5
    %p233 = pnand %p231, %p232
    %p234 = pneg %p233
    // Predicated region
    $region9: #{up_layer_residual_forward.4} parent=5 // pred_check
      _
    $region10: #{up_layer_residual_forward.4} parent=5 // pred_check_branch
      %236 = sbr.rel (%p233) target = $region12
    $region11: #{up_layer_residual_forward.4} parent=5 // pred_region
      %s237 = ssub.s32 %s13, 1
      // Predicated region
      $region13: #{up_layer_residual_forward.4} parent=11 // pred_check
        %p238 = pneg %p146
      $region14: #{up_layer_residual_forward.4} parent=11 // pred_check_branch
        %240 = sbr.rel (%p238) target = $region16
      $region15: #{up_layer_residual_forward.4} parent=11 // pred_region
        _
      $region16: #{up_layer_residual_forward.4} parent=11 // pred_fallthru
        _
      // Predicated region
      $region17: #{up_layer_residual_forward.4} parent=11 // pred_check
        %p241 = pneg %p167
      $region18: #{up_layer_residual_forward.4} parent=11 // pred_check_branch
        %243 = sbr.rel (%p241) target = $region20
      $region19: #{up_layer_residual_forward.4} parent=11 // pred_region
        _
      $region20: #{up_layer_residual_forward.4} parent=11 // pred_fallthru
        _
    $region12: #{up_layer_residual_forward.4} parent=5 // pred_fallthru
      _
    %p244 = scmp.lt.s32.totalorder %s13, 4
    // Predicated region
    $region21: #{up_layer_residual_forward.4} parent=5 // pred_check
      %p245 = pneg %p244
    $region22: #{up_layer_residual_forward.4} parent=5 // pred_check_branch
      %247 = sbr.rel (%p245) target = $region24
    $region23: #{up_layer_residual_forward.4} parent=5 // pred_region
      // Predicated region
      $region25: #{up_layer_residual_forward.4} parent=23 // pred_check
        %p248 = pneg %p47
      $region26: #{up_layer_residual_forward.4} parent=23 // pred_check_branch
        %250 = sbr.rel (%p248) target = $region28
      $region27: #{up_layer_residual_forward.4} parent=23 // pred_region
        %s251 = smul.u32 8, %s21
        %p252 = scmp.lt.s32.totalorder %s20, 1
        %s253 = scalar_select %p252, %s20, 1
        %p254 = scmp.lt.s32.totalorder %s251, 15
        %s255 = scalar_select %p254, %s251, 15
        %s256 = smul.addr %s255, 2
        %s257 = smul.addr %s253, 32
        %s258 = sadd.s32 %s256, %s257
        %s259 = smul.addr %s258, 4
        %s260 = scalar_lea.vmem %s0, %s259
        %s261 = smul.u32 8, %s21
      $region28: #{up_layer_residual_forward.4} parent=23 // pred_fallthru
        _
      // Predicated region
      $region29: #{up_layer_residual_forward.4} parent=23 // pred_check
        %p262 = pneg %p83
      $region30: #{up_layer_residual_forward.4} parent=23 // pred_check_branch
        %264 = sbr.rel (%p262) target = $region32
      $region31: #{up_layer_residual_forward.4} parent=23 // pred_region
        %s265 = smul.u32 %s21, 8
        %s266 = ssub.s32 %s265, 1
        %p267 = scmp.gt.s32.totalorder %s266, 0
        %s268 = scalar_select %p267, %s266, 0
        %p269 = scmp.lt.s32.totalorder %s20, 1
        %s270 = scalar_select %p269, %s20, 1
        %p271 = scmp.lt.s32.totalorder %s268, 15
        %s272 = scalar_select %p271, %s268, 15
        %s273 = smul.addr %s272, 2
        %s274 = smul.addr %s270, 32
        %s275 = sadd.s32 %s273, %s274
        %s276 = smul.addr %s275, 4
        %s277 = scalar_lea.vmem %s1, %s276
        %s278 = smul.u32 %s21, 8
        %s279 = ssub.s32 %s278, 1
        %p280 = scmp.gt.s32.totalorder %s279, 0
        %s281 = scalar_select %p280, %s279, 0
      $region32: #{up_layer_residual_forward.4} parent=23 // pred_fallthru
        _
      // Predicated region
      $region33: #{up_layer_residual_forward.4} parent=23 // pred_check
        %p282 = pneg %p119
      $region34: #{up_layer_residual_forward.4} parent=23 // pred_check_branch
        %284 = sbr.rel (%p282) target = $region36
      $region35: #{up_layer_residual_forward.4} parent=23 // pred_region
        %s285 = smul.u32 %s21, 8
        %s286 = sadd.s32 %s285, 8
        %p287 = scmp.lt.s32.totalorder %s286, 15
        %s288 = scalar_select %p287, %s286, 15
        %p289 = scmp.lt.s32.totalorder %s20, 1
        %s290 = scalar_select %p289, %s20, 1
        %p291 = scmp.lt.s32.totalorder %s288, 15
        %s292 = scalar_select %p291, %s288, 15
        %s293 = smul.addr %s292, 2
        %s294 = smul.addr %s290, 32
        %s295 = sadd.s32 %s293, %s294
        %s296 = smul.addr %s295, 4
        %s297 = scalar_lea.vmem %s2, %s296
        %s298 = smul.u32 %s21, 8
        %s299 = sadd.s32 %s298, 8
        %p300 = scmp.lt.s32.totalorder %s299, 15
        %s301 = scalar_select %p300, %s299, 15
      $region36: #{up_layer_residual_forward.4} parent=23 // pred_fallthru
        _
    $region24: #{up_layer_residual_forward.4} parent=5 // pred_fallthru
      _
    %p302 = scmp.le.s32.totalorder 1, %s13
    %p303 = scmp.lt.s32.totalorder %s13, 5
    %p304 = pnand %p302, %p303
    %p305 = pneg %p304
    // Predicated region
    $region37: #{up_layer_residual_forward.4} parent=5 // pred_check
      _
    $region38: #{up_layer_residual_forward.4} parent=5 // pred_check_branch
      %307 = sbr.rel (%p304) target = $region40
    $region39: #{up_layer_residual_forward.4} parent=5 // pred_region
      %s308 = ssub.s32 %s13, 1
      %s309 = smul.u32 8, %s23
      %p310 = scmp.lt.s32.totalorder %s22, 1
      %s311 = scalar_select %p310, %s22, 1
      %p312 = scmp.lt.s32.totalorder %s309, 15
      %s313 = scalar_select %p312, %s309, 15
      %s314 = smul.addr %s313, 2
      %s315 = smul.addr %s311, 32
      %s316 = sadd.s32 %s314, %s315
      %s317 = smul.addr %s316, 4
      %s318 = scalar_lea.vmem %s0, %s317
      %p319 = pneg %p53
      %p320 = pneg %p50
      %s321 = smul.u32 %s23, 8
      %s322 = ssub.s32 %s321, 1
      %p323 = scmp.gt.s32.totalorder %s322, 0
      %s324 = scalar_select %p323, %s322, 0
      %p325 = scmp.lt.s32.totalorder %s22, 1
      %s326 = scalar_select %p325, %s22, 1
      %p327 = scmp.lt.s32.totalorder %s324, 15
      %s328 = scalar_select %p327, %s324, 15
      %s329 = smul.addr %s328, 2
      %s330 = smul.addr %s326, 32
      %s331 = sadd.s32 %s329, %s330
      %s332 = smul.addr %s331, 4
      %s333 = scalar_lea.vmem %s1, %s332
      %p334 = pneg %p89
      %p335 = pneg %p86
      %s336 = smul.u32 %s23, 8
      %s337 = sadd.s32 %s336, 8
      %p338 = scmp.lt.s32.totalorder %s337, 15
      %s339 = scalar_select %p338, %s337, 15
      %p340 = scmp.lt.s32.totalorder %s22, 1
      %s341 = scalar_select %p340, %s22, 1
      %p342 = scmp.lt.s32.totalorder %s339, 15
      %s343 = scalar_select %p342, %s339, 15
      %s344 = smul.addr %s343, 2
      %s345 = smul.addr %s341, 32
      %s346 = sadd.s32 %s344, %s345
      %s347 = smul.addr %s346, 4
      %s348 = scalar_lea.vmem %s2, %s347
      %p349 = pneg %p125
      %p350 = pneg %p122
      %p351 = pneg %p146
      %p352 = pneg %p143
      %p353 = pneg %p167
      %p354 = pneg %p164
      %p355 = pneg %p195
      %p356 = pneg %p192
      %s357 = smul.u32 8, %s23
      %p358 = scmp.lt.s32.totalorder %s22, 1
      %s359 = scalar_select %p358, %s22, 1
      %p360 = scmp.lt.s32.totalorder %s357, 15
      %s361 = scalar_select %p360, %s357, 15
      %s362 = smul.addr %s361, 2
      %s363 = smul.addr %s359, 32
      %s364 = sadd.s32 %s362, %s363
      %s365 = smul.addr %s364, 4
      %s366 = scalar_lea.vmem %s5, %s365
      %p367 = pneg %p223
      %p368 = pneg %p220
      %p369 = scmp.lt.s32.totalorder %s22, 1
      %s370 = scalar_select %p369, %s22, 1
      %p371 = scmp.lt.s32.totalorder %s23, 1
      %s372 = scalar_select %p371, %s23, 1
      %s373 = smul.addr %s370, 2
      %s374 = sadd.s32 %s372, %s373
      %s375 = smul.addr %s374, 2
      %s376 = scalar_lea.vmem %s6, %s375
      %s377 = smul.u32 8, %s23
      %p378 = scmp.lt.s32.totalorder %s22, 1
      %s379 = scalar_select %p378, %s22, 1
      %p380 = scmp.lt.s32.totalorder %s377, 15
      %s381 = scalar_select %p380, %s377, 15
      %s382 = smul.addr %s381, 2
      %s383 = smul.addr %s379, 32
      %s384 = sadd.s32 %s382, %s383
      %s385 = smul.addr %s384, 4
      %s386 = scalar_lea.vmem %s0, %s385
      %s387 = smul.u32 8, %s23
      %s388 = smul.u32 %s23, 8
      %s389 = ssub.s32 %s388, 1
      %p390 = scmp.gt.s32.totalorder %s389, 0
      %s391 = scalar_select %p390, %s389, 0
      %p392 = scmp.lt.s32.totalorder %s22, 1
      %s393 = scalar_select %p392, %s22, 1
      %p394 = scmp.lt.s32.totalorder %s391, 15
      %s395 = scalar_select %p394, %s391, 15
      %s396 = smul.addr %s395, 2
      %s397 = smul.addr %s393, 32
      %s398 = sadd.s32 %s396, %s397
      %s399 = smul.addr %s398, 4
      %s400 = scalar_lea.vmem %s1, %s399
      %s401 = smul.u32 %s23, 8
      %s402 = ssub.s32 %s401, 1
      %p403 = scmp.gt.s32.totalorder %s402, 0
      %s404 = scalar_select %p403, %s402, 0
      %s405 = smul.u32 %s23, 8
      %s406 = sadd.s32 %s405, 8
      %p407 = scmp.lt.s32.totalorder %s406, 15
      %s408 = scalar_select %p407, %s406, 15
      %p409 = scmp.lt.s32.totalorder %s22, 1
      %s410 = scalar_select %p409, %s22, 1
      %p411 = scmp.lt.s32.totalorder %s408, 15
      %s412 = scalar_select %p411, %s408, 15
      %s413 = smul.addr %s412, 2
      %s414 = smul.addr %s410, 32
      %s415 = sadd.s32 %s413, %s414
      %s416 = smul.addr %s415, 4
      %s417 = scalar_lea.vmem %s2, %s416
      %s418 = smul.u32 %s23, 8
      %s419 = sadd.s32 %s418, 8
      %p420 = scmp.lt.s32.totalorder %s419, 15
      %s421 = scalar_select %p420, %s419, 15
      %s422 = smul.u32 8, %s23
      %p423 = scmp.lt.s32.totalorder %s22, 1
      %s424 = scalar_select %p423, %s22, 1
      %p425 = scmp.lt.s32.totalorder %s422, 15
      %s426 = scalar_select %p425, %s422, 15
      %s427 = smul.addr %s426, 2
      %s428 = smul.addr %s424, 32
      %s429 = sadd.s32 %s427, %s428
      %s430 = smul.addr %s429, 4
      %s431 = scalar_lea.vmem %s5, %s430
      %s432 = smul.u32 8, %s23
      %p433 = scmp.lt.s32.totalorder %s22, 1
      %s434 = scalar_select %p433, %s22, 1
      %p435 = scmp.lt.s32.totalorder %s23, 1
      %s436 = scalar_select %p435, %s23, 1
      %s437 = smul.addr %s434, 2
      %s438 = sadd.s32 %s436, %s437
      %s439 = smul.addr %s438, 2
      %s440 = scalar_lea.vmem %s6, %s439
      %v442 = vld [vmem:[%s3] sm:$0x1]
      %v443 = vld [vmem:[%s3 + $0x1] sm:$0x1]
      %v444 = vld [vmem:[%s386] sm:$0xf]
      %v445 = vld [vmem:[%s386 + $0x4] sm:$0xf]
      %v446 = vld [vmem:[%s386 + $0x8] sm:$0xf]
      %v447 = vld [vmem:[%s386 + $0xc] sm:$0xf]
      %v448 = vld [vmem:[%s386 + $0x10] sm:$0xf]
      %v449 = vld [vmem:[%s386 + $0x14] sm:$0xf]
      %v450 = vld [vmem:[%s386 + $0x18] sm:$0xf]
      %v451 = vld [vmem:[%s386 + $0x1c] sm:$0xf]
      %v452 = vld [vmem:[%s386 + $0x20] sm:$0xf]
      %v453 = vld [vmem:[%s386 + $0x24] sm:$0xf]
      %v454 = vld [vmem:[%s386 + $0x28] sm:$0xf]
      %v455 = vld [vmem:[%s386 + $0x2c] sm:$0xf]
      %v456 = vld [vmem:[%s386 + $0x30] sm:$0xf]
      %v457 = vld [vmem:[%s386 + $0x34] sm:$0xf]
      %v458 = vld [vmem:[%s386 + $0x38] sm:$0xf]
      %v459 = vld [vmem:[%s386 + $0x3c] sm:$0xf]
      %v460 = vunpack.c.l.bf16 %v444
      %v461 = vunpack.c.l.bf16 %v445
      %v462 = vunpack.c.l.bf16 %v446
      %v463 = vunpack.c.l.bf16 %v447
      %v464 = vunpack.c.l.bf16 %v448
      %v465 = vunpack.c.l.bf16 %v449
      %v466 = vunpack.c.l.bf16 %v450
      %v467 = vunpack.c.l.bf16 %v451
      %v468 = vunpack.c.l.bf16 %v452
      %v469 = vunpack.c.l.bf16 %v453
      %v470 = vunpack.c.l.bf16 %v454
      %v471 = vunpack.c.l.bf16 %v455
      %v472 = vunpack.c.l.bf16 %v456
      %v473 = vunpack.c.l.bf16 %v457
      %v474 = vunpack.c.l.bf16 %v458
      %v475 = vunpack.c.l.bf16 %v459
      %v476 = vlaneseq
      %v477 = vshrl.u32 %v476, 7
      %v478 = vsub.s32 0, %v477
      %v479 = vrot.slane %v442, %v478
      %v480 = vmul.f32 %v460, %v479
      %v481 = vmul.f32 %v461, %v479
      %v482 = vmul.f32 %v462, %v479
      %v483 = vmul.f32 %v463, %v479
      %v484 = vmul.f32 %v464, %v479
      %v485 = vmul.f32 %v465, %v479
      %v486 = vmul.f32 %v466, %v479
      %v487 = vmul.f32 %v467, %v479
      %v488 = vmul.f32 %v468, %v479
      %v489 = vmul.f32 %v469, %v479
      %v490 = vmul.f32 %v470, %v479
      %v491 = vmul.f32 %v471, %v479
      %v492 = vmul.f32 %v472, %v479
      %v493 = vmul.f32 %v473, %v479
      %v494 = vmul.f32 %v474, %v479
      %v495 = vmul.f32 %v475, %v479
      %v496 = vlaneseq
      %v497 = vshrl.u32 %v496, 7
      %v498 = vsub.s32 0, %v497
      %v499 = vrot.slane %v443, %v498
      %v500 = vadd.f32 %v480, %v499
      %v501 = vadd.f32 %v481, %v499
      %v502 = vadd.f32 %v482, %v499
      %v503 = vadd.f32 %v483, %v499
      %v504 = vadd.f32 %v484, %v499
      %v505 = vadd.f32 %v485, %v499
      %v506 = vadd.f32 %v486, %v499
      %v507 = vadd.f32 %v487, %v499
      %v508 = vadd.f32 %v488, %v499
      %v509 = vadd.f32 %v489, %v499
      %v510 = vadd.f32 %v490, %v499
      %v511 = vadd.f32 %v491, %v499
      %v512 = vadd.f32 %v492, %v499
      %v513 = vadd.f32 %v493, %v499
      %v514 = vadd.f32 %v494, %v499
      %v515 = vadd.f32 %v495, %v499
      %v516 = vmax.f32 %v500, 0.0
      %v517 = vmax.f32 %v501, 0.0
      %v518 = vmax.f32 %v502, 0.0
      %v519 = vmax.f32 %v503, 0.0
      %v520 = vmax.f32 %v504, 0.0
      %v521 = vmax.f32 %v505, 0.0
      %v522 = vmax.f32 %v506, 0.0
      %v523 = vmax.f32 %v507, 0.0
      %v524 = vmax.f32 %v508, 0.0
      %v525 = vmax.f32 %v509, 0.0
      %v526 = vmax.f32 %v510, 0.0
      %v527 = vmax.f32 %v511, 0.0
      %v528 = vmax.f32 %v512, 0.0
      %v529 = vmax.f32 %v513, 0.0
      %v530 = vmax.f32 %v514, 0.0
      %v531 = vmax.f32 %v515, 0.0
      %v532 = vld [vmem:[%s400] sm:$0xf]
      %v533 = vld [vmem:[%s400 + $0x4] sm:$0xf]
      %v534 = vunpack.c.l.bf16 %v532
      %v535 = vunpack.c.l.bf16 %v533
      %v536 = vmul.f32 %v534, %v479
      %v537 = vmul.f32 %v535, %v479
      %v538 = vadd.f32 %v536, %v499
      %v539 = vadd.f32 %v537, %v499
      %v540 = vmax.f32 %v538, 0.0
      %v541 = vmax.f32 %v539, 0.0
      %v542 = vld [vmem:[%s417] sm:$0xf]
      %v543 = vld [vmem:[%s417 + $0x4] sm:$0xf]
      %v544 = vunpack.c.l.bf16 %v542
      %v545 = vunpack.c.l.bf16 %v543
      %v546 = vmul.f32 %v544, %v479
      %v547 = vmul.f32 %v545, %v479
      %v548 = vadd.f32 %v546, %v499
      %v549 = vadd.f32 %v547, %v499
      %v550 = vmax.f32 %v548, 0.0
      %v551 = vmax.f32 %v549, 0.0
      %p552 = scmp.gt.s32.totalorder %s23, 0
      %s553 = scalar_select %p552, 1, 0
      %v554 = vstv %s553
      %vm555 = vcmp.eq.s32.totalorder %v554, 1
      %v556 = vsel %vm555, %v540, 0.0
      %v557 = vsel %vm555, %v541, 0.0
      %p558 = scmp.lt.s32.totalorder %s23, 1
      %s559 = scalar_select %p558, 1, 0
      %v560 = vstv %s559
      %vm561 = vcmp.eq.s32.totalorder %v560, 1
      %v562 = vsel %vm561, %v550, 0.0
      %v563 = vsel %vm561, %v551, 0.0
      %vm564 = vcmask 261120
      %565 = vst.msk [vmem:[#allocation2] sm:$0xff] %vm564, 0.0
      %566 = vst.msk [vmem:[#allocation2 + $0x8] sm:$0xff] %vm564, 0.0
      %vm567 = vcmask 254976
      %568 = vst.msk [vmem:[#allocation2 + $0x10] sm:$0x3] %vm567, 0.0
      %569 = vst.msk [vmem:[#allocation2 + $0x18] sm:$0xff] %vm564, 0.0
      %570 = vst.msk [vmem:[#allocation2 + $0x20] sm:$0xff] %vm564, 0.0
      %571 = vst.msk [vmem:[#allocation2 + $0x28] sm:$0x3] %vm567, 0.0
      %572 = vst.msk [vmem:[#allocation2 + $0x30] sm:$0xff] %vm564, 0.0
      %573 = vst.msk [vmem:[#allocation2 + $0x38] sm:$0xff] %vm564, 0.0
      %574 = vst.msk [vmem:[#allocation2 + $0x40] sm:$0x3] %vm567, 0.0
      %575 = vst.msk [vmem:[#allocation2 + $0x48] sm:$0xff] %vm564, 0.0
      %576 = vst.msk [vmem:[#allocation2 + $0x50] sm:$0xff] %vm564, 0.0
      %577 = vst.msk [vmem:[#allocation2 + $0x58] sm:$0x3] %vm567, 0.0
      %578 = vst.msk [vmem:[#allocation2 + $0x60] sm:$0xff] %vm564, 0.0
      %579 = vst.msk [vmem:[#allocation2 + $0x68] sm:$0xff] %vm564, 0.0
      %580 = vst.msk [vmem:[#allocation2 + $0x70] sm:$0x3] %vm567, 0.0
      %581 = vst.msk [vmem:[#allocation2 + $0x78] sm:$0xff] %vm564, 0.0
      %582 = vst.msk [vmem:[#allocation2 + $0x80] sm:$0xff] %vm564, 0.0
      %583 = vst.msk [vmem:[#allocation2 + $0x88] sm:$0x3] %vm567, 0.0
      %584 = vst.msk [vmem:[#allocation2 + $0x90] sm:$0xff] %vm564, 0.0
      %585 = vst.msk [vmem:[#allocation2 + $0x98] sm:$0xff] %vm564, 0.0
      %586 = vst.msk [vmem:[#allocation2 + $0xa0] sm:$0x3] %vm567, 0.0
      %587 = vst.msk [vmem:[#allocation2 + $0xa8] sm:$0xff] %vm564, 0.0
      %588 = vst.msk [vmem:[#allocation2 + $0xb0] sm:$0xff] %vm564, 0.0
      %589 = vst.msk [vmem:[#allocation2 + $0xb8] sm:$0x3] %vm567, 0.0
      %590 = vst.msk [vmem:[#allocation2 + $0xc0] sm:$0xff] %vm564, 0.0
      %591 = vst.msk [vmem:[#allocation2 + $0xc8] sm:$0xff] %vm564, 0.0
      %592 = vst.msk [vmem:[#allocation2 + $0xd0] sm:$0x3] %vm567, 0.0
      %593 = vst.msk [vmem:[#allocation2 + $0xd8] sm:$0xff] %vm564, 0.0
      %594 = vst.msk [vmem:[#allocation2 + $0xe0] sm:$0xff] %vm564, 0.0
      %595 = vst.msk [vmem:[#allocation2 + $0xe8] sm:$0x3] %vm567, 0.0
      %s596 = scalar_lea.vmem [#allocation2], 24
      %597 = vst.msk [vmem:[%s596 + $0x1] sm:$0xff] %vm564, %v516
      %598 = vst.msk [vmem:[%s596 + $0x9] sm:$0xff] %vm564, %v517
      %599 = vst.msk [vmem:[%s596 + $0x19] sm:$0xff] %vm564, %v518
      %600 = vst.msk [vmem:[%s596 + $0x21] sm:$0xff] %vm564, %v519
      %601 = vst.msk [vmem:[%s596 + $0x31] sm:$0xff] %vm564, %v520
      %602 = vst.msk [vmem:[%s596 + $0x39] sm:$0xff] %vm564, %v521
      %603 = vst.msk [vmem:[%s596 + $0x49] sm:$0xff] %vm564, %v522
      %604 = vst.msk [vmem:[%s596 + $0x51] sm:$0xff] %vm564, %v523
      %605 = vst.msk [vmem:[%s596 + $0x61] sm:$0xff] %vm564, %v524
      %606 = vst.msk [vmem:[%s596 + $0x69] sm:$0xff] %vm564, %v525
      %607 = vst.msk [vmem:[%s596 + $0x79] sm:$0xff] %vm564, %v526
      %608 = vst.msk [vmem:[%s596 + $0x81] sm:$0xff] %vm564, %v527
      %609 = vst.msk [vmem:[%s596 + $0x91] sm:$0xff] %vm564, %v528
      %610 = vst.msk [vmem:[%s596 + $0x99] sm:$0xff] %vm564, %v529
      %611 = vst.msk [vmem:[%s596 + $0xa9] sm:$0xff] %vm564, %v530
      %612 = vst.msk [vmem:[%s596 + $0xb1] sm:$0xff] %vm564, %v531
      %613 = vst.msk [vmem:[#allocation2 + $0x1] sm:$0xff] %vm564, %v556
      %614 = vst.msk [vmem:[#allocation2 + $0x9] sm:$0xff] %vm564, %v557
      %s615 = scalar_lea.vmem [#allocation2], 216
      %616 = vst.msk [vmem:[%s615 + $0x1] sm:$0xff] %vm564, %v562
      %617 = vst.msk [vmem:[%s615 + $0x9] sm:$0xff] %vm564, %v563
      %v618 = vld [vmem:[#allocation2] sm:$0xff]
      %v619 = vld [vmem:[#allocation2 + $0x8] sm:$0xff]
      %v620 = vld [vmem:[#allocation2 + $0x18] sm:$0xff]
      %v621 = vld [vmem:[#allocation2 + $0x20] sm:$0xff]
      %v622 = vld [vmem:[#allocation2 + $0x30] sm:$0xff]
      %v623 = vld [vmem:[#allocation2 + $0x38] sm:$0xff]
      %v624 = vld [vmem:[#allocation2 + $0x48] sm:$0xff]
      %v625 = vld [vmem:[#allocation2 + $0x50] sm:$0xff]
      %v626 = vld [vmem:[#allocation2 + $0x60] sm:$0xff]
      %v627 = vld [vmem:[#allocation2 + $0x68] sm:$0xff]
      %v628 = vld [vmem:[#allocation2 + $0x78] sm:$0xff]
      %v629 = vld [vmem:[#allocation2 + $0x80] sm:$0xff]
      %v630 = vld [vmem:[#allocation2 + $0x90] sm:$0xff]
      %v631 = vld [vmem:[#allocation2 + $0x98] sm:$0xff]
      %v632 = vld [vmem:[#allocation2 + $0xa8] sm:$0xff]
      %v633 = vld [vmem:[#allocation2 + $0xb0] sm:$0xff]
      %v634 = vpack.c.bf16 %v619, %v618
      %v635 = vpack.c.bf16 %v621, %v620
      %v636 = vpack.c.bf16 %v623, %v622
      %v637 = vpack.c.bf16 %v625, %v624
      %v638 = vpack.c.bf16 %v627, %v626
      %v639 = vpack.c.bf16 %v629, %v628
      %v640 = vpack.c.bf16 %v631, %v630
      %v641 = vpack.c.bf16 %v633, %v632
      %v642 = vld [vmem:[%s4] sm:$0xf]
      %v643 = vld [vmem:[%s4 + $0x4] sm:$0xf]
      %v644 = vld [vmem:[%s4 + $0x8] sm:$0xf]
      %v645 = vld [vmem:[%s4 + $0xc] sm:$0xf]
      %v646 = vld [vmem:[#allocation2 + $0x1] sm:$0xff]
      %v647 = vld [vmem:[#allocation2 + $0x9] sm:$0xff]
      %v648 = vld [vmem:[#allocation2 + $0x19] sm:$0xff]
      %v649 = vld [vmem:[#allocation2 + $0x21] sm:$0xff]
      %v650 = vld [vmem:[#allocation2 + $0x31] sm:$0xff]
      %v651 = vld [vmem:[#allocation2 + $0x39] sm:$0xff]
      %v652 = vld [vmem:[#allocation2 + $0x49] sm:$0xff]
      %v653 = vld [vmem:[#allocation2 + $0x51] sm:$0xff]
      %v654 = vld [vmem:[#allocation2 + $0x61] sm:$0xff]
      %v655 = vld [vmem:[#allocation2 + $0x69] sm:$0xff]
      %v656 = vld [vmem:[#allocation2 + $0x79] sm:$0xff]
      %v657 = vld [vmem:[#allocation2 + $0x81] sm:$0xff]
      %v658 = vld [vmem:[#allocation2 + $0x91] sm:$0xff]
      %v659 = vld [vmem:[#allocation2 + $0x99] sm:$0xff]
      %v660 = vld [vmem:[#allocation2 + $0xa9] sm:$0xff]
      %v661 = vld [vmem:[#allocation2 + $0xb1] sm:$0xff]
      %v662 = vpack.c.bf16 %v647, %v646
      %v663 = vpack.c.bf16 %v649, %v648
      %v664 = vpack.c.bf16 %v651, %v650
      %v665 = vpack.c.bf16 %v653, %v652
      %v666 = vpack.c.bf16 %v655, %v654
      %v667 = vpack.c.bf16 %v657, %v656
      %v668 = vpack.c.bf16 %v659, %v658
      %v669 = vpack.c.bf16 %v661, %v660
      %s670 = scalar_lea.vmem %s4, 16
      %v671 = vld [vmem:[%s670] sm:$0xf]
      %v672 = vld [vmem:[%s670 + $0x4] sm:$0xf]
      %v673 = vld [vmem:[%s670 + $0x8] sm:$0xf]
      %v674 = vld [vmem:[%s670 + $0xc] sm:$0xf]
      %v679 = vunpack.c.l.b16 %v671
      %v680 = vunpack.c.l.b16 %v672
      %v681 = vunpack.c.l.b16 %v673
      %v682 = vunpack.c.l.b16 %v674
      %v683 = vpack.c.b16 %v680, %v679
      %v684 = vpack.c.b16 %v682, %v681
      %v688 = vsel %vm564, %v662, 0
      %v691 = vsel %vm564, %v663, 0
      %v694 = vsel %vm564, %v664, 0
      %v697 = vsel %vm564, %v665, 0
      %v700 = vsel %vm564, %v666, 0
      %v703 = vsel %vm564, %v667, 0
      %v706 = vsel %vm564, %v668, 0
      %v709 = vsel %vm564, %v669, 0
      %711 = vmatprep.subr.bf16.mxu0 0
      %712 = vmatpush1.bf16.msra.mxu0 0
      %713 = vmatprep.subr.bf16.mxu0 0
      %714 = vmatpush1.bf16.msra.mxu0 0
      %715 = vmatprep.subr.bf16.mxu0 0
      %716 = vmatpush1.bf16.msra.mxu0 0
      %717 = vmatprep.subr.bf16.mxu0 0
      %718 = vmatpush1.bf16.msra.mxu0 0
      %719 = vmatprep.subr.bf16.mxu0 0
      %720 = vmatpush1.bf16.msra.mxu0 0
      %721 = vmatprep.subr.bf16.mxu0 0
      %722 = vmatpush1.bf16.msra.mxu0 0
      %723 = vmatprep.subr.bf16.mxu0 0
      %724 = vmatpush1.bf16.msra.mxu0 %v684
      %725 = vmatprep.subr.bf16.mxu0 0
      %726 = vmatpush1.bf16.msra.mxu0 %v683
      %727 = vmatprep.subr.bf16.mxu0 0
      %728 = vmatpush2.bf16.msra.mxu0 0
      %729 = vmatprep.subr.bf16.mxu0 0
      %730 = vmatpush2.bf16.msra.mxu0 0
      %731 = vmatprep.subr.bf16.mxu0 0
      %732 = vmatpush2.bf16.msra.mxu0 0
      %733 = vmatprep.subr.bf16.mxu0 0
      %734 = vmatpush2.bf16.msra.mxu0 0
      %735 = vmatprep.subr.bf16.mxu0 0
      %736 = vmatpush2.bf16.msra.mxu0 0
      %737 = vmatprep.subr.bf16.mxu0 0
      %738 = vmatpush2.bf16.msra.mxu0 0
      %739 = vmatprep.subr.bf16.mxu0 0
      %740 = vmatpush2.bf16.msra.mxu0 0
      %741 = vmatprep.subr.bf16.mxu0 0
      %742 = vmatpush2.bf16.msra.mxu0 0
      %743 = vmatprep.mubr.bf16.mxu0 0
      %744 = vmatmul.mubr.bf16.gmra.mxu0 %v688
      %v745 = vpop.f32.mrf.mxu0
      %v746 = vadd.f32 0.0, %v745
      %v747 = vpop.f32.mrf.mxu0
      %v748 = vpop.f32.mrf.mxu0
      %v749 = vadd.f32 0.0, %v748
      %v750 = vpop.f32.mrf.mxu0
      %751 = vmatprep.mubr.bf16.mxu0 0
      %752 = vmatmul.mubr.bf16.gmra.mxu0 %v691
      %v753 = vpop.f32.mrf.mxu0
      %v754 = vadd.f32 0.0, %v753
      %v755 = vpop.f32.mrf.mxu0
      %v756 = vpop.f32.mrf.mxu0
      %v757 = vadd.f32 0.0, %v756
      %v758 = vpop.f32.mrf.mxu0
      %759 = vmatprep.mubr.bf16.mxu0 0
      %760 = vmatmul.mubr.bf16.gmra.mxu0 %v694
      %v761 = vpop.f32.mrf.mxu0
      %v762 = vadd.f32 0.0, %v761
      %v763 = vpop.f32.mrf.mxu0
      %v764 = vpop.f32.mrf.mxu0
      %v765 = vadd.f32 0.0, %v764
      %v766 = vpop.f32.mrf.mxu0
      %767 = vmatprep.mubr.bf16.mxu0 0
      %768 = vmatmul.mubr.bf16.gmra.mxu0 %v697
      %v769 = vpop.f32.mrf.mxu0
      %v770 = vadd.f32 0.0, %v769
      %v771 = vpop.f32.mrf.mxu0
      %v772 = vpop.f32.mrf.mxu0
      %v773 = vadd.f32 0.0, %v772
      %v774 = vpop.f32.mrf.mxu0
      %775 = vmatprep.mubr.bf16.mxu0 0
      %776 = vmatmul.mubr.bf16.gmra.mxu0 %v700
      %v777 = vpop.f32.mrf.mxu0
      %v778 = vadd.f32 0.0, %v777
      %v779 = vpop.f32.mrf.mxu0
      %v780 = vpop.f32.mrf.mxu0
      %v781 = vadd.f32 0.0, %v780
      %v782 = vpop.f32.mrf.mxu0
      %783 = vmatprep.mubr.bf16.mxu0 0
      %784 = vmatmul.mubr.bf16.gmra.mxu0 %v703
      %v785 = vpop.f32.mrf.mxu0
      %v786 = vadd.f32 0.0, %v785
      %v787 = vpop.f32.mrf.mxu0
      %v788 = vpop.f32.mrf.mxu0
      %v789 = vadd.f32 0.0, %v788
      %v790 = vpop.f32.mrf.mxu0
      %791 = vmatprep.mubr.bf16.mxu0 0
      %792 = vmatmul.mubr.bf16.gmra.mxu0 %v706
      %v793 = vpop.f32.mrf.mxu0
      %v794 = vadd.f32 0.0, %v793
      %v795 = vpop.f32.mrf.mxu0
      %v796 = vpop.f32.mrf.mxu0
      %v797 = vadd.f32 0.0, %v796
      %v798 = vpop.f32.mrf.mxu0
      %799 = vmatprep.mubr.bf16.mxu0 0
      %800 = vmatmul.mubr.bf16.gmra.mxu0 %v709
      %v801 = vpop.f32.mrf.mxu0
      %v802 = vadd.f32 0.0, %v801
      %v803 = vpop.f32.mrf.mxu0
      %v804 = vpop.f32.mrf.mxu0
      %v805 = vadd.f32 0.0, %v804
      %v806 = vpop.f32.mrf.mxu0
      %807 = vdwg.mxu0
      %v812 = vunpack.c.l.b16 %v642
      %v813 = vunpack.c.l.b16 %v643
      %v814 = vunpack.c.l.b16 %v644
      %v815 = vunpack.c.l.b16 %v645
      %v816 = vpack.c.b16 %v813, %v812
      %v817 = vpack.c.b16 %v815, %v814
      %v821 = vsel %vm564, %v634, 0
      %v824 = vsel %vm564, %v635, 0
      %v827 = vsel %vm564, %v636, 0
      %v830 = vsel %vm564, %v637, 0
      %v833 = vsel %vm564, %v638, 0
      %v836 = vsel %vm564, %v639, 0
      %v839 = vsel %vm564, %v640, 0
      %v842 = vsel %vm564, %v641, 0
      %844 = vmatprep.subr.bf16.mxu0 0
      %845 = vmatpush1.bf16.msra.mxu0 0
      %846 = vmatprep.subr.bf16.mxu0 0
      %847 = vmatpush1.bf16.msra.mxu0 0
      %848 = vmatprep.subr.bf16.mxu0 0
      %849 = vmatpush1.bf16.msra.mxu0 0
      %850 = vmatprep.subr.bf16.mxu0 0
      %851 = vmatpush1.bf16.msra.mxu0 0
      %852 = vmatprep.subr.bf16.mxu0 0
      %853 = vmatpush1.bf16.msra.mxu0 0
      %854 = vmatprep.subr.bf16.mxu0 0
      %855 = vmatpush1.bf16.msra.mxu0 0
      %856 = vmatprep.subr.bf16.mxu0 0
      %857 = vmatpush1.bf16.msra.mxu0 %v817
      %858 = vmatprep.subr.bf16.mxu0 0
      %859 = vmatpush1.bf16.msra.mxu0 %v816
      %860 = vmatprep.subr.bf16.mxu0 0
      %861 = vmatpush2.bf16.msra.mxu0 0
      %862 = vmatprep.subr.bf16.mxu0 0
      %863 = vmatpush2.bf16.msra.mxu0 0
      %864 = vmatprep.subr.bf16.mxu0 0
      %865 = vmatpush2.bf16.msra.mxu0 0
      %866 = vmatprep.subr.bf16.mxu0 0
      %867 = vmatpush2.bf16.msra.mxu0 0
      %868 = vmatprep.subr.bf16.mxu0 0
      %869 = vmatpush2.bf16.msra.mxu0 0
      %870 = vmatprep.subr.bf16.mxu0 0
      %871 = vmatpush2.bf16.msra.mxu0 0
      %872 = vmatprep.subr.bf16.mxu0 0
      %873 = vmatpush2.bf16.msra.mxu0 0
      %874 = vmatprep.subr.bf16.mxu0 0
      %875 = vmatpush2.bf16.msra.mxu0 0
      %876 = vmatprep.mubr.bf16.mxu0 0
      %877 = vmatmul.mubr.bf16.gmra.mxu0 %v821
      %v878 = vpop.f32.mrf.mxu0
      %v879 = vadd.f32 %v746, %v878
      %v880 = vpop.f32.mrf.mxu0
      %v881 = vpop.f32.mrf.mxu0
      %v882 = vadd.f32 %v749, %v881
      %v883 = vpop.f32.mrf.mxu0
      %884 = vmatprep.mubr.bf16.mxu0 0
      %885 = vmatmul.mubr.bf16.gmra.mxu0 %v824
      %v886 = vpop.f32.mrf.mxu0
      %v887 = vadd.f32 %v754, %v886
      %v888 = vpop.f32.mrf.mxu0
      %v889 = vpop.f32.mrf.mxu0
      %v890 = vadd.f32 %v757, %v889
      %v891 = vpop.f32.mrf.mxu0
      %892 = vmatprep.mubr.bf16.mxu0 0
      %893 = vmatmul.mubr.bf16.gmra.mxu0 %v827
      %v894 = vpop.f32.mrf.mxu0
      %v895 = vadd.f32 %v762, %v894
      %v896 = vpop.f32.mrf.mxu0
      %v897 = vpop.f32.mrf.mxu0
      %v898 = vadd.f32 %v765, %v897
      %v899 = vpop.f32.mrf.mxu0
      %900 = vmatprep.mubr.bf16.mxu0 0
      %901 = vmatmul.mubr.bf16.gmra.mxu0 %v830
      %v902 = vpop.f32.mrf.mxu0
      %v903 = vadd.f32 %v770, %v902
      %v904 = vpop.f32.mrf.mxu0
      %v905 = vpop.f32.mrf.mxu0
      %v906 = vadd.f32 %v773, %v905
      %v907 = vpop.f32.mrf.mxu0
      %908 = vmatprep.mubr.bf16.mxu0 0
      %909 = vmatmul.mubr.bf16.gmra.mxu0 %v833
      %v910 = vpop.f32.mrf.mxu0
      %v911 = vadd.f32 %v778, %v910
      %v912 = vpop.f32.mrf.mxu0
      %v913 = vpop.f32.mrf.mxu0
      %v914 = vadd.f32 %v781, %v913
      %v915 = vpop.f32.mrf.mxu0
      %916 = vmatprep.mubr.bf16.mxu0 0
      %917 = vmatmul.mubr.bf16.gmra.mxu0 %v836
      %v918 = vpop.f32.mrf.mxu0
      %v919 = vadd.f32 %v786, %v918
      %v920 = vpop.f32.mrf.mxu0
      %v921 = vpop.f32.mrf.mxu0
      %v922 = vadd.f32 %v789, %v921
      %v923 = vpop.f32.mrf.mxu0
      %924 = vmatprep.mubr.bf16.mxu0 0
      %925 = vmatmul.mubr.bf16.gmra.mxu0 %v839
      %v926 = vpop.f32.mrf.mxu0
      %v927 = vadd.f32 %v794, %v926
      %v928 = vpop.f32.mrf.mxu0
      %v929 = vpop.f32.mrf.mxu0
      %v930 = vadd.f32 %v797, %v929
      %v931 = vpop.f32.mrf.mxu0
      %932 = vmatprep.mubr.bf16.mxu0 0
      %933 = vmatmul.mubr.bf16.gmra.mxu0 %v842
      %v934 = vpop.f32.mrf.mxu0
      %v935 = vadd.f32 %v802, %v934
      %v936 = vpop.f32.mrf.mxu0
      %v937 = vpop.f32.mrf.mxu0
      %v938 = vadd.f32 %v805, %v937
      %v939 = vpop.f32.mrf.mxu0
      %940 = vdwg.mxu0
      %v941 = vld [vmem:[#allocation2 + $0x2] sm:$0xff]
      %v942 = vld [vmem:[#allocation2 + $0xa] sm:$0xff]
      %v943 = vld [vmem:[#allocation2 + $0x1a] sm:$0xff]
      %v944 = vld [vmem:[#allocation2 + $0x22] sm:$0xff]
      %v945 = vld [vmem:[#allocation2 + $0x32] sm:$0xff]
      %v946 = vld [vmem:[#allocation2 + $0x3a] sm:$0xff]
      %v947 = vld [vmem:[#allocation2 + $0x4a] sm:$0xff]
      %v948 = vld [vmem:[#allocation2 + $0x52] sm:$0xff]
      %v949 = vld [vmem:[#allocation2 + $0x62] sm:$0xff]
      %v950 = vld [vmem:[#allocation2 + $0x6a] sm:$0xff]
      %v951 = vld [vmem:[#allocation2 + $0x7a] sm:$0xff]
      %v952 = vld [vmem:[#allocation2 + $0x82] sm:$0xff]
      %v953 = vld [vmem:[#allocation2 + $0x92] sm:$0xff]
      %v954 = vld [vmem:[#allocation2 + $0x9a] sm:$0xff]
      %v955 = vld [vmem:[#allocation2 + $0xaa] sm:$0xff]
      %v956 = vld [vmem:[#allocation2 + $0xb2] sm:$0xff]
      %v957 = vpack.c.bf16 %v942, %v941
      %v958 = vpack.c.bf16 %v944, %v943
      %v959 = vpack.c.bf16 %v946, %v945
      %v960 = vpack.c.bf16 %v948, %v947
      %v961 = vpack.c.bf16 %v950, %v949
      %v962 = vpack.c.bf16 %v952, %v951
      %v963 = vpack.c.bf16 %v954, %v953
      %v964 = vpack.c.bf16 %v956, %v955
      %s965 = scalar_lea.vmem %s4, 32
      %v966 = vld [vmem:[%s965] sm:$0xf]
      %v967 = vld [vmem:[%s965 + $0x4] sm:$0xf]
      %v968 = vld [vmem:[%s965 + $0x8] sm:$0xf]
      %v969 = vld [vmem:[%s965 + $0xc] sm:$0xf]
      %v974 = vunpack.c.l.b16 %v966
      %v975 = vunpack.c.l.b16 %v967
      %v976 = vunpack.c.l.b16 %v968
      %v977 = vunpack.c.l.b16 %v969
      %v978 = vpack.c.b16 %v975, %v974
      %v979 = vpack.c.b16 %v977, %v976
      %v983 = vsel %vm564, %v957, 0
      %v986 = vsel %vm564, %v958, 0
      %v989 = vsel %vm564, %v959, 0
      %v992 = vsel %vm564, %v960, 0
      %v995 = vsel %vm564, %v961, 0
      %v998 = vsel %vm564, %v962, 0
      %v1001 = vsel %vm564, %v963, 0
      %v1004 = vsel %vm564, %v964, 0
      %1006 = vmatprep.subr.bf16.mxu0 0
      %1007 = vmatpush1.bf16.msra.mxu0 0
      %1008 = vmatprep.subr.bf16.mxu0 0
      %1009 = vmatpush1.bf16.msra.mxu0 0
      %1010 = vmatprep.subr.bf16.mxu0 0
      %1011 = vmatpush1.bf16.msra.mxu0 0
      %1012 = vmatprep.subr.bf16.mxu0 0
      %1013 = vmatpush1.bf16.msra.mxu0 0
      %1014 = vmatprep.subr.bf16.mxu0 0
      %1015 = vmatpush1.bf16.msra.mxu0 0
      %1016 = vmatprep.subr.bf16.mxu0 0
      %1017 = vmatpush1.bf16.msra.mxu0 0
      %1018 = vmatprep.subr.bf16.mxu0 0
      %1019 = vmatpush1.bf16.msra.mxu0 %v979
      %1020 = vmatprep.subr.bf16.mxu0 0
      %1021 = vmatpush1.bf16.msra.mxu0 %v978
      %1022 = vmatprep.subr.bf16.mxu0 0
      %1023 = vmatpush2.bf16.msra.mxu0 0
      %1024 = vmatprep.subr.bf16.mxu0 0
      %1025 = vmatpush2.bf16.msra.mxu0 0
      %1026 = vmatprep.subr.bf16.mxu0 0
      %1027 = vmatpush2.bf16.msra.mxu0 0
      %1028 = vmatprep.subr.bf16.mxu0 0
      %1029 = vmatpush2.bf16.msra.mxu0 0
      %1030 = vmatprep.subr.bf16.mxu0 0
      %1031 = vmatpush2.bf16.msra.mxu0 0
      %1032 = vmatprep.subr.bf16.mxu0 0
      %1033 = vmatpush2.bf16.msra.mxu0 0
      %1034 = vmatprep.subr.bf16.mxu0 0
      %1035 = vmatpush2.bf16.msra.mxu0 0
      %1036 = vmatprep.subr.bf16.mxu0 0
      %1037 = vmatpush2.bf16.msra.mxu0 0
      %1038 = vmatprep.mubr.bf16.mxu0 0
      %1039 = vmatmul.mubr.bf16.gmra.mxu0 %v983
      %v1040 = vpop.f32.mrf.mxu0
      %v1041 = vadd.f32 0.0, %v1040
      %v1042 = vpop.f32.mrf.mxu0
      %v1043 = vpop.f32.mrf.mxu0
      %v1044 = vadd.f32 0.0, %v1043
      %v1045 = vpop.f32.mrf.mxu0
      %1046 = vmatprep.mubr.bf16.mxu0 0
      %1047 = vmatmul.mubr.bf16.gmra.mxu0 %v986
      %v1048 = vpop.f32.mrf.mxu0
      %v1049 = vadd.f32 0.0, %v1048
      %v1050 = vpop.f32.mrf.mxu0
      %v1051 = vpop.f32.mrf.mxu0
      %v1052 = vadd.f32 0.0, %v1051
      %v1053 = vpop.f32.mrf.mxu0
      %1054 = vmatprep.mubr.bf16.mxu0 0
      %1055 = vmatmul.mubr.bf16.gmra.mxu0 %v989
      %v1056 = vpop.f32.mrf.mxu0
      %v1057 = vadd.f32 0.0, %v1056
      %v1058 = vpop.f32.mrf.mxu0
      %v1059 = vpop.f32.mrf.mxu0
      %v1060 = vadd.f32 0.0, %v1059
      %v1061 = vpop.f32.mrf.mxu0
      %1062 = vmatprep.mubr.bf16.mxu0 0
      %1063 = vmatmul.mubr.bf16.gmra.mxu0 %v992
      %v1064 = vpop.f32.mrf.mxu0
      %v1065 = vadd.f32 0.0, %v1064
      %v1066 = vpop.f32.mrf.mxu0
      %v1067 = vpop.f32.mrf.mxu0
      %v1068 = vadd.f32 0.0, %v1067
      %v1069 = vpop.f32.mrf.mxu0
      %1070 = vmatprep.mubr.bf16.mxu0 0
      %1071 = vmatmul.mubr.bf16.gmra.mxu0 %v995
      %v1072 = vpop.f32.mrf.mxu0
      %v1073 = vadd.f32 0.0, %v1072
      %v1074 = vpop.f32.mrf.mxu0
      %v1075 = vpop.f32.mrf.mxu0
      %v1076 = vadd.f32 0.0, %v1075
      %v1077 = vpop.f32.mrf.mxu0
      %1078 = vmatprep.mubr.bf16.mxu0 0
      %1079 = vmatmul.mubr.bf16.gmra.mxu0 %v998
      %v1080 = vpop.f32.mrf.mxu0
      %v1081 = vadd.f32 0.0, %v1080
      %v1082 = vpop.f32.mrf.mxu0
      %v1083 = vpop.f32.mrf.mxu0
      %v1084 = vadd.f32 0.0, %v1083
      %v1085 = vpop.f32.mrf.mxu0
      %1086 = vmatprep.mubr.bf16.mxu0 0
      %1087 = vmatmul.mubr.bf16.gmra.mxu0 %v1001
      %v1088 = vpop.f32.mrf.mxu0
      %v1089 = vadd.f32 0.0, %v1088
      %v1090 = vpop.f32.mrf.mxu0
      %v1091 = vpop.f32.mrf.mxu0
      %v1092 = vadd.f32 0.0, %v1091
      %v1093 = vpop.f32.mrf.mxu0
      %1094 = vmatprep.mubr.bf16.mxu0 0
      %1095 = vmatmul.mubr.bf16.gmra.mxu0 %v1004
      %v1096 = vpop.f32.mrf.mxu0
      %v1097 = vadd.f32 0.0, %v1096
      %v1098 = vpop.f32.mrf.mxu0
      %v1099 = vpop.f32.mrf.mxu0
      %v1100 = vadd.f32 0.0, %v1099
      %v1101 = vpop.f32.mrf.mxu0
      %1102 = vdwg.mxu0
      %v1103 = vadd.f32 %v879, %v1041
      %v1104 = vadd.f32 %v882, %v1044
      %v1105 = vadd.f32 %v887, %v1049
      %v1106 = vadd.f32 %v890, %v1052
      %v1107 = vadd.f32 %v895, %v1057
      %v1108 = vadd.f32 %v898, %v1060
      %v1109 = vadd.f32 %v903, %v1065
      %v1110 = vadd.f32 %v906, %v1068
      %v1111 = vadd.f32 %v911, %v1073
      %v1112 = vadd.f32 %v914, %v1076
      %v1113 = vadd.f32 %v919, %v1081
      %v1114 = vadd.f32 %v922, %v1084
      %v1115 = vadd.f32 %v927, %v1089
      %v1116 = vadd.f32 %v930, %v1092
      %v1117 = vadd.f32 %v935, %v1097
      %v1118 = vadd.f32 %v938, %v1100
      %v1119 = vld [vmem:[%s596] sm:$0xff]
      %v1120 = vld [vmem:[%s596 + $0x8] sm:$0xff]
      %v1121 = vld [vmem:[%s596 + $0x18] sm:$0xff]
      %v1122 = vld [vmem:[%s596 + $0x20] sm:$0xff]
      %v1123 = vld [vmem:[%s596 + $0x30] sm:$0xff]
      %v1124 = vld [vmem:[%s596 + $0x38] sm:$0xff]
      %v1125 = vld [vmem:[%s596 + $0x48] sm:$0xff]
      %v1126 = vld [vmem:[%s596 + $0x50] sm:$0xff]
      %v1127 = vld [vmem:[%s596 + $0x60] sm:$0xff]
      %v1128 = vld [vmem:[%s596 + $0x68] sm:$0xff]
      %v1129 = vld [vmem:[%s596 + $0x78] sm:$0xff]
      %v1130 = vld [vmem:[%s596 + $0x80] sm:$0xff]
      %v1131 = vld [vmem:[%s596 + $0x90] sm:$0xff]
      %v1132 = vld [vmem:[%s596 + $0x98] sm:$0xff]
      %v1133 = vld [vmem:[%s596 + $0xa8] sm:$0xff]
      %v1134 = vld [vmem:[%s596 + $0xb0] sm:$0xff]
      %v1135 = vpack.c.bf16 %v1120, %v1119
      %v1136 = vpack.c.bf16 %v1122, %v1121
      %v1137 = vpack.c.bf16 %v1124, %v1123
      %v1138 = vpack.c.bf16 %v1126, %v1125
      %v1139 = vpack.c.bf16 %v1128, %v1127
      %v1140 = vpack.c.bf16 %v1130, %v1129
      %v1141 = vpack.c.bf16 %v1132, %v1131
      %v1142 = vpack.c.bf16 %v1134, %v1133
      %s1143 = scalar_lea.vmem %s4, 48
      %v1144 = vld [vmem:[%s1143] sm:$0xf]
      %v1145 = vld [vmem:[%s1143 + $0x4] sm:$0xf]
      %v1146 = vld [vmem:[%s1143 + $0x8] sm:$0xf]
      %v1147 = vld [vmem:[%s1143 + $0xc] sm:$0xf]
      %v1152 = vunpack.c.l.b16 %v1144
      %v1153 = vunpack.c.l.b16 %v1145
      %v1154 = vunpack.c.l.b16 %v1146
      %v1155 = vunpack.c.l.b16 %v1147
      %v1156 = vpack.c.b16 %v1153, %v1152
      %v1157 = vpack.c.b16 %v1155, %v1154
      %v1161 = vsel %vm564, %v1135, 0
      %v1164 = vsel %vm564, %v1136, 0
      %v1167 = vsel %vm564, %v1137, 0
      %v1170 = vsel %vm564, %v1138, 0
      %v1173 = vsel %vm564, %v1139, 0
      %v1176 = vsel %vm564, %v1140, 0
      %v1179 = vsel %vm564, %v1141, 0
      %v1182 = vsel %vm564, %v1142, 0
      %1184 = vmatprep.subr.bf16.mxu0 0
      %1185 = vmatpush1.bf16.msra.mxu0 0
      %1186 = vmatprep.subr.bf16.mxu0 0
      %1187 = vmatpush1.bf16.msra.mxu0 0
      %1188 = vmatprep.subr.bf16.mxu0 0
      %1189 = vmatpush1.bf16.msra.mxu0 0
      %1190 = vmatprep.subr.bf16.mxu0 0
      %1191 = vmatpush1.bf16.msra.mxu0 0
      %1192 = vmatprep.subr.bf16.mxu0 0
      %1193 = vmatpush1.bf16.msra.mxu0 0
      %1194 = vmatprep.subr.bf16.mxu0 0
      %1195 = vmatpush1.bf16.msra.mxu0 0
      %1196 = vmatprep.subr.bf16.mxu0 0
      %1197 = vmatpush1.bf16.msra.mxu0 %v1157
      %1198 = vmatprep.subr.bf16.mxu0 0
      %1199 = vmatpush1.bf16.msra.mxu0 %v1156
      %1200 = vmatprep.subr.bf16.mxu0 0
      %1201 = vmatpush2.bf16.msra.mxu0 0
      %1202 = vmatprep.subr.bf16.mxu0 0
      %1203 = vmatpush2.bf16.msra.mxu0 0
      %1204 = vmatprep.subr.bf16.mxu0 0
      %1205 = vmatpush2.bf16.msra.mxu0 0
      %1206 = vmatprep.subr.bf16.mxu0 0
      %1207 = vmatpush2.bf16.msra.mxu0 0
      %1208 = vmatprep.subr.bf16.mxu0 0
      %1209 = vmatpush2.bf16.msra.mxu0 0
      %1210 = vmatprep.subr.bf16.mxu0 0
      %1211 = vmatpush2.bf16.msra.mxu0 0
      %1212 = vmatprep.subr.bf16.mxu0 0
      %1213 = vmatpush2.bf16.msra.mxu0 0
      %1214 = vmatprep.subr.bf16.mxu0 0
      %1215 = vmatpush2.bf16.msra.mxu0 0
      %1216 = vmatprep.mubr.bf16.mxu0 0
      %1217 = vmatmul.mubr.bf16.gmra.mxu0 %v1161
      %v1218 = vpop.f32.mrf.mxu0
      %v1219 = vadd.f32 0.0, %v1218
      %v1220 = vpop.f32.mrf.mxu0
      %v1221 = vpop.f32.mrf.mxu0
      %v1222 = vadd.f32 0.0, %v1221
      %v1223 = vpop.f32.mrf.mxu0
      %1224 = vmatprep.mubr.bf16.mxu0 0
      %1225 = vmatmul.mubr.bf16.gmra.mxu0 %v1164
      %v1226 = vpop.f32.mrf.mxu0
      %v1227 = vadd.f32 0.0, %v1226
      %v1228 = vpop.f32.mrf.mxu0
      %v1229 = vpop.f32.mrf.mxu0
      %v1230 = vadd.f32 0.0, %v1229
      %v1231 = vpop.f32.mrf.mxu0
      %1232 = vmatprep.mubr.bf16.mxu0 0
      %1233 = vmatmul.mubr.bf16.gmra.mxu0 %v1167
      %v1234 = vpop.f32.mrf.mxu0
      %v1235 = vadd.f32 0.0, %v1234
      %v1236 = vpop.f32.mrf.mxu0
      %v1237 = vpop.f32.mrf.mxu0
      %v1238 = vadd.f32 0.0, %v1237
      %v1239 = vpop.f32.mrf.mxu0
      %1240 = vmatprep.mubr.bf16.mxu0 0
      %1241 = vmatmul.mubr.bf16.gmra.mxu0 %v1170
      %v1242 = vpop.f32.mrf.mxu0
      %v1243 = vadd.f32 0.0, %v1242
      %v1244 = vpop.f32.mrf.mxu0
      %v1245 = vpop.f32.mrf.mxu0
      %v1246 = vadd.f32 0.0, %v1245
      %v1247 = vpop.f32.mrf.mxu0
      %1248 = vmatprep.mubr.bf16.mxu0 0
      %1249 = vmatmul.mubr.bf16.gmra.mxu0 %v1173
      %v1250 = vpop.f32.mrf.mxu0
      %v1251 = vadd.f32 0.0, %v1250
      %v1252 = vpop.f32.mrf.mxu0
      %v1253 = vpop.f32.mrf.mxu0
      %v1254 = vadd.f32 0.0, %v1253
      %v1255 = vpop.f32.mrf.mxu0
      %1256 = vmatprep.mubr.bf16.mxu0 0
      %1257 = vmatmul.mubr.bf16.gmra.mxu0 %v1176
      %v1258 = vpop.f32.mrf.mxu0
      %v1259 = vadd.f32 0.0, %v1258
      %v1260 = vpop.f32.mrf.mxu0
      %v1261 = vpop.f32.mrf.mxu0
      %v1262 = vadd.f32 0.0, %v1261
      %v1263 = vpop.f32.mrf.mxu0
      %1264 = vmatprep.mubr.bf16.mxu0 0
      %1265 = vmatmul.mubr.bf16.gmra.mxu0 %v1179
      %v1266 = vpop.f32.mrf.mxu0
      %v1267 = vadd.f32 0.0, %v1266
      %v1268 = vpop.f32.mrf.mxu0
      %v1269 = vpop.f32.mrf.mxu0
      %v1270 = vadd.f32 0.0, %v1269
      %v1271 = vpop.f32.mrf.mxu0
      %1272 = vmatprep.mubr.bf16.mxu0 0
      %1273 = vmatmul.mubr.bf16.gmra.mxu0 %v1182
      %v1274 = vpop.f32.mrf.mxu0
      %v1275 = vadd.f32 0.0, %v1274
      %v1276 = vpop.f32.mrf.mxu0
      %v1277 = vpop.f32.mrf.mxu0
      %v1278 = vadd.f32 0.0, %v1277
      %v1279 = vpop.f32.mrf.mxu0
      %1280 = vdwg.mxu0
      %v1281 = vadd.f32 %v1103, %v1219
      %v1282 = vadd.f32 %v1104, %v1222
      %v1283 = vadd.f32 %v1105, %v1227
      %v1284 = vadd.f32 %v1106, %v1230
      %v1285 = vadd.f32 %v1107, %v1235
      %v1286 = vadd.f32 %v1108, %v1238
      %v1287 = vadd.f32 %v1109, %v1243
      %v1288 = vadd.f32 %v1110, %v1246
      %v1289 = vadd.f32 %v1111, %v1251
      %v1290 = vadd.f32 %v1112, %v1254
      %v1291 = vadd.f32 %v1113, %v1259
      %v1292 = vadd.f32 %v1114, %v1262
      %v1293 = vadd.f32 %v1115, %v1267
      %v1294 = vadd.f32 %v1116, %v1270
      %v1295 = vadd.f32 %v1117, %v1275
      %v1296 = vadd.f32 %v1118, %v1278
      %v1297 = vld [vmem:[%s596 + $0x1] sm:$0xff]
      %v1298 = vld [vmem:[%s596 + $0x9] sm:$0xff]
      %v1299 = vld [vmem:[%s596 + $0x19] sm:$0xff]
      %v1300 = vld [vmem:[%s596 + $0x21] sm:$0xff]
      %v1301 = vld [vmem:[%s596 + $0x31] sm:$0xff]
      %v1302 = vld [vmem:[%s596 + $0x39] sm:$0xff]
      %v1303 = vld [vmem:[%s596 + $0x49] sm:$0xff]
      %v1304 = vld [vmem:[%s596 + $0x51] sm:$0xff]
      %v1305 = vld [vmem:[%s596 + $0x61] sm:$0xff]
      %v1306 = vld [vmem:[%s596 + $0x69] sm:$0xff]
      %v1307 = vld [vmem:[%s596 + $0x79] sm:$0xff]
      %v1308 = vld [vmem:[%s596 + $0x81] sm:$0xff]
      %v1309 = vld [vmem:[%s596 + $0x91] sm:$0xff]
      %v1310 = vld [vmem:[%s596 + $0x99] sm:$0xff]
      %v1311 = vld [vmem:[%s596 + $0xa9] sm:$0xff]
      %v1312 = vld [vmem:[%s596 + $0xb1] sm:$0xff]
      %v1313 = vpack.c.bf16 %v1298, %v1297
      %v1314 = vpack.c.bf16 %v1300, %v1299
      %v1315 = vpack.c.bf16 %v1302, %v1301
      %v1316 = vpack.c.bf16 %v1304, %v1303
      %v1317 = vpack.c.bf16 %v1306, %v1305
      %v1318 = vpack.c.bf16 %v1308, %v1307
      %v1319 = vpack.c.bf16 %v1310, %v1309
      %v1320 = vpack.c.bf16 %v1312, %v1311
      %s1321 = scalar_lea.vmem %s4, 64
      %v1322 = vld [vmem:[%s1321] sm:$0xf]
      %v1323 = vld [vmem:[%s1321 + $0x4] sm:$0xf]
      %v1324 = vld [vmem:[%s1321 + $0x8] sm:$0xf]
      %v1325 = vld [vmem:[%s1321 + $0xc] sm:$0xf]
      %v1330 = vunpack.c.l.b16 %v1322
      %v1331 = vunpack.c.l.b16 %v1323
      %v1332 = vunpack.c.l.b16 %v1324
      %v1333 = vunpack.c.l.b16 %v1325
      %v1334 = vpack.c.b16 %v1331, %v1330
      %v1335 = vpack.c.b16 %v1333, %v1332
      %v1339 = vsel %vm564, %v1313, 0
      %v1342 = vsel %vm564, %v1314, 0
      %v1345 = vsel %vm564, %v1315, 0
      %v1348 = vsel %vm564, %v1316, 0
      %v1351 = vsel %vm564, %v1317, 0
      %v1354 = vsel %vm564, %v1318, 0
      %v1357 = vsel %vm564, %v1319, 0
      %v1360 = vsel %vm564, %v1320, 0
      %1362 = vmatprep.subr.bf16.mxu0 0
      %1363 = vmatpush1.bf16.msra.mxu0 0
      %1364 = vmatprep.subr.bf16.mxu0 0
      %1365 = vmatpush1.bf16.msra.mxu0 0
      %1366 = vmatprep.subr.bf16.mxu0 0
      %1367 = vmatpush1.bf16.msra.mxu0 0
      %1368 = vmatprep.subr.bf16.mxu0 0
      %1369 = vmatpush1.bf16.msra.mxu0 0
      %1370 = vmatprep.subr.bf16.mxu0 0
      %1371 = vmatpush1.bf16.msra.mxu0 0
      %1372 = vmatprep.subr.bf16.mxu0 0
      %1373 = vmatpush1.bf16.msra.mxu0 0
      %1374 = vmatprep.subr.bf16.mxu0 0
      %1375 = vmatpush1.bf16.msra.mxu0 %v1335
      %1376 = vmatprep.subr.bf16.mxu0 0
      %1377 = vmatpush1.bf16.msra.mxu0 %v1334
      %1378 = vmatprep.subr.bf16.mxu0 0
      %1379 = vmatpush2.bf16.msra.mxu0 0
      %1380 = vmatprep.subr.bf16.mxu0 0
      %1381 = vmatpush2.bf16.msra.mxu0 0
      %1382 = vmatprep.subr.bf16.mxu0 0
      %1383 = vmatpush2.bf16.msra.mxu0 0
      %1384 = vmatprep.subr.bf16.mxu0 0
      %1385 = vmatpush2.bf16.msra.mxu0 0
      %1386 = vmatprep.subr.bf16.mxu0 0
      %1387 = vmatpush2.bf16.msra.mxu0 0
      %1388 = vmatprep.subr.bf16.mxu0 0
      %1389 = vmatpush2.bf16.msra.mxu0 0
      %1390 = vmatprep.subr.bf16.mxu0 0
      %1391 = vmatpush2.bf16.msra.mxu0 0
      %1392 = vmatprep.subr.bf16.mxu0 0
      %1393 = vmatpush2.bf16.msra.mxu0 0
      %1394 = vmatprep.mubr.bf16.mxu0 0
      %1395 = vmatmul.mubr.bf16.gmra.mxu0 %v1339
      %v1396 = vpop.f32.mrf.mxu0
      %v1397 = vadd.f32 0.0, %v1396
      %v1398 = vpop.f32.mrf.mxu0
      %v1399 = vpop.f32.mrf.mxu0
      %v1400 = vadd.f32 0.0, %v1399
      %v1401 = vpop.f32.mrf.mxu0
      %1402 = vmatprep.mubr.bf16.mxu0 0
      %1403 = vmatmul.mubr.bf16.gmra.mxu0 %v1342
      %v1404 = vpop.f32.mrf.mxu0
      %v1405 = vadd.f32 0.0, %v1404
      %v1406 = vpop.f32.mrf.mxu0
      %v1407 = vpop.f32.mrf.mxu0
      %v1408 = vadd.f32 0.0, %v1407
      %v1409 = vpop.f32.mrf.mxu0
      %1410 = vmatprep.mubr.bf16.mxu0 0
      %1411 = vmatmul.mubr.bf16.gmra.mxu0 %v1345
      %v1412 = vpop.f32.mrf.mxu0
      %v1413 = vadd.f32 0.0, %v1412
      %v1414 = vpop.f32.mrf.mxu0
      %v1415 = vpop.f32.mrf.mxu0
      %v1416 = vadd.f32 0.0, %v1415
      %v1417 = vpop.f32.mrf.mxu0
      %1418 = vmatprep.mubr.bf16.mxu0 0
      %1419 = vmatmul.mubr.bf16.gmra.mxu0 %v1348
      %v1420 = vpop.f32.mrf.mxu0
      %v1421 = vadd.f32 0.0, %v1420
      %v1422 = vpop.f32.mrf.mxu0
      %v1423 = vpop.f32.mrf.mxu0
      %v1424 = vadd.f32 0.0, %v1423
      %v1425 = vpop.f32.mrf.mxu0
      %1426 = vmatprep.mubr.bf16.mxu0 0
      %1427 = vmatmul.mubr.bf16.gmra.mxu0 %v1351
      %v1428 = vpop.f32.mrf.mxu0
      %v1429 = vadd.f32 0.0, %v1428
      %v1430 = vpop.f32.mrf.mxu0
      %v1431 = vpop.f32.mrf.mxu0
      %v1432 = vadd.f32 0.0, %v1431
      %v1433 = vpop.f32.mrf.mxu0
      %1434 = vmatprep.mubr.bf16.mxu0 0
      %1435 = vmatmul.mubr.bf16.gmra.mxu0 %v1354
      %v1436 = vpop.f32.mrf.mxu0
      %v1437 = vadd.f32 0.0, %v1436
      %v1438 = vpop.f32.mrf.mxu0
      %v1439 = vpop.f32.mrf.mxu0
      %v1440 = vadd.f32 0.0, %v1439
      %v1441 = vpop.f32.mrf.mxu0
      %1442 = vmatprep.mubr.bf16.mxu0 0
      %1443 = vmatmul.mubr.bf16.gmra.mxu0 %v1357
      %v1444 = vpop.f32.mrf.mxu0
      %v1445 = vadd.f32 0.0, %v1444
      %v1446 = vpop.f32.mrf.mxu0
      %v1447 = vpop.f32.mrf.mxu0
      %v1448 = vadd.f32 0.0, %v1447
      %v1449 = vpop.f32.mrf.mxu0
      %1450 = vmatprep.mubr.bf16.mxu0 0
      %1451 = vmatmul.mubr.bf16.gmra.mxu0 %v1360
      %v1452 = vpop.f32.mrf.mxu0
      %v1453 = vadd.f32 0.0, %v1452
      %v1454 = vpop.f32.mrf.mxu0
      %v1455 = vpop.f32.mrf.mxu0
      %v1456 = vadd.f32 0.0, %v1455
      %v1457 = vpop.f32.mrf.mxu0
      %1458 = vdwg.mxu0
      %v1459 = vadd.f32 %v1281, %v1397
      %v1460 = vadd.f32 %v1282, %v1400
      %v1461 = vadd.f32 %v1283, %v1405
      %v1462 = vadd.f32 %v1284, %v1408
      %v1463 = vadd.f32 %v1285, %v1413
      %v1464 = vadd.f32 %v1286, %v1416
      %v1465 = vadd.f32 %v1287, %v1421
      %v1466 = vadd.f32 %v1288, %v1424
      %v1467 = vadd.f32 %v1289, %v1429
      %v1468 = vadd.f32 %v1290, %v1432
      %v1469 = vadd.f32 %v1291, %v1437
      %v1470 = vadd.f32 %v1292, %v1440
      %v1471 = vadd.f32 %v1293, %v1445
      %v1472 = vadd.f32 %v1294, %v1448
      %v1473 = vadd.f32 %v1295, %v1453
      %v1474 = vadd.f32 %v1296, %v1456
      %v1475 = vld [vmem:[%s596 + $0x2] sm:$0xff]
      %v1476 = vld [vmem:[%s596 + $0xa] sm:$0xff]
      %v1477 = vld [vmem:[%s596 + $0x1a] sm:$0xff]
      %v1478 = vld [vmem:[%s596 + $0x22] sm:$0xff]
      %v1479 = vld [vmem:[%s596 + $0x32] sm:$0xff]
      %v1480 = vld [vmem:[%s596 + $0x3a] sm:$0xff]
      %v1481 = vld [vmem:[%s596 + $0x4a] sm:$0xff]
      %v1482 = vld [vmem:[%s596 + $0x52] sm:$0xff]
      %v1483 = vld [vmem:[%s596 + $0x62] sm:$0xff]
      %v1484 = vld [vmem:[%s596 + $0x6a] sm:$0xff]
      %v1485 = vld [vmem:[%s596 + $0x7a] sm:$0xff]
      %v1486 = vld [vmem:[%s596 + $0x82] sm:$0xff]
      %v1487 = vld [vmem:[%s596 + $0x92] sm:$0xff]
      %v1488 = vld [vmem:[%s596 + $0x9a] sm:$0xff]
      %v1489 = vld [vmem:[%s596 + $0xaa] sm:$0xff]
      %v1490 = vld [vmem:[%s596 + $0xb2] sm:$0xff]
      %v1491 = vpack.c.bf16 %v1476, %v1475
      %v1492 = vpack.c.bf16 %v1478, %v1477
      %v1493 = vpack.c.bf16 %v1480, %v1479
      %v1494 = vpack.c.bf16 %v1482, %v1481
      %v1495 = vpack.c.bf16 %v1484, %v1483
      %v1496 = vpack.c.bf16 %v1486, %v1485
      %v1497 = vpack.c.bf16 %v1488, %v1487
      %v1498 = vpack.c.bf16 %v1490, %v1489
      %s1499 = scalar_lea.vmem %s4, 80
      %v1500 = vld [vmem:[%s1499] sm:$0xf]
      %v1501 = vld [vmem:[%s1499 + $0x4] sm:$0xf]
      %v1502 = vld [vmem:[%s1499 + $0x8] sm:$0xf]
      %v1503 = vld [vmem:[%s1499 + $0xc] sm:$0xf]
      %v1508 = vunpack.c.l.b16 %v1500
      %v1509 = vunpack.c.l.b16 %v1501
      %v1510 = vunpack.c.l.b16 %v1502
      %v1511 = vunpack.c.l.b16 %v1503
      %v1512 = vpack.c.b16 %v1509, %v1508
      %v1513 = vpack.c.b16 %v1511, %v1510
      %v1517 = vsel %vm564, %v1491, 0
      %v1520 = vsel %vm564, %v1492, 0
      %v1523 = vsel %vm564, %v1493, 0
      %v1526 = vsel %vm564, %v1494, 0
      %v1529 = vsel %vm564, %v1495, 0
      %v1532 = vsel %vm564, %v1496, 0
      %v1535 = vsel %vm564, %v1497, 0
      %v1538 = vsel %vm564, %v1498, 0
      %1540 = vmatprep.subr.bf16.mxu0 0
      %1541 = vmatpush1.bf16.msra.mxu0 0
      %1542 = vmatprep.subr.bf16.mxu0 0
      %1543 = vmatpush1.bf16.msra.mxu0 0
      %1544 = vmatprep.subr.bf16.mxu0 0
      %1545 = vmatpush1.bf16.msra.mxu0 0
      %1546 = vmatprep.subr.bf16.mxu0 0
      %1547 = vmatpush1.bf16.msra.mxu0 0
      %1548 = vmatprep.subr.bf16.mxu0 0
      %1549 = vmatpush1.bf16.msra.mxu0 0
      %1550 = vmatprep.subr.bf16.mxu0 0
      %1551 = vmatpush1.bf16.msra.mxu0 0
      %1552 = vmatprep.subr.bf16.mxu0 0
      %1553 = vmatpush1.bf16.msra.mxu0 %v1513
      %1554 = vmatprep.subr.bf16.mxu0 0
      %1555 = vmatpush1.bf16.msra.mxu0 %v1512
      %1556 = vmatprep.subr.bf16.mxu0 0
      %1557 = vmatpush2.bf16.msra.mxu0 0
      %1558 = vmatprep.subr.bf16.mxu0 0
      %1559 = vmatpush2.bf16.msra.mxu0 0
      %1560 = vmatprep.subr.bf16.mxu0 0
      %1561 = vmatpush2.bf16.msra.mxu0 0
      %1562 = vmatprep.subr.bf16.mxu0 0
      %1563 = vmatpush2.bf16.msra.mxu0 0
      %1564 = vmatprep.subr.bf16.mxu0 0
      %1565 = vmatpush2.bf16.msra.mxu0 0
      %1566 = vmatprep.subr.bf16.mxu0 0
      %1567 = vmatpush2.bf16.msra.mxu0 0
      %1568 = vmatprep.subr.bf16.mxu0 0
      %1569 = vmatpush2.bf16.msra.mxu0 0
      %1570 = vmatprep.subr.bf16.mxu0 0
      %1571 = vmatpush2.bf16.msra.mxu0 0
      %1572 = vmatprep.mubr.bf16.mxu0 0
      %1573 = vmatmul.mubr.bf16.gmra.mxu0 %v1517
      %v1574 = vpop.f32.mrf.mxu0
      %v1575 = vadd.f32 0.0, %v1574
      %v1576 = vpop.f32.mrf.mxu0
      %v1577 = vpop.f32.mrf.mxu0
      %v1578 = vadd.f32 0.0, %v1577
      %v1579 = vpop.f32.mrf.mxu0
      %1580 = vmatprep.mubr.bf16.mxu0 0
      %1581 = vmatmul.mubr.bf16.gmra.mxu0 %v1520
      %v1582 = vpop.f32.mrf.mxu0
      %v1583 = vadd.f32 0.0, %v1582
      %v1584 = vpop.f32.mrf.mxu0
      %v1585 = vpop.f32.mrf.mxu0
      %v1586 = vadd.f32 0.0, %v1585
      %v1587 = vpop.f32.mrf.mxu0
      %1588 = vmatprep.mubr.bf16.mxu0 0
      %1589 = vmatmul.mubr.bf16.gmra.mxu0 %v1523
      %v1590 = vpop.f32.mrf.mxu0
      %v1591 = vadd.f32 0.0, %v1590
      %v1592 = vpop.f32.mrf.mxu0
      %v1593 = vpop.f32.mrf.mxu0
      %v1594 = vadd.f32 0.0, %v1593
      %v1595 = vpop.f32.mrf.mxu0
      %1596 = vmatprep.mubr.bf16.mxu0 0
      %1597 = vmatmul.mubr.bf16.gmra.mxu0 %v1526
      %v1598 = vpop.f32.mrf.mxu0
      %v1599 = vadd.f32 0.0, %v1598
      %v1600 = vpop.f32.mrf.mxu0
      %v1601 = vpop.f32.mrf.mxu0
      %v1602 = vadd.f32 0.0, %v1601
      %v1603 = vpop.f32.mrf.mxu0
      %1604 = vmatprep.mubr.bf16.mxu0 0
      %1605 = vmatmul.mubr.bf16.gmra.mxu0 %v1529
      %v1606 = vpop.f32.mrf.mxu0
      %v1607 = vadd.f32 0.0, %v1606
      %v1608 = vpop.f32.mrf.mxu0
      %v1609 = vpop.f32.mrf.mxu0
      %v1610 = vadd.f32 0.0, %v1609
      %v1611 = vpop.f32.mrf.mxu0
      %1612 = vmatprep.mubr.bf16.mxu0 0
      %1613 = vmatmul.mubr.bf16.gmra.mxu0 %v1532
      %v1614 = vpop.f32.mrf.mxu0
      %v1615 = vadd.f32 0.0, %v1614
      %v1616 = vpop.f32.mrf.mxu0
      %v1617 = vpop.f32.mrf.mxu0
      %v1618 = vadd.f32 0.0, %v1617
      %v1619 = vpop.f32.mrf.mxu0
      %1620 = vmatprep.mubr.bf16.mxu0 0
      %1621 = vmatmul.mubr.bf16.gmra.mxu0 %v1535
      %v1622 = vpop.f32.mrf.mxu0
      %v1623 = vadd.f32 0.0, %v1622
      %v1624 = vpop.f32.mrf.mxu0
      %v1625 = vpop.f32.mrf.mxu0
      %v1626 = vadd.f32 0.0, %v1625
      %v1627 = vpop.f32.mrf.mxu0
      %1628 = vmatprep.mubr.bf16.mxu0 0
      %1629 = vmatmul.mubr.bf16.gmra.mxu0 %v1538
      %v1630 = vpop.f32.mrf.mxu0
      %v1631 = vadd.f32 0.0, %v1630
      %v1632 = vpop.f32.mrf.mxu0
      %v1633 = vpop.f32.mrf.mxu0
      %v1634 = vadd.f32 0.0, %v1633
      %v1635 = vpop.f32.mrf.mxu0
      %1636 = vdwg.mxu0
      %v1637 = vadd.f32 %v1459, %v1575
      %v1638 = vadd.f32 %v1460, %v1578
      %v1639 = vadd.f32 %v1461, %v1583
      %v1640 = vadd.f32 %v1462, %v1586
      %v1641 = vadd.f32 %v1463, %v1591
      %v1642 = vadd.f32 %v1464, %v1594
      %v1643 = vadd.f32 %v1465, %v1599
      %v1644 = vadd.f32 %v1466, %v1602
      %v1645 = vadd.f32 %v1467, %v1607
      %v1646 = vadd.f32 %v1468, %v1610
      %v1647 = vadd.f32 %v1469, %v1615
      %v1648 = vadd.f32 %v1470, %v1618
      %v1649 = vadd.f32 %v1471, %v1623
      %v1650 = vadd.f32 %v1472, %v1626
      %v1651 = vadd.f32 %v1473, %v1631
      %v1652 = vadd.f32 %v1474, %v1634
      %s1653 = scalar_lea.vmem [#allocation2], 48
      %v1654 = vld [vmem:[%s1653] sm:$0xff]
      %v1655 = vld [vmem:[%s1653 + $0x8] sm:$0xff]
      %v1656 = vld [vmem:[%s1653 + $0x18] sm:$0xff]
      %v1657 = vld [vmem:[%s1653 + $0x20] sm:$0xff]
      %v1658 = vld [vmem:[%s1653 + $0x30] sm:$0xff]
      %v1659 = vld [vmem:[%s1653 + $0x38] sm:$0xff]
      %v1660 = vld [vmem:[%s1653 + $0x48] sm:$0xff]
      %v1661 = vld [vmem:[%s1653 + $0x50] sm:$0xff]
      %v1662 = vld [vmem:[%s1653 + $0x60] sm:$0xff]
      %v1663 = vld [vmem:[%s1653 + $0x68] sm:$0xff]
      %v1664 = vld [vmem:[%s1653 + $0x78] sm:$0xff]
      %v1665 = vld [vmem:[%s1653 + $0x80] sm:$0xff]
      %v1666 = vld [vmem:[%s1653 + $0x90] sm:$0xff]
      %v1667 = vld [vmem:[%s1653 + $0x98] sm:$0xff]
      %v1668 = vld [vmem:[%s1653 + $0xa8] sm:$0xff]
      %v1669 = vld [vmem:[%s1653 + $0xb0] sm:$0xff]
      %v1670 = vpack.c.bf16 %v1655, %v1654
      %v1671 = vpack.c.bf16 %v1657, %v1656
      %v1672 = vpack.c.bf16 %v1659, %v1658
      %v1673 = vpack.c.bf16 %v1661, %v1660
      %v1674 = vpack.c.bf16 %v1663, %v1662
      %v1675 = vpack.c.bf16 %v1665, %v1664
      %v1676 = vpack.c.bf16 %v1667, %v1666
      %v1677 = vpack.c.bf16 %v1669, %v1668
      %s1678 = scalar_lea.vmem %s4, 96
      %v1679 = vld [vmem:[%s1678] sm:$0xf]
      %v1680 = vld [vmem:[%s1678 + $0x4] sm:$0xf]
      %v1681 = vld [vmem:[%s1678 + $0x8] sm:$0xf]
      %v1682 = vld [vmem:[%s1678 + $0xc] sm:$0xf]
      %v1687 = vunpack.c.l.b16 %v1679
      %v1688 = vunpack.c.l.b16 %v1680
      %v1689 = vunpack.c.l.b16 %v1681
      %v1690 = vunpack.c.l.b16 %v1682
      %v1691 = vpack.c.b16 %v1688, %v1687
      %v1692 = vpack.c.b16 %v1690, %v1689
      %v1696 = vsel %vm564, %v1670, 0
      %v1699 = vsel %vm564, %v1671, 0
      %v1702 = vsel %vm564, %v1672, 0
      %v1705 = vsel %vm564, %v1673, 0
      %v1708 = vsel %vm564, %v1674, 0
      %v1711 = vsel %vm564, %v1675, 0
      %v1714 = vsel %vm564, %v1676, 0
      %v1717 = vsel %vm564, %v1677, 0
      %1719 = vmatprep.subr.bf16.mxu0 0
      %1720 = vmatpush1.bf16.msra.mxu0 0
      %1721 = vmatprep.subr.bf16.mxu0 0
      %1722 = vmatpush1.bf16.msra.mxu0 0
      %1723 = vmatprep.subr.bf16.mxu0 0
      %1724 = vmatpush1.bf16.msra.mxu0 0
      %1725 = vmatprep.subr.bf16.mxu0 0
      %1726 = vmatpush1.bf16.msra.mxu0 0
      %1727 = vmatprep.subr.bf16.mxu0 0
      %1728 = vmatpush1.bf16.msra.mxu0 0
      %1729 = vmatprep.subr.bf16.mxu0 0
      %1730 = vmatpush1.bf16.msra.mxu0 0
      %1731 = vmatprep.subr.bf16.mxu0 0
      %1732 = vmatpush1.bf16.msra.mxu0 %v1692
      %1733 = vmatprep.subr.bf16.mxu0 0
      %1734 = vmatpush1.bf16.msra.mxu0 %v1691
      %1735 = vmatprep.subr.bf16.mxu0 0
      %1736 = vmatpush2.bf16.msra.mxu0 0
      %1737 = vmatprep.subr.bf16.mxu0 0
      %1738 = vmatpush2.bf16.msra.mxu0 0
      %1739 = vmatprep.subr.bf16.mxu0 0
      %1740 = vmatpush2.bf16.msra.mxu0 0
      %1741 = vmatprep.subr.bf16.mxu0 0
      %1742 = vmatpush2.bf16.msra.mxu0 0
      %1743 = vmatprep.subr.bf16.mxu0 0
      %1744 = vmatpush2.bf16.msra.mxu0 0
      %1745 = vmatprep.subr.bf16.mxu0 0
      %1746 = vmatpush2.bf16.msra.mxu0 0
      %1747 = vmatprep.subr.bf16.mxu0 0
      %1748 = vmatpush2.bf16.msra.mxu0 0
      %1749 = vmatprep.subr.bf16.mxu0 0
      %1750 = vmatpush2.bf16.msra.mxu0 0
      %1751 = vmatprep.mubr.bf16.mxu0 0
      %1752 = vmatmul.mubr.bf16.gmra.mxu0 %v1696
      %v1753 = vpop.f32.mrf.mxu0
      %v1754 = vadd.f32 0.0, %v1753
      %v1755 = vpop.f32.mrf.mxu0
      %v1756 = vpop.f32.mrf.mxu0
      %v1757 = vadd.f32 0.0, %v1756
      %v1758 = vpop.f32.mrf.mxu0
      %1759 = vmatprep.mubr.bf16.mxu0 0
      %1760 = vmatmul.mubr.bf16.gmra.mxu0 %v1699
      %v1761 = vpop.f32.mrf.mxu0
      %v1762 = vadd.f32 0.0, %v1761
      %v1763 = vpop.f32.mrf.mxu0
      %v1764 = vpop.f32.mrf.mxu0
      %v1765 = vadd.f32 0.0, %v1764
      %v1766 = vpop.f32.mrf.mxu0
      %1767 = vmatprep.mubr.bf16.mxu0 0
      %1768 = vmatmul.mubr.bf16.gmra.mxu0 %v1702
      %v1769 = vpop.f32.mrf.mxu0
      %v1770 = vadd.f32 0.0, %v1769
      %v1771 = vpop.f32.mrf.mxu0
      %v1772 = vpop.f32.mrf.mxu0
      %v1773 = vadd.f32 0.0, %v1772
      %v1774 = vpop.f32.mrf.mxu0
      %1775 = vmatprep.mubr.bf16.mxu0 0
      %1776 = vmatmul.mubr.bf16.gmra.mxu0 %v1705
      %v1777 = vpop.f32.mrf.mxu0
      %v1778 = vadd.f32 0.0, %v1777
      %v1779 = vpop.f32.mrf.mxu0
      %v1780 = vpop.f32.mrf.mxu0
      %v1781 = vadd.f32 0.0, %v1780
      %v1782 = vpop.f32.mrf.mxu0
      %1783 = vmatprep.mubr.bf16.mxu0 0
      %1784 = vmatmul.mubr.bf16.gmra.mxu0 %v1708
      %v1785 = vpop.f32.mrf.mxu0
      %v1786 = vadd.f32 0.0, %v1785
      %v1787 = vpop.f32.mrf.mxu0
      %v1788 = vpop.f32.mrf.mxu0
      %v1789 = vadd.f32 0.0, %v1788
      %v1790 = vpop.f32.mrf.mxu0
      %1791 = vmatprep.mubr.bf16.mxu0 0
      %1792 = vmatmul.mubr.bf16.gmra.mxu0 %v1711
      %v1793 = vpop.f32.mrf.mxu0
      %v1794 = vadd.f32 0.0, %v1793
      %v1795 = vpop.f32.mrf.mxu0
      %v1796 = vpop.f32.mrf.mxu0
      %v1797 = vadd.f32 0.0, %v1796
      %v1798 = vpop.f32.mrf.mxu0
      %1799 = vmatprep.mubr.bf16.mxu0 0
      %1800 = vmatmul.mubr.bf16.gmra.mxu0 %v1714
      %v1801 = vpop.f32.mrf.mxu0
      %v1802 = vadd.f32 0.0, %v1801
      %v1803 = vpop.f32.mrf.mxu0
      %v1804 = vpop.f32.mrf.mxu0
      %v1805 = vadd.f32 0.0, %v1804
      %v1806 = vpop.f32.mrf.mxu0
      %1807 = vmatprep.mubr.bf16.mxu0 0
      %1808 = vmatmul.mubr.bf16.gmra.mxu0 %v1717
      %v1809 = vpop.f32.mrf.mxu0
      %v1810 = vadd.f32 0.0, %v1809
      %v1811 = vpop.f32.mrf.mxu0
      %v1812 = vpop.f32.mrf.mxu0
      %v1813 = vadd.f32 0.0, %v1812
      %v1814 = vpop.f32.mrf.mxu0
      %1815 = vdwg.mxu0
      %v1816 = vadd.f32 %v1637, %v1754
      %v1817 = vadd.f32 %v1638, %v1757
      %v1818 = vadd.f32 %v1639, %v1762
      %v1819 = vadd.f32 %v1640, %v1765
      %v1820 = vadd.f32 %v1641, %v1770
      %v1821 = vadd.f32 %v1642, %v1773
      %v1822 = vadd.f32 %v1643, %v1778
      %v1823 = vadd.f32 %v1644, %v1781
      %v1824 = vadd.f32 %v1645, %v1786
      %v1825 = vadd.f32 %v1646, %v1789
      %v1826 = vadd.f32 %v1647, %v1794
      %v1827 = vadd.f32 %v1648, %v1797
      %v1828 = vadd.f32 %v1649, %v1802
      %v1829 = vadd.f32 %v1650, %v1805
      %v1830 = vadd.f32 %v1651, %v1810
      %v1831 = vadd.f32 %v1652, %v1813
      %v1832 = vld [vmem:[%s1653 + $0x1] sm:$0xff]
      %v1833 = vld [vmem:[%s1653 + $0x9] sm:$0xff]
      %v1834 = vld [vmem:[%s1653 + $0x19] sm:$0xff]
      %v1835 = vld [vmem:[%s1653 + $0x21] sm:$0xff]
      %v1836 = vld [vmem:[%s1653 + $0x31] sm:$0xff]
      %v1837 = vld [vmem:[%s1653 + $0x39] sm:$0xff]
      %v1838 = vld [vmem:[%s1653 + $0x49] sm:$0xff]
      %v1839 = vld [vmem:[%s1653 + $0x51] sm:$0xff]
      %v1840 = vld [vmem:[%s1653 + $0x61] sm:$0xff]
      %v1841 = vld [vmem:[%s1653 + $0x69] sm:$0xff]
      %v1842 = vld [vmem:[%s1653 + $0x79] sm:$0xff]
      %v1843 = vld [vmem:[%s1653 + $0x81] sm:$0xff]
      %v1844 = vld [vmem:[%s1653 + $0x91] sm:$0xff]
      %v1845 = vld [vmem:[%s1653 + $0x99] sm:$0xff]
      %v1846 = vld [vmem:[%s1653 + $0xa9] sm:$0xff]
      %v1847 = vld [vmem:[%s1653 + $0xb1] sm:$0xff]
      %v1848 = vpack.c.bf16 %v1833, %v1832
      %v1849 = vpack.c.bf16 %v1835, %v1834
      %v1850 = vpack.c.bf16 %v1837, %v1836
      %v1851 = vpack.c.bf16 %v1839, %v1838
      %v1852 = vpack.c.bf16 %v1841, %v1840
      %v1853 = vpack.c.bf16 %v1843, %v1842
      %v1854 = vpack.c.bf16 %v1845, %v1844
      %v1855 = vpack.c.bf16 %v1847, %v1846
      %s1856 = scalar_lea.vmem %s4, 112
      %v1857 = vld [vmem:[%s1856] sm:$0xf]
      %v1858 = vld [vmem:[%s1856 + $0x4] sm:$0xf]
      %v1859 = vld [vmem:[%s1856 + $0x8] sm:$0xf]
      %v1860 = vld [vmem:[%s1856 + $0xc] sm:$0xf]
      %v1865 = vunpack.c.l.b16 %v1857
      %v1866 = vunpack.c.l.b16 %v1858
      %v1867 = vunpack.c.l.b16 %v1859
      %v1868 = vunpack.c.l.b16 %v1860
      %v1869 = vpack.c.b16 %v1866, %v1865
      %v1870 = vpack.c.b16 %v1868, %v1867
      %v1874 = vsel %vm564, %v1848, 0
      %v1877 = vsel %vm564, %v1849, 0
      %v1880 = vsel %vm564, %v1850, 0
      %v1883 = vsel %vm564, %v1851, 0
      %v1886 = vsel %vm564, %v1852, 0
      %v1889 = vsel %vm564, %v1853, 0
      %v1892 = vsel %vm564, %v1854, 0
      %v1895 = vsel %vm564, %v1855, 0
      %1897 = vmatprep.subr.bf16.mxu0 0
      %1898 = vmatpush1.bf16.msra.mxu0 0
      %1899 = vmatprep.subr.bf16.mxu0 0
      %1900 = vmatpush1.bf16.msra.mxu0 0
      %1901 = vmatprep.subr.bf16.mxu0 0
      %1902 = vmatpush1.bf16.msra.mxu0 0
      %1903 = vmatprep.subr.bf16.mxu0 0
      %1904 = vmatpush1.bf16.msra.mxu0 0
      %1905 = vmatprep.subr.bf16.mxu0 0
      %1906 = vmatpush1.bf16.msra.mxu0 0
      %1907 = vmatprep.subr.bf16.mxu0 0
      %1908 = vmatpush1.bf16.msra.mxu0 0
      %1909 = vmatprep.subr.bf16.mxu0 0
      %1910 = vmatpush1.bf16.msra.mxu0 %v1870
      %1911 = vmatprep.subr.bf16.mxu0 0
      %1912 = vmatpush1.bf16.msra.mxu0 %v1869
      %1913 = vmatprep.subr.bf16.mxu0 0
      %1914 = vmatpush2.bf16.msra.mxu0 0
      %1915 = vmatprep.subr.bf16.mxu0 0
      %1916 = vmatpush2.bf16.msra.mxu0 0
      %1917 = vmatprep.subr.bf16.mxu0 0
      %1918 = vmatpush2.bf16.msra.mxu0 0
      %1919 = vmatprep.subr.bf16.mxu0 0
      %1920 = vmatpush2.bf16.msra.mxu0 0
      %1921 = vmatprep.subr.bf16.mxu0 0
      %1922 = vmatpush2.bf16.msra.mxu0 0
      %1923 = vmatprep.subr.bf16.mxu0 0
      %1924 = vmatpush2.bf16.msra.mxu0 0
      %1925 = vmatprep.subr.bf16.mxu0 0
      %1926 = vmatpush2.bf16.msra.mxu0 0
      %1927 = vmatprep.subr.bf16.mxu0 0
      %1928 = vmatpush2.bf16.msra.mxu0 0
      %1929 = vmatprep.mubr.bf16.mxu0 0
      %1930 = vmatmul.mubr.bf16.gmra.mxu0 %v1874
      %v1931 = vpop.f32.mrf.mxu0
      %v1932 = vadd.f32 0.0, %v1931
      %v1933 = vpop.f32.mrf.mxu0
      %v1934 = vpop.f32.mrf.mxu0
      %v1935 = vadd.f32 0.0, %v1934
      %v1936 = vpop.f32.mrf.mxu0
      %1937 = vmatprep.mubr.bf16.mxu0 0
      %1938 = vmatmul.mubr.bf16.gmra.mxu0 %v1877
      %v1939 = vpop.f32.mrf.mxu0
      %v1940 = vadd.f32 0.0, %v1939
      %v1941 = vpop.f32.mrf.mxu0
      %v1942 = vpop.f32.mrf.mxu0
      %v1943 = vadd.f32 0.0, %v1942
      %v1944 = vpop.f32.mrf.mxu0
      %1945 = vmatprep.mubr.bf16.mxu0 0
      %1946 = vmatmul.mubr.bf16.gmra.mxu0 %v1880
      %v1947 = vpop.f32.mrf.mxu0
      %v1948 = vadd.f32 0.0, %v1947
      %v1949 = vpop.f32.mrf.mxu0
      %v1950 = vpop.f32.mrf.mxu0
      %v1951 = vadd.f32 0.0, %v1950
      %v1952 = vpop.f32.mrf.mxu0
      %1953 = vmatprep.mubr.bf16.mxu0 0
      %1954 = vmatmul.mubr.bf16.gmra.mxu0 %v1883
      %v1955 = vpop.f32.mrf.mxu0
      %v1956 = vadd.f32 0.0, %v1955
      %v1957 = vpop.f32.mrf.mxu0
      %v1958 = vpop.f32.mrf.mxu0
      %v1959 = vadd.f32 0.0, %v1958
      %v1960 = vpop.f32.mrf.mxu0
      %1961 = vmatprep.mubr.bf16.mxu0 0
      %1962 = vmatmul.mubr.bf16.gmra.mxu0 %v1886
      %v1963 = vpop.f32.mrf.mxu0
      %v1964 = vadd.f32 0.0, %v1963
      %v1965 = vpop.f32.mrf.mxu0
      %v1966 = vpop.f32.mrf.mxu0
      %v1967 = vadd.f32 0.0, %v1966
      %v1968 = vpop.f32.mrf.mxu0
      %1969 = vmatprep.mubr.bf16.mxu0 0
      %1970 = vmatmul.mubr.bf16.gmra.mxu0 %v1889
      %v1971 = vpop.f32.mrf.mxu0
      %v1972 = vadd.f32 0.0, %v1971
      %v1973 = vpop.f32.mrf.mxu0
      %v1974 = vpop.f32.mrf.mxu0
      %v1975 = vadd.f32 0.0, %v1974
      %v1976 = vpop.f32.mrf.mxu0
      %1977 = vmatprep.mubr.bf16.mxu0 0
      %1978 = vmatmul.mubr.bf16.gmra.mxu0 %v1892
      %v1979 = vpop.f32.mrf.mxu0
      %v1980 = vadd.f32 0.0, %v1979
      %v1981 = vpop.f32.mrf.mxu0
      %v1982 = vpop.f32.mrf.mxu0
      %v1983 = vadd.f32 0.0, %v1982
      %v1984 = vpop.f32.mrf.mxu0
      %1985 = vmatprep.mubr.bf16.mxu0 0
      %1986 = vmatmul.mubr.bf16.gmra.mxu0 %v1895
      %v1987 = vpop.f32.mrf.mxu0
      %v1988 = vadd.f32 0.0, %v1987
      %v1989 = vpop.f32.mrf.mxu0
      %v1990 = vpop.f32.mrf.mxu0
      %v1991 = vadd.f32 0.0, %v1990
      %v1992 = vpop.f32.mrf.mxu0
      %1993 = vdwg.mxu0
      %v1994 = vadd.f32 %v1816, %v1932
      %v1995 = vadd.f32 %v1817, %v1935
      %v1996 = vadd.f32 %v1818, %v1940
      %v1997 = vadd.f32 %v1819, %v1943
      %v1998 = vadd.f32 %v1820, %v1948
      %v1999 = vadd.f32 %v1821, %v1951
      %v2000 = vadd.f32 %v1822, %v1956
      %v2001 = vadd.f32 %v1823, %v1959
      %v2002 = vadd.f32 %v1824, %v1964
      %v2003 = vadd.f32 %v1825, %v1967
      %v2004 = vadd.f32 %v1826, %v1972
      %v2005 = vadd.f32 %v1827, %v1975
      %v2006 = vadd.f32 %v1828, %v1980
      %v2007 = vadd.f32 %v1829, %v1983
      %v2008 = vadd.f32 %v1830, %v1988
      %v2009 = vadd.f32 %v1831, %v1991
      %v2010 = vld [vmem:[%s1653 + $0x2] sm:$0xff]
      %v2011 = vld [vmem:[%s1653 + $0xa] sm:$0xff]
      %v2012 = vld [vmem:[%s1653 + $0x1a] sm:$0xff]
      %v2013 = vld [vmem:[%s1653 + $0x22] sm:$0xff]
      %v2014 = vld [vmem:[%s1653 + $0x32] sm:$0xff]
      %v2015 = vld [vmem:[%s1653 + $0x3a] sm:$0xff]
      %v2016 = vld [vmem:[%s1653 + $0x4a] sm:$0xff]
      %v2017 = vld [vmem:[%s1653 + $0x52] sm:$0xff]
      %v2018 = vld [vmem:[%s1653 + $0x62] sm:$0xff]
      %v2019 = vld [vmem:[%s1653 + $0x6a] sm:$0xff]
      %v2020 = vld [vmem:[%s1653 + $0x7a] sm:$0xff]
      %v2021 = vld [vmem:[%s1653 + $0x82] sm:$0xff]
      %v2022 = vld [vmem:[%s1653 + $0x92] sm:$0xff]
      %v2023 = vld [vmem:[%s1653 + $0x9a] sm:$0xff]
      %v2024 = vld [vmem:[%s1653 + $0xaa] sm:$0xff]
      %v2025 = vld [vmem:[%s1653 + $0xb2] sm:$0xff]
      %v2026 = vpack.c.bf16 %v2011, %v2010
      %v2027 = vpack.c.bf16 %v2013, %v2012
      %v2028 = vpack.c.bf16 %v2015, %v2014
      %v2029 = vpack.c.bf16 %v2017, %v2016
      %v2030 = vpack.c.bf16 %v2019, %v2018
      %v2031 = vpack.c.bf16 %v2021, %v2020
      %v2032 = vpack.c.bf16 %v2023, %v2022
      %v2033 = vpack.c.bf16 %v2025, %v2024
      %s2034 = scalar_lea.vmem %s4, 128
      %v2035 = vld [vmem:[%s2034] sm:$0xf]
      %v2036 = vld [vmem:[%s2034 + $0x4] sm:$0xf]
      %v2037 = vld [vmem:[%s2034 + $0x8] sm:$0xf]
      %v2038 = vld [vmem:[%s2034 + $0xc] sm:$0xf]
      %v2043 = vunpack.c.l.b16 %v2035
      %v2044 = vunpack.c.l.b16 %v2036
      %v2045 = vunpack.c.l.b16 %v2037
      %v2046 = vunpack.c.l.b16 %v2038
      %v2047 = vpack.c.b16 %v2044, %v2043
      %v2048 = vpack.c.b16 %v2046, %v2045
      %v2052 = vsel %vm564, %v2026, 0
      %v2055 = vsel %vm564, %v2027, 0
      %v2058 = vsel %vm564, %v2028, 0
      %v2061 = vsel %vm564, %v2029, 0
      %v2064 = vsel %vm564, %v2030, 0
      %v2067 = vsel %vm564, %v2031, 0
      %v2070 = vsel %vm564, %v2032, 0
      %v2073 = vsel %vm564, %v2033, 0
      %2075 = vmatprep.subr.bf16.mxu0 0
      %2076 = vmatpush1.bf16.msra.mxu0 0
      %2077 = vmatprep.subr.bf16.mxu0 0
      %2078 = vmatpush1.bf16.msra.mxu0 0
      %2079 = vmatprep.subr.bf16.mxu0 0
      %2080 = vmatpush1.bf16.msra.mxu0 0
      %2081 = vmatprep.subr.bf16.mxu0 0
      %2082 = vmatpush1.bf16.msra.mxu0 0
      %2083 = vmatprep.subr.bf16.mxu0 0
      %2084 = vmatpush1.bf16.msra.mxu0 0
      %2085 = vmatprep.subr.bf16.mxu0 0
      %2086 = vmatpush1.bf16.msra.mxu0 0
      %2087 = vmatprep.subr.bf16.mxu0 0
      %2088 = vmatpush1.bf16.msra.mxu0 %v2048
      %2089 = vmatprep.subr.bf16.mxu0 0
      %2090 = vmatpush1.bf16.msra.mxu0 %v2047
      %2091 = vmatprep.subr.bf16.mxu0 0
      %2092 = vmatpush2.bf16.msra.mxu0 0
      %2093 = vmatprep.subr.bf16.mxu0 0
      %2094 = vmatpush2.bf16.msra.mxu0 0
      %2095 = vmatprep.subr.bf16.mxu0 0
      %2096 = vmatpush2.bf16.msra.mxu0 0
      %2097 = vmatprep.subr.bf16.mxu0 0
      %2098 = vmatpush2.bf16.msra.mxu0 0
      %2099 = vmatprep.subr.bf16.mxu0 0
      %2100 = vmatpush2.bf16.msra.mxu0 0
      %2101 = vmatprep.subr.bf16.mxu0 0
      %2102 = vmatpush2.bf16.msra.mxu0 0
      %2103 = vmatprep.subr.bf16.mxu0 0
      %2104 = vmatpush2.bf16.msra.mxu0 0
      %2105 = vmatprep.subr.bf16.mxu0 0
      %2106 = vmatpush2.bf16.msra.mxu0 0
      %2107 = vmatprep.mubr.bf16.mxu0 0
      %2108 = vmatmul.mubr.bf16.gmra.mxu0 %v2052
      %v2109 = vpop.f32.mrf.mxu0
      %v2110 = vadd.f32 0.0, %v2109
      %v2111 = vpop.f32.mrf.mxu0
      %v2112 = vpop.f32.mrf.mxu0
      %v2113 = vadd.f32 0.0, %v2112
      %v2114 = vpop.f32.mrf.mxu0
      %2115 = vmatprep.mubr.bf16.mxu0 0
      %2116 = vmatmul.mubr.bf16.gmra.mxu0 %v2055
      %v2117 = vpop.f32.mrf.mxu0
      %v2118 = vadd.f32 0.0, %v2117
      %v2119 = vpop.f32.mrf.mxu0
      %v2120 = vpop.f32.mrf.mxu0
      %v2121 = vadd.f32 0.0, %v2120
      %v2122 = vpop.f32.mrf.mxu0
      %2123 = vmatprep.mubr.bf16.mxu0 0
      %2124 = vmatmul.mubr.bf16.gmra.mxu0 %v2058
      %v2125 = vpop.f32.mrf.mxu0
      %v2126 = vadd.f32 0.0, %v2125
      %v2127 = vpop.f32.mrf.mxu0
      %v2128 = vpop.f32.mrf.mxu0
      %v2129 = vadd.f32 0.0, %v2128
      %v2130 = vpop.f32.mrf.mxu0
      %2131 = vmatprep.mubr.bf16.mxu0 0
      %2132 = vmatmul.mubr.bf16.gmra.mxu0 %v2061
      %v2133 = vpop.f32.mrf.mxu0
      %v2134 = vadd.f32 0.0, %v2133
      %v2135 = vpop.f32.mrf.mxu0
      %v2136 = vpop.f32.mrf.mxu0
      %v2137 = vadd.f32 0.0, %v2136
      %v2138 = vpop.f32.mrf.mxu0
      %2139 = vmatprep.mubr.bf16.mxu0 0
      %2140 = vmatmul.mubr.bf16.gmra.mxu0 %v2064
      %v2141 = vpop.f32.mrf.mxu0
      %v2142 = vadd.f32 0.0, %v2141
      %v2143 = vpop.f32.mrf.mxu0
      %v2144 = vpop.f32.mrf.mxu0
      %v2145 = vadd.f32 0.0, %v2144
      %v2146 = vpop.f32.mrf.mxu0
      %2147 = vmatprep.mubr.bf16.mxu0 0
      %2148 = vmatmul.mubr.bf16.gmra.mxu0 %v2067
      %v2149 = vpop.f32.mrf.mxu0
      %v2150 = vadd.f32 0.0, %v2149
      %v2151 = vpop.f32.mrf.mxu0
      %v2152 = vpop.f32.mrf.mxu0
      %v2153 = vadd.f32 0.0, %v2152
      %v2154 = vpop.f32.mrf.mxu0
      %2155 = vmatprep.mubr.bf16.mxu0 0
      %2156 = vmatmul.mubr.bf16.gmra.mxu0 %v2070
      %v2157 = vpop.f32.mrf.mxu0
      %v2158 = vadd.f32 0.0, %v2157
      %v2159 = vpop.f32.mrf.mxu0
      %v2160 = vpop.f32.mrf.mxu0
      %v2161 = vadd.f32 0.0, %v2160
      %v2162 = vpop.f32.mrf.mxu0
      %2163 = vmatprep.mubr.bf16.mxu0 0
      %2164 = vmatmul.mubr.bf16.gmra.mxu0 %v2073
      %v2165 = vpop.f32.mrf.mxu0
      %v2166 = vadd.f32 0.0, %v2165
      %v2167 = vpop.f32.mrf.mxu0
      %v2168 = vpop.f32.mrf.mxu0
      %v2169 = vadd.f32 0.0, %v2168
      %v2170 = vpop.f32.mrf.mxu0
      %2171 = vdwg.mxu0
      %v2172 = vadd.f32 %v1994, %v2110
      %v2173 = vadd.f32 %v1995, %v2113
      %v2174 = vadd.f32 %v1996, %v2118
      %v2175 = vadd.f32 %v1997, %v2121
      %v2176 = vadd.f32 %v1998, %v2126
      %v2177 = vadd.f32 %v1999, %v2129
      %v2178 = vadd.f32 %v2000, %v2134
      %v2179 = vadd.f32 %v2001, %v2137
      %v2180 = vadd.f32 %v2002, %v2142
      %v2181 = vadd.f32 %v2003, %v2145
      %v2182 = vadd.f32 %v2004, %v2150
      %v2183 = vadd.f32 %v2005, %v2153
      %v2184 = vadd.f32 %v2006, %v2158
      %v2185 = vadd.f32 %v2007, %v2161
      %v2186 = vadd.f32 %v2008, %v2166
      %v2187 = vadd.f32 %v2009, %v2169
      %v2188 = vpack.c.bf16 %v2173, %v2172
      %v2189 = vpack.c.bf16 %v2175, %v2174
      %v2190 = vpack.c.bf16 %v2177, %v2176
      %v2191 = vpack.c.bf16 %v2179, %v2178
      %v2192 = vpack.c.bf16 %v2181, %v2180
      %v2193 = vpack.c.bf16 %v2183, %v2182
      %v2194 = vpack.c.bf16 %v2185, %v2184
      %v2195 = vpack.c.bf16 %v2187, %v2186
      %v2204 = vunpack.c.l.b16 %v2188
      %v2205 = vunpack.c.h.b16 %v2188
      %v2206 = vunpack.c.l.b16 %v2189
      %v2207 = vunpack.c.h.b16 %v2189
      %v2208 = vunpack.c.l.b16 %v2190
      %v2209 = vunpack.c.h.b16 %v2190
      %v2210 = vunpack.c.l.b16 %v2191
      %v2211 = vunpack.c.h.b16 %v2191
      %v2212 = vunpack.c.l.b16 %v2192
      %v2213 = vunpack.c.h.b16 %v2192
      %v2214 = vunpack.c.l.b16 %v2193
      %v2215 = vunpack.c.h.b16 %v2193
      %v2216 = vunpack.c.l.b16 %v2194
      %v2217 = vunpack.c.h.b16 %v2194
      %v2218 = vunpack.c.l.b16 %v2195
      %v2219 = vunpack.c.h.b16 %v2195
      %v2220 = vpack.c.b16 %v2204, %v2204
      %v2221 = vpack.c.b16 %v2205, %v2205
      %v2222 = vpack.c.b16 %v2206, %v2206
      %v2223 = vpack.c.b16 %v2207, %v2207
      %v2224 = vpack.c.b16 %v2208, %v2208
      %v2225 = vpack.c.b16 %v2209, %v2209
      %v2226 = vpack.c.b16 %v2210, %v2210
      %v2227 = vpack.c.b16 %v2211, %v2211
      %v2228 = vpack.c.b16 %v2212, %v2212
      %v2229 = vpack.c.b16 %v2213, %v2213
      %v2230 = vpack.c.b16 %v2214, %v2214
      %v2231 = vpack.c.b16 %v2215, %v2215
      %v2232 = vpack.c.b16 %v2216, %v2216
      %v2233 = vpack.c.b16 %v2217, %v2217
      %v2234 = vpack.c.b16 %v2218, %v2218
      %v2235 = vpack.c.b16 %v2219, %v2219
      %vm2252 = vcmask 257024
      %2253 = vst.msk [vmem:[%s431] sm:$0xf] %vm2252, %v2220
      %2254 = vst.msk [vmem:[%s431 + $0x4] sm:$0xf] %vm2252, %v2221
      %2255 = vst.msk [vmem:[%s431 + $0x8] sm:$0xf] %vm2252, %v2222
      %2256 = vst.msk [vmem:[%s431 + $0xc] sm:$0xf] %vm2252, %v2223
      %2257 = vst.msk [vmem:[%s431 + $0x10] sm:$0xf] %vm2252, %v2224
      %2258 = vst.msk [vmem:[%s431 + $0x14] sm:$0xf] %vm2252, %v2225
      %2259 = vst.msk [vmem:[%s431 + $0x18] sm:$0xf] %vm2252, %v2226
      %2260 = vst.msk [vmem:[%s431 + $0x1c] sm:$0xf] %vm2252, %v2227
      %2261 = vst.msk [vmem:[%s431 + $0x20] sm:$0xf] %vm2252, %v2228
      %2262 = vst.msk [vmem:[%s431 + $0x24] sm:$0xf] %vm2252, %v2229
      %2263 = vst.msk [vmem:[%s431 + $0x28] sm:$0xf] %vm2252, %v2230
      %2264 = vst.msk [vmem:[%s431 + $0x2c] sm:$0xf] %vm2252, %v2231
      %2265 = vst.msk [vmem:[%s431 + $0x30] sm:$0xf] %vm2252, %v2232
      %2266 = vst.msk [vmem:[%s431 + $0x34] sm:$0xf] %vm2252, %v2233
      %2267 = vst.msk [vmem:[%s431 + $0x38] sm:$0xf] %vm2252, %v2234
      %2268 = vst.msk [vmem:[%s431 + $0x3c] sm:$0xf] %vm2252, %v2235
      %v2269 = vunpack.c.l.bf16 %v2188
      %v2270 = vunpack.c.h.bf16 %v2188
      %v2271 = vunpack.c.l.bf16 %v2189
      %v2272 = vunpack.c.h.bf16 %v2189
      %v2273 = vunpack.c.l.bf16 %v2190
      %v2274 = vunpack.c.h.bf16 %v2190
      %v2275 = vunpack.c.l.bf16 %v2191
      %v2276 = vunpack.c.h.bf16 %v2191
      %v2277 = vunpack.c.l.bf16 %v2192
      %v2278 = vunpack.c.h.bf16 %v2192
      %v2279 = vunpack.c.l.bf16 %v2193
      %v2280 = vunpack.c.h.bf16 %v2193
      %v2281 = vunpack.c.l.bf16 %v2194
      %v2282 = vunpack.c.h.bf16 %v2194
      %v2283 = vunpack.c.l.bf16 %v2195
      %v2284 = vunpack.c.h.bf16 %v2195
      %v2285 = vsel %vm564, %v2269, 0.0
      %v2286 = vsel %vm564, %v2270, 0.0
      %v2287 = vadd.f32 %v2285, %v2286
      %v2288 = vsel %vm564, %v2271, 0.0
      %v2289 = vadd.f32 %v2287, %v2288
      %v2290 = vsel %vm564, %v2272, 0.0
      %v2291 = vadd.f32 %v2289, %v2290
      %v2292 = vsel %vm564, %v2273, 0.0
      %v2293 = vadd.f32 %v2291, %v2292
      %v2294 = vsel %vm564, %v2274, 0.0
      %v2295 = vadd.f32 %v2293, %v2294
      %v2296 = vsel %vm564, %v2275, 0.0
      %v2297 = vadd.f32 %v2295, %v2296
      %v2298 = vsel %vm564, %v2276, 0.0
      %v2299 = vadd.f32 %v2297, %v2298
      %v2300 = vsel %vm564, %v2277, 0.0
      %v2301 = vadd.f32 %v2299, %v2300
      %v2302 = vsel %vm564, %v2278, 0.0
      %v2303 = vadd.f32 %v2301, %v2302
      %v2304 = vsel %vm564, %v2279, 0.0
      %v2305 = vadd.f32 %v2303, %v2304
      %v2306 = vsel %vm564, %v2280, 0.0
      %v2307 = vadd.f32 %v2305, %v2306
      %v2308 = vsel %vm564, %v2281, 0.0
      %v2309 = vadd.f32 %v2307, %v2308
      %v2310 = vsel %vm564, %v2282, 0.0
      %v2311 = vadd.f32 %v2309, %v2310
      %v2312 = vsel %vm564, %v2283, 0.0
      %v2313 = vadd.f32 %v2311, %v2312
      %v2314 = vsel %vm564, %v2284, 0.0
      %v2315 = vadd.f32 %v2313, %v2314
      %v2316 = vrot.slane %v2315, 4
      %v2317 = vadd.f32 %v2315, %v2316
      %v2318 = vrot.slane %v2317, 2
      %v2319 = vadd.f32 %v2317, %v2318
      %v2320 = vrot.slane %v2319, 1
      %v2321 = vadd.f32 %v2319, %v2320
      %v2322 = vmul.f32 %v2269, %v2269
      %v2323 = vmul.f32 %v2270, %v2270
      %v2324 = vmul.f32 %v2271, %v2271
      %v2325 = vmul.f32 %v2272, %v2272
      %v2326 = vmul.f32 %v2273, %v2273
      %v2327 = vmul.f32 %v2274, %v2274
      %v2328 = vmul.f32 %v2275, %v2275
      %v2329 = vmul.f32 %v2276, %v2276
      %v2330 = vmul.f32 %v2277, %v2277
      %v2331 = vmul.f32 %v2278, %v2278
      %v2332 = vmul.f32 %v2279, %v2279
      %v2333 = vmul.f32 %v2280, %v2280
      %v2334 = vmul.f32 %v2281, %v2281
      %v2335 = vmul.f32 %v2282, %v2282
      %v2336 = vmul.f32 %v2283, %v2283
      %v2337 = vmul.f32 %v2284, %v2284
      %v2338 = vsel %vm564, %v2322, 0.0
      %v2339 = vsel %vm564, %v2323, 0.0
      %v2340 = vadd.f32 %v2338, %v2339
      %v2341 = vsel %vm564, %v2324, 0.0
      %v2342 = vadd.f32 %v2340, %v2341
      %v2343 = vsel %vm564, %v2325, 0.0
      %v2344 = vadd.f32 %v2342, %v2343
      %v2345 = vsel %vm564, %v2326, 0.0
      %v2346 = vadd.f32 %v2344, %v2345
      %v2347 = vsel %vm564, %v2327, 0.0
      %v2348 = vadd.f32 %v2346, %v2347
      %v2349 = vsel %vm564, %v2328, 0.0
      %v2350 = vadd.f32 %v2348, %v2349
      %v2351 = vsel %vm564, %v2329, 0.0
      %v2352 = vadd.f32 %v2350, %v2351
      %v2353 = vsel %vm564, %v2330, 0.0
      %v2354 = vadd.f32 %v2352, %v2353
      %v2355 = vsel %vm564, %v2331, 0.0
      %v2356 = vadd.f32 %v2354, %v2355
      %v2357 = vsel %vm564, %v2332, 0.0
      %v2358 = vadd.f32 %v2356, %v2357
      %v2359 = vsel %vm564, %v2333, 0.0
      %v2360 = vadd.f32 %v2358, %v2359
      %v2361 = vsel %vm564, %v2334, 0.0
      %v2362 = vadd.f32 %v2360, %v2361
      %v2363 = vsel %vm564, %v2335, 0.0
      %v2364 = vadd.f32 %v2362, %v2363
      %v2365 = vsel %vm564, %v2336, 0.0
      %v2366 = vadd.f32 %v2364, %v2365
      %v2367 = vsel %vm564, %v2337, 0.0
      %v2368 = vadd.f32 %v2366, %v2367
      %v2369 = vrot.slane %v2368, 4
      %v2370 = vadd.f32 %v2368, %v2369
      %v2371 = vrot.slane %v2370, 2
      %v2372 = vadd.f32 %v2370, %v2371
      %v2373 = vrot.slane %v2372, 1
      %v2374 = vadd.f32 %v2372, %v2373
      %vm2375 = vcmask 1040384
      %v2376 = vsel %vm2375, %v2321, %v2374
      %2377 = vst.msk [vmem:[%s440] sm:$0x3] %vm567, %v2376
      %s2378 = smul.u32 8, %s23
      %p2379 = scmp.lt.s32.totalorder %s22, 1
      %s2380 = scalar_select %p2379, %s22, 1
      %p2381 = scmp.lt.s32.totalorder %s2378, 15
      %s2382 = scalar_select %p2381, %s2378, 15
      %s2383 = smul.addr %s2382, 2
      %s2384 = smul.addr %s2380, 32
      %s2385 = sadd.s32 %s2383, %s2384
      %s2386 = smul.addr %s2385, 4
      %s2387 = scalar_lea.vmem %s5, %s2386
      %p2388 = scmp.lt.s32.totalorder %s22, 1
      %s2389 = scalar_select %p2388, %s22, 1
      %p2390 = scmp.lt.s32.totalorder %s23, 1
      %s2391 = scalar_select %p2390, %s23, 1
      %s2392 = smul.addr %s2389, 2
      %s2393 = sadd.s32 %s2391, %s2392
      %s2394 = smul.addr %s2393, 2
      %s2395 = scalar_lea.vmem %s6, %s2394
      // Predicated region
      $region41: #{up_layer_residual_forward.4} parent=39 // pred_check
        %p2396 = pneg %p192
      $region42: #{up_layer_residual_forward.4} parent=39 // pred_check_branch
        %2398 = sbr.rel (%p2396) target = $region44
      $region43: #{up_layer_residual_forward.4} parent=39 // pred_region
        %s2399 = smul.u32 8, %s23
      $region44: #{up_layer_residual_forward.4} parent=39 // pred_fallthru
        _
      // Predicated region
      $region45: #{up_layer_residual_forward.4} parent=39 // pred_check
        %p2400 = pneg %p220
      $region46: #{up_layer_residual_forward.4} parent=39 // pred_check_branch
        %2402 = sbr.rel (%p2400) target = $region48
      $region47: #{up_layer_residual_forward.4} parent=39 // pred_region
        _
      $region48: #{up_layer_residual_forward.4} parent=39 // pred_fallthru
        _
    $region40: #{up_layer_residual_forward.4} parent=5 // pred_fallthru
      _
    %p2403 = scmp.le.s32.totalorder 2, %s13
    // Predicated region
    $region49: #{up_layer_residual_forward.4} parent=5 // pred_check
      %p2404 = pneg %p2403
    $region50: #{up_layer_residual_forward.4} parent=5 // pred_check_branch
      %2406 = sbr.rel (%p2404) target = $region52
    $region51: #{up_layer_residual_forward.4} parent=5 // pred_region
      %s2407 = ssub.s32 %s13, 2
      // Predicated region
      $region53: #{up_layer_residual_forward.4} parent=51 // pred_check
        %p2408 = pneg %p198
      $region54: #{up_layer_residual_forward.4} parent=51 // pred_check_branch
        %2410 = sbr.rel (%p2408) target = $region56
      $region55: #{up_layer_residual_forward.4} parent=51 // pred_region
        %s2411 = smul.u32 8, %s25
        %p2412 = scmp.lt.s32.totalorder %s24, 1
        %s2413 = scalar_select %p2412, %s24, 1
        %p2414 = scmp.lt.s32.totalorder %s2411, 15
        %s2415 = scalar_select %p2414, %s2411, 15
        %s2416 = smul.addr %s2415, 2
        %s2417 = smul.addr %s2413, 32
        %s2418 = sadd.s32 %s2416, %s2417
        %s2419 = smul.addr %s2418, 4
        %s2420 = scalar_lea.vmem %s5, %s2419
      $region56: #{up_layer_residual_forward.4} parent=51 // pred_fallthru
        _
      // Predicated region
      $region57: #{up_layer_residual_forward.4} parent=51 // pred_check
        %p2421 = pneg %p226
      $region58: #{up_layer_residual_forward.4} parent=51 // pred_check_branch
        %2423 = sbr.rel (%p2421) target = $region60
      $region59: #{up_layer_residual_forward.4} parent=51 // pred_region
        %p2424 = scmp.lt.s32.totalorder %s24, 1
        %s2425 = scalar_select %p2424, %s24, 1
        %p2426 = scmp.lt.s32.totalorder %s25, 1
        %s2427 = scalar_select %p2426, %s25, 1
        %s2428 = smul.addr %s2425, 2
        %s2429 = sadd.s32 %s2427, %s2428
        %s2430 = smul.addr %s2429, 2
        %s2431 = scalar_lea.vmem %s6, %s2430
      $region60: #{up_layer_residual_forward.4} parent=51 // pred_fallthru
        _
    $region52: #{up_layer_residual_forward.4} parent=5 // pred_fallthru
      _
  $region6: #{up_layer_residual_forward.4} parent=0 // loop_footer
    %s17 = sadd.s32 1, %s13
  $region7: #{up_layer_residual_forward.4} parent=0 // loop_footer_branch
    %12 = sbr.rel target = $region3
  $region8: #{up_layer_residual_forward.4} parent=0 // loop_exit
    _

</llo_original>
